<compile_context>
chip_gen: v7x
topology: tpu7x:2x2x1
jax: 0.10.0
libtpu: 0.0.40
codegen_flags: <defaults>
</compile_context>

<pallas_src>
import functools

import jax
import jax.numpy as jnp
import numpy as np
from jax.experimental import pallas as pl
from jax.experimental.pallas import tpu as pltpu


def _make_sparse_conv_kernel(H, W, Ho, Wo, K, Cin, Cout, stride, padding,
                             dilation):
    HW = Ho * Wo
    NEG_INF = float("-inf")

    def kernel(xin_ref, w_ref, b_ref, xo_ref, mo_ref):
        # xin_ref: (1, Hp, Wp, Cin+1)  zero-padded, channels = [x_0..x_{Cin-1}, m]
        # w_ref  : (K*K, Cout+1, Cin+1) augmented per-tap weights
        #            rows 0..Cout-1 : conv weights (0 on the mask channel)
        #            row  Cout      : 1 on the mask channel -> window_sum(m)
        # b_ref  : (Cout, 1) bias
        # xo_ref : (1, Cout, Ho*Wo)   lane-dense activation output
        # mo_ref : (1, Ho, Wo, 1)     pooled mask
        w_all = w_ref[...]                       # (K*K, Cout+1, Cin+1)
        bias = b_ref[...]                        # (Cout, 1)

        acc = jnp.zeros((Cout + 1, HW), jnp.float32)
        mmax = jnp.full((Ho, Wo, 1), NEG_INF, jnp.float32)

        # column selector: True for x channels, False for the mask channel
        chan_is_x = jax.lax.broadcasted_iota(jnp.int32, (1, Cin + 1), 1) < Cin
        # output-pixel coordinates in padded-input space (for the -inf pool border)
        oh = jax.lax.broadcasted_iota(jnp.int32, (Ho, Wo, 1), 0) * stride
        ow = jax.lax.broadcasted_iota(jnp.int32, (Ho, Wo, 1), 1) * stride

        for kh in range(K):
            for kw in range(K):
                h0 = kh * dilation
                w0 = kw * dilation
                hsl = pl.ds(h0, Ho) if stride == 1 else pl.ds(h0, Ho, stride)
                wsl = pl.ds(w0, Wo) if stride == 1 else pl.ds(w0, Wo, stride)

                patch = xin_ref[0, hsl, wsl, :]          # (Ho, Wo, Cin+1)

                # ---- conv + fused mask-window-sum on the MXU ----
                pf = patch.reshape(HW, Cin + 1)          # minor dim untouched
                mcol = pf[:, Cin:Cin + 1]                # raw mask at this tap
                pfm = jnp.where(chan_is_x, pf * mcol, pf)
                # (Cout+1, Cin+1) x (HW, Cin+1)^T -> (Cout+1, HW), lane-dense
                acc = acc + jax.lax.dot_general(
                    w_all[kh * K + kw], pfm,
                    (((1,), (1,)), ((), ())),
                    preferred_element_type=jnp.float32)

                # ---- max-pool of the mask (-inf outside the original image) ----
                mp = patch[:, :, Cin:Cin + 1]            # (Ho, Wo, 1)
                rr = oh + h0
                cc = ow + w0
                valid = ((rr >= padding) & (rr < padding + H)
                         & (cc >= padding) & (cc < padding + W))
                mmax = jnp.maximum(mmax, jnp.where(valid, mp, NEG_INF))

        msum = acc[Cout:Cout + 1, :]                     # (1, HW) = window_sum(m)
        norm = jnp.maximum(msum * jnp.float32(Cin), jnp.float32(1e-5))
        inv = 1.0 / norm
        out = acc[:Cout, :] * inv + bias                 # (Cout, HW)
        xo_ref[0] = out.astype(xo_ref.dtype)
        mo_ref[0] = mmax.astype(mo_ref.dtype)

    return kernel


@functools.partial(jax.jit, static_argnames=("stride", "padding", "dilation"))
def sparse_conv_pallas(x_nchw, m_nchw, w_oihw, bias, *, stride=1, padding=0,
                       dilation=1):
    """SparseConv forward. Inputs/outputs in NCHW like the PyTorch module."""
    N, Cin, H, W = x_nchw.shape
    Cout = w_oihw.shape[0]
    K = w_oihw.shape[2]
    Ho = (H + 2 * padding - dilation * (K - 1) - 1) // stride + 1
    Wo = (W + 2 * padding - dilation * (K - 1) - 1) // stride + 1
    Hp, Wp = H + 2 * padding, W + 2 * padding
    HW = Ho * Wo

    # --- glue: build one combined NHWC input [x_0..x_{Cin-1}, m], zero-padded ---
    x = jnp.transpose(x_nchw, (0, 2, 3, 1)).astype(jnp.float32)     # (N,H,W,Cin)
    m = jnp.transpose(m_nchw, (0, 2, 3, 1)).astype(jnp.float32)     # (N,H,W,1)
    xin = jnp.concatenate([x, m], axis=-1)                          # (N,H,W,Cin+1)
    xin = jnp.pad(xin, ((0, 0), (padding, padding), (padding, padding), (0, 0)))

    # augmented per-tap weight matrix (K*K, Cout+1, Cin+1)
    w_t = jnp.transpose(w_oihw.astype(jnp.float32), (2, 3, 0, 1))   # (K,K,Cout,Cin)
    w_t = w_t.reshape(K * K, Cout, Cin)
    w_aug = jnp.zeros((K * K, Cout + 1, Cin + 1), jnp.float32)
    w_aug = w_aug.at[:, :Cout, :Cin].set(w_t)
    w_aug = w_aug.at[:, Cout, Cin].set(1.0)

    b_col = bias.astype(jnp.float32).reshape(Cout, 1)

    kernel = _make_sparse_conv_kernel(H, W, Ho, Wo, K, Cin, Cout, stride,
                                      padding, dilation)

    flops = 2 * N * HW * K * K * (Cin + 1) * (Cout + 1)
    bytes_accessed = 4 * (xin.size + w_aug.size + b_col.size
                          + N * Cout * HW + N * Ho * Wo)

    x_out, m_out = pl.pallas_call(
        kernel,
        out_shape=(
            jax.ShapeDtypeStruct((N, Cout, HW), jnp.float32),
            jax.ShapeDtypeStruct((N, Ho, Wo, 1), jnp.float32),
        ),
        grid_spec=pltpu.PrefetchScalarGridSpec(
            num_scalar_prefetch=0,
            grid=(N,),
            in_specs=[
                pl.BlockSpec((1, Hp, Wp, Cin + 1), lambda n: (n, 0, 0, 0)),
                pl.BlockSpec((K * K, Cout + 1, Cin + 1), lambda n: (0, 0, 0)),
                pl.BlockSpec((Cout, 1), lambda n: (0, 0)),
            ],
            out_specs=[
                pl.BlockSpec((1, Cout, HW), lambda n: (n, 0, 0)),
                pl.BlockSpec((1, Ho, Wo, 1), lambda n: (n, 0, 0, 0)),
            ],
        ),
        compiler_params=pltpu.CompilerParams(
            dimension_semantics=("parallel",),
            vmem_limit_bytes=32 * 1024 * 1024),
        cost_estimate=pl.CostEstimate(
            flops=flops, transcendentals=0, bytes_accessed=bytes_accessed),
    )(xin, w_aug, b_col)

    # lane-dense outputs -> NCHW by pure reshape (no transpose)
    return x_out.reshape(N, Cout, Ho, Wo), m_out.reshape(N, 1, Ho, Wo)


def sparse_conv_reference(x_nchw, m_nchw, w_oihw, bias, *, stride, padding,
                          dilation):
    """Pure-JAX reference matching the PyTorch forward (for validation)."""
    K = w_oihw.shape[-1]
    dn = ("NCHW", "OIHW", "NCHW")
    mc = jnp.broadcast_to(m_nchw, x_nchw.shape)
    xm = x_nchw * mc
    xc = jax.lax.conv_general_dilated(
        xm, w_oihw, (stride, stride), [(padding, padding)] * 2,
        rhs_dilation=(dilation, dilation), dimension_numbers=dn)
    ones_w = jnp.ones_like(w_oihw)
    norm = jax.lax.conv_general_dilated(
        mc, ones_w, (stride, stride), [(padding, padding)] * 2,
        rhs_dilation=(dilation, dilation), dimension_numbers=dn)
    norm = jnp.clip(norm, 1e-5)
    xc = xc * (1.0 / norm) + bias[None, :, None, None]
    m_out = jax.lax.reduce_window(
        m_nchw, -jnp.inf, jax.lax.max,
        window_dimensions=(1, 1, K, K),
        window_strides=(1, 1, stride, stride),
        padding=[(0, 0), (0, 0), (padding, padding), (padding, padding)],
        window_dilation=(1, 1, dilation, dilation))
    return xc, m_out


if __name__ == "__main__":
    # SparseConv(in_channels=4, out_channels=8, kernel_size=3, stride=1,
    #            padding=1, dilation=1, bias=True)
    N, Cin, Cout, H, W, K = 2, 4, 8, 16, 16, 3
    stride, padding, dilation = 1, 1, 1

    key = jax.random.PRNGKey(0)
    kx, km, kw, kb = jax.random.split(key, 4)

    x = jax.random.normal(kx, (N, Cin, H, W), dtype=jnp.float32)
    m = (jax.random.uniform(km, (N, 1, H, W)) > 0.5).astype(jnp.float32)

    # kaiming_normal_(mode='fan_out', nonlinearity='leaky_relu'):
    # gain = sqrt(2 / (1 + 0.01^2)), std = gain / sqrt(fan_out = Cout*K*K)
    gain = np.sqrt(2.0 / (1.0 + 0.01 ** 2))
    std = gain / np.sqrt(Cout * K * K)
    w = jax.random.normal(kw, (Cout, Cin, K, K), dtype=jnp.float32) * std
    bias = jax.random.normal(kb, (Cout,), dtype=jnp.float32) * 0.1

    x_out, m_out = sparse_conv_pallas(
        x, m, w, bias, stride=stride, padding=padding, dilation=dilation)
    jax.block_until_ready((x_out, m_out))

    x_ref, m_ref = sparse_conv_reference(
        x, m, w, bias, stride=stride, padding=padding, dilation=dilation)

    np.testing.assert_allclose(np.asarray(x_out), np.asarray(x_ref),
                               rtol=1e-4, atol=1e-4)
    np.testing.assert_allclose(np.asarray(m_out), np.asarray(m_ref),
                               rtol=1e-5, atol=1e-5)

    print("KERNEL_OK")
</pallas_src>

<mosaic_0001>
module attributes {stable_mosaic.version = 11 : i64} {
  func.func @kernel(%arg0: i32, %arg1: memref<1x18x18x5xf32, #tpu.memory_space<vmem>>, %arg2: memref<9x9x5xf32, #tpu.memory_space<vmem>>, %arg3: memref<8x1xf32, #tpu.memory_space<vmem>>, %arg4: memref<1x8x256xf32, #tpu.memory_space<vmem>>, %arg5: memref<1x16x16x1xf32, #tpu.memory_space<vmem>>) attributes {dimension_semantics = [#tpu.dimension_semantics<parallel>], iteration_bounds = array<i64: 2>, scalar_prefetch = 0 : i64, scratch_operands = 0 : i64, tpu.core_type = #tpu.core_type<tc>, window_params = [{transform_indices = @transform_0, window_bounds = array<i64: 1, 18, 18, 5>}, {pipeline_mode = #tpu.pipeline_mode<synchronous>, transform_indices = @transform_1, window_bounds = array<i64: 9, 9, 5>}, {pipeline_mode = #tpu.pipeline_mode<synchronous>, transform_indices = @transform_2, window_bounds = array<i64: 8, 1>}, {transform_indices = @transform_3, window_bounds = array<i64: 1, 8, 256>}, {transform_indices = @transform_4, window_bounds = array<i64: 1, 16, 16, 1>}]} {
    %c0 = arith.constant 0 : index
    %c0_0 = arith.constant 0 : index
    %c0_1 = arith.constant 0 : index
    %0 = vector.load %arg2[%c0, %c0_0, %c0_1] : memref<9x9x5xf32, #tpu.memory_space<vmem>>, vector<9x9x5xf32>
    %c0_2 = arith.constant 0 : index
    %c0_3 = arith.constant 0 : index
    %1 = vector.load %arg3[%c0_2, %c0_3] : memref<8x1xf32, #tpu.memory_space<vmem>>, vector<8x1xf32>
    %cst = arith.constant 0.000000e+00 : f32
    %2 = vector.broadcast %cst : f32 to vector<9x256xf32>
    %cst_4 = arith.constant 0xFF800000 : f32
    %3 = vector.broadcast %cst_4 : f32 to vector<16x16x1xf32>
    %4 = tpu.iota {dimensions = array<i32: 1>} : vector<1x5xi32>
    %c4_i32 = arith.constant 4 : i32
    %5 = vector.broadcast %c4_i32 : i32 to vector<1x5xi32>
    %6 = arith.cmpi slt, %4, %5 : vector<1x5xi32>
    %7 = tpu.iota {dimensions = array<i32: 0>} : vector<16x16x1xi32>
    %c1_i32 = arith.constant 1 : i32
    %8 = vector.broadcast %c1_i32 : i32 to vector<16x16x1xi32>
    %9 = arith.muli %7, %8 : vector<16x16x1xi32>
    %10 = tpu.iota {dimensions = array<i32: 1>} : vector<16x16x1xi32>
    %c1_i32_5 = arith.constant 1 : i32
    %11 = vector.broadcast %c1_i32_5 : i32 to vector<16x16x1xi32>
    %12 = arith.muli %10, %11 : vector<16x16x1xi32>
    %c0_6 = arith.constant 0 : index
    %c0_7 = arith.constant 0 : index
    %c0_8 = arith.constant 0 : index
    %c0_9 = arith.constant 0 : index
    %13 = vector.load %arg1[%c0_6, %c0_7, %c0_8, %c0_9] : memref<1x18x18x5xf32, #tpu.memory_space<vmem>>, vector<1x16x16x5xf32>
    %14 = vector.shape_cast %13 : vector<1x16x16x5xf32> to vector<16x16x5xf32>
    %15 = vector.shape_cast %14 : vector<16x16x5xf32> to vector<256x5xf32>
    %16 = vector.extract_strided_slice %15 {offsets = [0, 4], sizes = [256, 1], strides = [1, 1]} : vector<256x5xf32> to vector<256x1xf32>
    %17 = vector.broadcast %16 : vector<256x1xf32> to vector<256x5xf32>
    %18 = arith.mulf %15, %17 : vector<256x5xf32>
    %19 = vector.shape_cast %6 : vector<1x5xi1> to vector<1x5xi1>
    %20 = vector.broadcast %19 : vector<1x5xi1> to vector<256x5xi1>
    %21 = arith.select %20, %18, %15 : vector<256x5xi1>, vector<256x5xf32>
    %22 = vector.extract_strided_slice %0 {offsets = [0, 0, 0], sizes = [1, 9, 5], strides = [1, 1, 1]} : vector<9x9x5xf32> to vector<1x9x5xf32>
    %23 = vector.shape_cast %22 : vector<1x9x5xf32> to vector<9x5xf32>
    %cst_10 = arith.constant dense<0.000000e+00> : vector<9x256xf32>
    %24 = tpu.matmul %23, %21, %cst_10 {dimension_numbers = #tpu.dot_dimension_numbers<[1], [1], [0], [0], [0, 0, 1, 0], [], []>} : vector<9x5xf32>, vector<256x5xf32>, vector<9x256xf32> -> vector<9x256xf32>
    %25 = arith.addf %2, %24 : vector<9x256xf32>
    %26 = vector.extract_strided_slice %14 {offsets = [0, 0, 4], sizes = [16, 16, 1], strides = [1, 1, 1]} : vector<16x16x5xf32> to vector<16x16x1xf32>
    %c0_i32 = arith.constant 0 : i32
    %27 = vector.broadcast %c0_i32 : i32 to vector<16x16x1xi32>
    %28 = arith.addi %9, %27 : vector<16x16x1xi32>
    %c0_i32_11 = arith.constant 0 : i32
    %29 = vector.broadcast %c0_i32_11 : i32 to vector<16x16x1xi32>
    %30 = arith.addi %12, %29 : vector<16x16x1xi32>
    %c1_i32_12 = arith.constant 1 : i32
    %31 = vector.broadcast %c1_i32_12 : i32 to vector<16x16x1xi32>
    %32 = arith.cmpi sge, %28, %31 : vector<16x16x1xi32>
    %c17_i32 = arith.constant 17 : i32
    %33 = vector.broadcast %c17_i32 : i32 to vector<16x16x1xi32>
    %34 = arith.cmpi slt, %28, %33 : vector<16x16x1xi32>
    %35 = arith.andi %32, %34 : vector<16x16x1xi1>
    %c1_i32_13 = arith.constant 1 : i32
    %36 = vector.broadcast %c1_i32_13 : i32 to vector<16x16x1xi32>
    %37 = arith.cmpi sge, %30, %36 : vector<16x16x1xi32>
    %38 = arith.andi %35, %37 : vector<16x16x1xi1>
    %c17_i32_14 = arith.constant 17 : i32
    %39 = vector.broadcast %c17_i32_14 : i32 to vector<16x16x1xi32>
    %40 = arith.cmpi slt, %30, %39 : vector<16x16x1xi32>
    %41 = arith.andi %38, %40 : vector<16x16x1xi1>
    %cst_15 = arith.constant 0xFF800000 : f32
    %42 = vector.broadcast %cst_15 : f32 to vector<16x16x1xf32>
    %43 = arith.select %41, %26, %42 : vector<16x16x1xi1>, vector<16x16x1xf32>
    %44 = arith.maximumf %3, %43 : vector<16x16x1xf32>
    %c0_16 = arith.constant 0 : index
    %c0_17 = arith.constant 0 : index
    %c1 = arith.constant 1 : index
    %c0_18 = arith.constant 0 : index
    %45 = vector.load %arg1[%c0_16, %c0_17, %c1, %c0_18] : memref<1x18x18x5xf32, #tpu.memory_space<vmem>>, vector<1x16x16x5xf32>
    %46 = vector.shape_cast %45 : vector<1x16x16x5xf32> to vector<16x16x5xf32>
    %47 = vector.shape_cast %46 : vector<16x16x5xf32> to vector<256x5xf32>
    %48 = vector.extract_strided_slice %47 {offsets = [0, 4], sizes = [256, 1], strides = [1, 1]} : vector<256x5xf32> to vector<256x1xf32>
    %49 = vector.broadcast %48 : vector<256x1xf32> to vector<256x5xf32>
    %50 = arith.mulf %47, %49 : vector<256x5xf32>
    %51 = vector.shape_cast %6 : vector<1x5xi1> to vector<1x5xi1>
    %52 = vector.broadcast %51 : vector<1x5xi1> to vector<256x5xi1>
    %53 = arith.select %52, %50, %47 : vector<256x5xi1>, vector<256x5xf32>
    %54 = vector.extract_strided_slice %0 {offsets = [1, 0, 0], sizes = [1, 9, 5], strides = [1, 1, 1]} : vector<9x9x5xf32> to vector<1x9x5xf32>
    %55 = vector.shape_cast %54 : vector<1x9x5xf32> to vector<9x5xf32>
    %cst_19 = arith.constant dense<0.000000e+00> : vector<9x256xf32>
    %56 = tpu.matmul %55, %53, %cst_19 {dimension_numbers = #tpu.dot_dimension_numbers<[1], [1], [0], [0], [0, 0, 1, 0], [], []>} : vector<9x5xf32>, vector<256x5xf32>, vector<9x256xf32> -> vector<9x256xf32>
    %57 = arith.addf %25, %56 : vector<9x256xf32>
    %58 = vector.extract_strided_slice %46 {offsets = [0, 0, 4], sizes = [16, 16, 1], strides = [1, 1, 1]} : vector<16x16x5xf32> to vector<16x16x1xf32>
    %c0_i32_20 = arith.constant 0 : i32
    %59 = vector.broadcast %c0_i32_20 : i32 to vector<16x16x1xi32>
    %60 = arith.addi %9, %59 : vector<16x16x1xi32>
    %c1_i32_21 = arith.constant 1 : i32
    %61 = vector.broadcast %c1_i32_21 : i32 to vector<16x16x1xi32>
    %62 = arith.addi %12, %61 : vector<16x16x1xi32>
    %c1_i32_22 = arith.constant 1 : i32
    %63 = vector.broadcast %c1_i32_22 : i32 to vector<16x16x1xi32>
    %64 = arith.cmpi sge, %60, %63 : vector<16x16x1xi32>
    %c17_i32_23 = arith.constant 17 : i32
    %65 = vector.broadcast %c17_i32_23 : i32 to vector<16x16x1xi32>
    %66 = arith.cmpi slt, %60, %65 : vector<16x16x1xi32>
    %67 = arith.andi %64, %66 : vector<16x16x1xi1>
    %c1_i32_24 = arith.constant 1 : i32
    %68 = vector.broadcast %c1_i32_24 : i32 to vector<16x16x1xi32>
    %69 = arith.cmpi sge, %62, %68 : vector<16x16x1xi32>
    %70 = arith.andi %67, %69 : vector<16x16x1xi1>
    %c17_i32_25 = arith.constant 17 : i32
    %71 = vector.broadcast %c17_i32_25 : i32 to vector<16x16x1xi32>
    %72 = arith.cmpi slt, %62, %71 : vector<16x16x1xi32>
    %73 = arith.andi %70, %72 : vector<16x16x1xi1>
    %cst_26 = arith.constant 0xFF800000 : f32
    %74 = vector.broadcast %cst_26 : f32 to vector<16x16x1xf32>
    %75 = arith.select %73, %58, %74 : vector<16x16x1xi1>, vector<16x16x1xf32>
    %76 = arith.maximumf %44, %75 : vector<16x16x1xf32>
    %c0_27 = arith.constant 0 : index
    %c0_28 = arith.constant 0 : index
    %c2 = arith.constant 2 : index
    %c0_29 = arith.constant 0 : index
    %77 = vector.load %arg1[%c0_27, %c0_28, %c2, %c0_29] : memref<1x18x18x5xf32, #tpu.memory_space<vmem>>, vector<1x16x16x5xf32>
    %78 = vector.shape_cast %77 : vector<1x16x16x5xf32> to vector<16x16x5xf32>
    %79 = vector.shape_cast %78 : vector<16x16x5xf32> to vector<256x5xf32>
    %80 = vector.extract_strided_slice %79 {offsets = [0, 4], sizes = [256, 1], strides = [1, 1]} : vector<256x5xf32> to vector<256x1xf32>
    %81 = vector.broadcast %80 : vector<256x1xf32> to vector<256x5xf32>
    %82 = arith.mulf %79, %81 : vector<256x5xf32>
    %83 = vector.shape_cast %6 : vector<1x5xi1> to vector<1x5xi1>
    %84 = vector.broadcast %83 : vector<1x5xi1> to vector<256x5xi1>
    %85 = arith.select %84, %82, %79 : vector<256x5xi1>, vector<256x5xf32>
    %86 = vector.extract_strided_slice %0 {offsets = [2, 0, 0], sizes = [1, 9, 5], strides = [1, 1, 1]} : vector<9x9x5xf32> to vector<1x9x5xf32>
    %87 = vector.shape_cast %86 : vector<1x9x5xf32> to vector<9x5xf32>
    %cst_30 = arith.constant dense<0.000000e+00> : vector<9x256xf32>
    %88 = tpu.matmul %87, %85, %cst_30 {dimension_numbers = #tpu.dot_dimension_numbers<[1], [1], [0], [0], [0, 0, 1, 0], [], []>} : vector<9x5xf32>, vector<256x5xf32>, vector<9x256xf32> -> vector<9x256xf32>
    %89 = arith.addf %57, %88 : vector<9x256xf32>
    %90 = vector.extract_strided_slice %78 {offsets = [0, 0, 4], sizes = [16, 16, 1], strides = [1, 1, 1]} : vector<16x16x5xf32> to vector<16x16x1xf32>
    %c0_i32_31 = arith.constant 0 : i32
    %91 = vector.broadcast %c0_i32_31 : i32 to vector<16x16x1xi32>
    %92 = arith.addi %9, %91 : vector<16x16x1xi32>
    %c2_i32 = arith.constant 2 : i32
    %93 = vector.broadcast %c2_i32 : i32 to vector<16x16x1xi32>
    %94 = arith.addi %12, %93 : vector<16x16x1xi32>
    %c1_i32_32 = arith.constant 1 : i32
    %95 = vector.broadcast %c1_i32_32 : i32 to vector<16x16x1xi32>
    %96 = arith.cmpi sge, %92, %95 : vector<16x16x1xi32>
    %c17_i32_33 = arith.constant 17 : i32
    %97 = vector.broadcast %c17_i32_33 : i32 to vector<16x16x1xi32>
    %98 = arith.cmpi slt, %92, %97 : vector<16x16x1xi32>
    %99 = arith.andi %96, %98 : vector<16x16x1xi1>
    %c1_i32_34 = arith.constant 1 : i32
    %100 = vector.broadcast %c1_i32_34 : i32 to vector<16x16x1xi32>
    %101 = arith.cmpi sge, %94, %100 : vector<16x16x1xi32>
    %102 = arith.andi %99, %101 : vector<16x16x1xi1>
    %c17_i32_35 = arith.constant 17 : i32
    %103 = vector.broadcast %c17_i32_35 : i32 to vector<16x16x1xi32>
    %104 = arith.cmpi slt, %94, %103 : vector<16x16x1xi32>
    %105 = arith.andi %102, %104 : vector<16x16x1xi1>
    %cst_36 = arith.constant 0xFF800000 : f32
    %106 = vector.broadcast %cst_36 : f32 to vector<16x16x1xf32>
    %107 = arith.select %105, %90, %106 : vector<16x16x1xi1>, vector<16x16x1xf32>
    %108 = arith.maximumf %76, %107 : vector<16x16x1xf32>
    %c0_37 = arith.constant 0 : index
    %c1_38 = arith.constant 1 : index
    %c0_39 = arith.constant 0 : index
    %c0_40 = arith.constant 0 : index
    %109 = vector.load %arg1[%c0_37, %c1_38, %c0_39, %c0_40] : memref<1x18x18x5xf32, #tpu.memory_space<vmem>>, vector<1x16x16x5xf32>
    %110 = vector.shape_cast %109 : vector<1x16x16x5xf32> to vector<16x16x5xf32>
    %111 = vector.shape_cast %110 : vector<16x16x5xf32> to vector<256x5xf32>
    %112 = vector.extract_strided_slice %111 {offsets = [0, 4], sizes = [256, 1], strides = [1, 1]} : vector<256x5xf32> to vector<256x1xf32>
    %113 = vector.broadcast %112 : vector<256x1xf32> to vector<256x5xf32>
    %114 = arith.mulf %111, %113 : vector<256x5xf32>
    %115 = vector.shape_cast %6 : vector<1x5xi1> to vector<1x5xi1>
    %116 = vector.broadcast %115 : vector<1x5xi1> to vector<256x5xi1>
    %117 = arith.select %116, %114, %111 : vector<256x5xi1>, vector<256x5xf32>
    %118 = vector.extract_strided_slice %0 {offsets = [3, 0, 0], sizes = [1, 9, 5], strides = [1, 1, 1]} : vector<9x9x5xf32> to vector<1x9x5xf32>
    %119 = vector.shape_cast %118 : vector<1x9x5xf32> to vector<9x5xf32>
    %cst_41 = arith.constant dense<0.000000e+00> : vector<9x256xf32>
    %120 = tpu.matmul %119, %117, %cst_41 {dimension_numbers = #tpu.dot_dimension_numbers<[1], [1], [0], [0], [0, 0, 1, 0], [], []>} : vector<9x5xf32>, vector<256x5xf32>, vector<9x256xf32> -> vector<9x256xf32>
    %121 = arith.addf %89, %120 : vector<9x256xf32>
    %122 = vector.extract_strided_slice %110 {offsets = [0, 0, 4], sizes = [16, 16, 1], strides = [1, 1, 1]} : vector<16x16x5xf32> to vector<16x16x1xf32>
    %c1_i32_42 = arith.constant 1 : i32
    %123 = vector.broadcast %c1_i32_42 : i32 to vector<16x16x1xi32>
    %124 = arith.addi %9, %123 : vector<16x16x1xi32>
    %c0_i32_43 = arith.constant 0 : i32
    %125 = vector.broadcast %c0_i32_43 : i32 to vector<16x16x1xi32>
    %126 = arith.addi %12, %125 : vector<16x16x1xi32>
    %c1_i32_44 = arith.constant 1 : i32
    %127 = vector.broadcast %c1_i32_44 : i32 to vector<16x16x1xi32>
    %128 = arith.cmpi sge, %124, %127 : vector<16x16x1xi32>
    %c17_i32_45 = arith.constant 17 : i32
    %129 = vector.broadcast %c17_i32_45 : i32 to vector<16x16x1xi32>
    %130 = arith.cmpi slt, %124, %129 : vector<16x16x1xi32>
    %131 = arith.andi %128, %130 : vector<16x16x1xi1>
    %c1_i32_46 = arith.constant 1 : i32
    %132 = vector.broadcast %c1_i32_46 : i32 to vector<16x16x1xi32>
    %133 = arith.cmpi sge, %126, %132 : vector<16x16x1xi32>
    %134 = arith.andi %131, %133 : vector<16x16x1xi1>
    %c17_i32_47 = arith.constant 17 : i32
    %135 = vector.broadcast %c17_i32_47 : i32 to vector<16x16x1xi32>
    %136 = arith.cmpi slt, %126, %135 : vector<16x16x1xi32>
    %137 = arith.andi %134, %136 : vector<16x16x1xi1>
    %cst_48 = arith.constant 0xFF800000 : f32
    %138 = vector.broadcast %cst_48 : f32 to vector<16x16x1xf32>
    %139 = arith.select %137, %122, %138 : vector<16x16x1xi1>, vector<16x16x1xf32>
    %140 = arith.maximumf %108, %139 : vector<16x16x1xf32>
    %c0_49 = arith.constant 0 : index
    %c1_50 = arith.constant 1 : index
    %c1_51 = arith.constant 1 : index
    %c0_52 = arith.constant 0 : index
    %141 = vector.load %arg1[%c0_49, %c1_50, %c1_51, %c0_52] : memref<1x18x18x5xf32, #tpu.memory_space<vmem>>, vector<1x16x16x5xf32>
    %142 = vector.shape_cast %141 : vector<1x16x16x5xf32> to vector<16x16x5xf32>
    %143 = vector.shape_cast %142 : vector<16x16x5xf32> to vector<256x5xf32>
    %144 = vector.extract_strided_slice %143 {offsets = [0, 4], sizes = [256, 1], strides = [1, 1]} : vector<256x5xf32> to vector<256x1xf32>
    %145 = vector.broadcast %144 : vector<256x1xf32> to vector<256x5xf32>
    %146 = arith.mulf %143, %145 : vector<256x5xf32>
    %147 = vector.shape_cast %6 : vector<1x5xi1> to vector<1x5xi1>
    %148 = vector.broadcast %147 : vector<1x5xi1> to vector<256x5xi1>
    %149 = arith.select %148, %146, %143 : vector<256x5xi1>, vector<256x5xf32>
    %150 = vector.extract_strided_slice %0 {offsets = [4, 0, 0], sizes = [1, 9, 5], strides = [1, 1, 1]} : vector<9x9x5xf32> to vector<1x9x5xf32>
    %151 = vector.shape_cast %150 : vector<1x9x5xf32> to vector<9x5xf32>
    %cst_53 = arith.constant dense<0.000000e+00> : vector<9x256xf32>
    %152 = tpu.matmul %151, %149, %cst_53 {dimension_numbers = #tpu.dot_dimension_numbers<[1], [1], [0], [0], [0, 0, 1, 0], [], []>} : vector<9x5xf32>, vector<256x5xf32>, vector<9x256xf32> -> vector<9x256xf32>
    %153 = arith.addf %121, %152 : vector<9x256xf32>
    %154 = vector.extract_strided_slice %142 {offsets = [0, 0, 4], sizes = [16, 16, 1], strides = [1, 1, 1]} : vector<16x16x5xf32> to vector<16x16x1xf32>
    %c1_i32_54 = arith.constant 1 : i32
    %155 = vector.broadcast %c1_i32_54 : i32 to vector<16x16x1xi32>
    %156 = arith.addi %9, %155 : vector<16x16x1xi32>
    %c1_i32_55 = arith.constant 1 : i32
    %157 = vector.broadcast %c1_i32_55 : i32 to vector<16x16x1xi32>
    %158 = arith.addi %12, %157 : vector<16x16x1xi32>
    %c1_i32_56 = arith.constant 1 : i32
    %159 = vector.broadcast %c1_i32_56 : i32 to vector<16x16x1xi32>
    %160 = arith.cmpi sge, %156, %159 : vector<16x16x1xi32>
    %c17_i32_57 = arith.constant 17 : i32
    %161 = vector.broadcast %c17_i32_57 : i32 to vector<16x16x1xi32>
    %162 = arith.cmpi slt, %156, %161 : vector<16x16x1xi32>
    %163 = arith.andi %160, %162 : vector<16x16x1xi1>
    %c1_i32_58 = arith.constant 1 : i32
    %164 = vector.broadcast %c1_i32_58 : i32 to vector<16x16x1xi32>
    %165 = arith.cmpi sge, %158, %164 : vector<16x16x1xi32>
    %166 = arith.andi %163, %165 : vector<16x16x1xi1>
    %c17_i32_59 = arith.constant 17 : i32
    %167 = vector.broadcast %c17_i32_59 : i32 to vector<16x16x1xi32>
    %168 = arith.cmpi slt, %158, %167 : vector<16x16x1xi32>
    %169 = arith.andi %166, %168 : vector<16x16x1xi1>
    %cst_60 = arith.constant 0xFF800000 : f32
    %170 = vector.broadcast %cst_60 : f32 to vector<16x16x1xf32>
    %171 = arith.select %169, %154, %170 : vector<16x16x1xi1>, vector<16x16x1xf32>
    %172 = arith.maximumf %140, %171 : vector<16x16x1xf32>
    %c0_61 = arith.constant 0 : index
    %c1_62 = arith.constant 1 : index
    %c2_63 = arith.constant 2 : index
    %c0_64 = arith.constant 0 : index
    %173 = vector.load %arg1[%c0_61, %c1_62, %c2_63, %c0_64] : memref<1x18x18x5xf32, #tpu.memory_space<vmem>>, vector<1x16x16x5xf32>
    %174 = vector.shape_cast %173 : vector<1x16x16x5xf32> to vector<16x16x5xf32>
    %175 = vector.shape_cast %174 : vector<16x16x5xf32> to vector<256x5xf32>
    %176 = vector.extract_strided_slice %175 {offsets = [0, 4], sizes = [256, 1], strides = [1, 1]} : vector<256x5xf32> to vector<256x1xf32>
    %177 = vector.broadcast %176 : vector<256x1xf32> to vector<256x5xf32>
    %178 = arith.mulf %175, %177 : vector<256x5xf32>
    %179 = vector.shape_cast %6 : vector<1x5xi1> to vector<1x5xi1>
    %180 = vector.broadcast %179 : vector<1x5xi1> to vector<256x5xi1>
    %181 = arith.select %180, %178, %175 : vector<256x5xi1>, vector<256x5xf32>
    %182 = vector.extract_strided_slice %0 {offsets = [5, 0, 0], sizes = [1, 9, 5], strides = [1, 1, 1]} : vector<9x9x5xf32> to vector<1x9x5xf32>
    %183 = vector.shape_cast %182 : vector<1x9x5xf32> to vector<9x5xf32>
    %cst_65 = arith.constant dense<0.000000e+00> : vector<9x256xf32>
    %184 = tpu.matmul %183, %181, %cst_65 {dimension_numbers = #tpu.dot_dimension_numbers<[1], [1], [0], [0], [0, 0, 1, 0], [], []>} : vector<9x5xf32>, vector<256x5xf32>, vector<9x256xf32> -> vector<9x256xf32>
    %185 = arith.addf %153, %184 : vector<9x256xf32>
    %186 = vector.extract_strided_slice %174 {offsets = [0, 0, 4], sizes = [16, 16, 1], strides = [1, 1, 1]} : vector<16x16x5xf32> to vector<16x16x1xf32>
    %c1_i32_66 = arith.constant 1 : i32
    %187 = vector.broadcast %c1_i32_66 : i32 to vector<16x16x1xi32>
    %188 = arith.addi %9, %187 : vector<16x16x1xi32>
    %c2_i32_67 = arith.constant 2 : i32
    %189 = vector.broadcast %c2_i32_67 : i32 to vector<16x16x1xi32>
    %190 = arith.addi %12, %189 : vector<16x16x1xi32>
    %c1_i32_68 = arith.constant 1 : i32
    %191 = vector.broadcast %c1_i32_68 : i32 to vector<16x16x1xi32>
    %192 = arith.cmpi sge, %188, %191 : vector<16x16x1xi32>
    %c17_i32_69 = arith.constant 17 : i32
    %193 = vector.broadcast %c17_i32_69 : i32 to vector<16x16x1xi32>
    %194 = arith.cmpi slt, %188, %193 : vector<16x16x1xi32>
    %195 = arith.andi %192, %194 : vector<16x16x1xi1>
    %c1_i32_70 = arith.constant 1 : i32
    %196 = vector.broadcast %c1_i32_70 : i32 to vector<16x16x1xi32>
    %197 = arith.cmpi sge, %190, %196 : vector<16x16x1xi32>
    %198 = arith.andi %195, %197 : vector<16x16x1xi1>
    %c17_i32_71 = arith.constant 17 : i32
    %199 = vector.broadcast %c17_i32_71 : i32 to vector<16x16x1xi32>
    %200 = arith.cmpi slt, %190, %199 : vector<16x16x1xi32>
    %201 = arith.andi %198, %200 : vector<16x16x1xi1>
    %cst_72 = arith.constant 0xFF800000 : f32
    %202 = vector.broadcast %cst_72 : f32 to vector<16x16x1xf32>
    %203 = arith.select %201, %186, %202 : vector<16x16x1xi1>, vector<16x16x1xf32>
    %204 = arith.maximumf %172, %203 : vector<16x16x1xf32>
    %c0_73 = arith.constant 0 : index
    %c2_74 = arith.constant 2 : index
    %c0_75 = arith.constant 0 : index
    %c0_76 = arith.constant 0 : index
    %205 = vector.load %arg1[%c0_73, %c2_74, %c0_75, %c0_76] : memref<1x18x18x5xf32, #tpu.memory_space<vmem>>, vector<1x16x16x5xf32>
    %206 = vector.shape_cast %205 : vector<1x16x16x5xf32> to vector<16x16x5xf32>
    %207 = vector.shape_cast %206 : vector<16x16x5xf32> to vector<256x5xf32>
    %208 = vector.extract_strided_slice %207 {offsets = [0, 4], sizes = [256, 1], strides = [1, 1]} : vector<256x5xf32> to vector<256x1xf32>
    %209 = vector.broadcast %208 : vector<256x1xf32> to vector<256x5xf32>
    %210 = arith.mulf %207, %209 : vector<256x5xf32>
    %211 = vector.shape_cast %6 : vector<1x5xi1> to vector<1x5xi1>
    %212 = vector.broadcast %211 : vector<1x5xi1> to vector<256x5xi1>
    %213 = arith.select %212, %210, %207 : vector<256x5xi1>, vector<256x5xf32>
    %214 = vector.extract_strided_slice %0 {offsets = [6, 0, 0], sizes = [1, 9, 5], strides = [1, 1, 1]} : vector<9x9x5xf32> to vector<1x9x5xf32>
    %215 = vector.shape_cast %214 : vector<1x9x5xf32> to vector<9x5xf32>
    %cst_77 = arith.constant dense<0.000000e+00> : vector<9x256xf32>
    %216 = tpu.matmul %215, %213, %cst_77 {dimension_numbers = #tpu.dot_dimension_numbers<[1], [1], [0], [0], [0, 0, 1, 0], [], []>} : vector<9x5xf32>, vector<256x5xf32>, vector<9x256xf32> -> vector<9x256xf32>
    %217 = arith.addf %185, %216 : vector<9x256xf32>
    %218 = vector.extract_strided_slice %206 {offsets = [0, 0, 4], sizes = [16, 16, 1], strides = [1, 1, 1]} : vector<16x16x5xf32> to vector<16x16x1xf32>
    %c2_i32_78 = arith.constant 2 : i32
    %219 = vector.broadcast %c2_i32_78 : i32 to vector<16x16x1xi32>
    %220 = arith.addi %9, %219 : vector<16x16x1xi32>
    %c0_i32_79 = arith.constant 0 : i32
    %221 = vector.broadcast %c0_i32_79 : i32 to vector<16x16x1xi32>
    %222 = arith.addi %12, %221 : vector<16x16x1xi32>
    %c1_i32_80 = arith.constant 1 : i32
    %223 = vector.broadcast %c1_i32_80 : i32 to vector<16x16x1xi32>
    %224 = arith.cmpi sge, %220, %223 : vector<16x16x1xi32>
    %c17_i32_81 = arith.constant 17 : i32
    %225 = vector.broadcast %c17_i32_81 : i32 to vector<16x16x1xi32>
    %226 = arith.cmpi slt, %220, %225 : vector<16x16x1xi32>
    %227 = arith.andi %224, %226 : vector<16x16x1xi1>
    %c1_i32_82 = arith.constant 1 : i32
    %228 = vector.broadcast %c1_i32_82 : i32 to vector<16x16x1xi32>
    %229 = arith.cmpi sge, %222, %228 : vector<16x16x1xi32>
    %230 = arith.andi %227, %229 : vector<16x16x1xi1>
    %c17_i32_83 = arith.constant 17 : i32
    %231 = vector.broadcast %c17_i32_83 : i32 to vector<16x16x1xi32>
    %232 = arith.cmpi slt, %222, %231 : vector<16x16x1xi32>
    %233 = arith.andi %230, %232 : vector<16x16x1xi1>
    %cst_84 = arith.constant 0xFF800000 : f32
    %234 = vector.broadcast %cst_84 : f32 to vector<16x16x1xf32>
    %235 = arith.select %233, %218, %234 : vector<16x16x1xi1>, vector<16x16x1xf32>
    %236 = arith.maximumf %204, %235 : vector<16x16x1xf32>
    %c0_85 = arith.constant 0 : index
    %c2_86 = arith.constant 2 : index
    %c1_87 = arith.constant 1 : index
    %c0_88 = arith.constant 0 : index
    %237 = vector.load %arg1[%c0_85, %c2_86, %c1_87, %c0_88] : memref<1x18x18x5xf32, #tpu.memory_space<vmem>>, vector<1x16x16x5xf32>
    %238 = vector.shape_cast %237 : vector<1x16x16x5xf32> to vector<16x16x5xf32>
    %239 = vector.shape_cast %238 : vector<16x16x5xf32> to vector<256x5xf32>
    %240 = vector.extract_strided_slice %239 {offsets = [0, 4], sizes = [256, 1], strides = [1, 1]} : vector<256x5xf32> to vector<256x1xf32>
    %241 = vector.broadcast %240 : vector<256x1xf32> to vector<256x5xf32>
    %242 = arith.mulf %239, %241 : vector<256x5xf32>
    %243 = vector.shape_cast %6 : vector<1x5xi1> to vector<1x5xi1>
    %244 = vector.broadcast %243 : vector<1x5xi1> to vector<256x5xi1>
    %245 = arith.select %244, %242, %239 : vector<256x5xi1>, vector<256x5xf32>
    %246 = vector.extract_strided_slice %0 {offsets = [7, 0, 0], sizes = [1, 9, 5], strides = [1, 1, 1]} : vector<9x9x5xf32> to vector<1x9x5xf32>
    %247 = vector.shape_cast %246 : vector<1x9x5xf32> to vector<9x5xf32>
    %cst_89 = arith.constant dense<0.000000e+00> : vector<9x256xf32>
    %248 = tpu.matmul %247, %245, %cst_89 {dimension_numbers = #tpu.dot_dimension_numbers<[1], [1], [0], [0], [0, 0, 1, 0], [], []>} : vector<9x5xf32>, vector<256x5xf32>, vector<9x256xf32> -> vector<9x256xf32>
    %249 = arith.addf %217, %248 : vector<9x256xf32>
    %250 = vector.extract_strided_slice %238 {offsets = [0, 0, 4], sizes = [16, 16, 1], strides = [1, 1, 1]} : vector<16x16x5xf32> to vector<16x16x1xf32>
    %c2_i32_90 = arith.constant 2 : i32
    %251 = vector.broadcast %c2_i32_90 : i32 to vector<16x16x1xi32>
    %252 = arith.addi %9, %251 : vector<16x16x1xi32>
    %c1_i32_91 = arith.constant 1 : i32
    %253 = vector.broadcast %c1_i32_91 : i32 to vector<16x16x1xi32>
    %254 = arith.addi %12, %253 : vector<16x16x1xi32>
    %c1_i32_92 = arith.constant 1 : i32
    %255 = vector.broadcast %c1_i32_92 : i32 to vector<16x16x1xi32>
    %256 = arith.cmpi sge, %252, %255 : vector<16x16x1xi32>
    %c17_i32_93 = arith.constant 17 : i32
    %257 = vector.broadcast %c17_i32_93 : i32 to vector<16x16x1xi32>
    %258 = arith.cmpi slt, %252, %257 : vector<16x16x1xi32>
    %259 = arith.andi %256, %258 : vector<16x16x1xi1>
    %c1_i32_94 = arith.constant 1 : i32
    %260 = vector.broadcast %c1_i32_94 : i32 to vector<16x16x1xi32>
    %261 = arith.cmpi sge, %254, %260 : vector<16x16x1xi32>
    %262 = arith.andi %259, %261 : vector<16x16x1xi1>
    %c17_i32_95 = arith.constant 17 : i32
    %263 = vector.broadcast %c17_i32_95 : i32 to vector<16x16x1xi32>
    %264 = arith.cmpi slt, %254, %263 : vector<16x16x1xi32>
    %265 = arith.andi %262, %264 : vector<16x16x1xi1>
    %cst_96 = arith.constant 0xFF800000 : f32
    %266 = vector.broadcast %cst_96 : f32 to vector<16x16x1xf32>
    %267 = arith.select %265, %250, %266 : vector<16x16x1xi1>, vector<16x16x1xf32>
    %268 = arith.maximumf %236, %267 : vector<16x16x1xf32>
    %c0_97 = arith.constant 0 : index
    %c2_98 = arith.constant 2 : index
    %c2_99 = arith.constant 2 : index
    %c0_100 = arith.constant 0 : index
    %269 = vector.load %arg1[%c0_97, %c2_98, %c2_99, %c0_100] : memref<1x18x18x5xf32, #tpu.memory_space<vmem>>, vector<1x16x16x5xf32>
    %270 = vector.shape_cast %269 : vector<1x16x16x5xf32> to vector<16x16x5xf32>
    %271 = vector.shape_cast %270 : vector<16x16x5xf32> to vector<256x5xf32>
    %272 = vector.extract_strided_slice %271 {offsets = [0, 4], sizes = [256, 1], strides = [1, 1]} : vector<256x5xf32> to vector<256x1xf32>
    %273 = vector.broadcast %272 : vector<256x1xf32> to vector<256x5xf32>
    %274 = arith.mulf %271, %273 : vector<256x5xf32>
    %275 = vector.shape_cast %6 : vector<1x5xi1> to vector<1x5xi1>
    %276 = vector.broadcast %275 : vector<1x5xi1> to vector<256x5xi1>
    %277 = arith.select %276, %274, %271 : vector<256x5xi1>, vector<256x5xf32>
    %278 = vector.extract_strided_slice %0 {offsets = [8, 0, 0], sizes = [1, 9, 5], strides = [1, 1, 1]} : vector<9x9x5xf32> to vector<1x9x5xf32>
    %279 = vector.shape_cast %278 : vector<1x9x5xf32> to vector<9x5xf32>
    %cst_101 = arith.constant dense<0.000000e+00> : vector<9x256xf32>
    %280 = tpu.matmul %279, %277, %cst_101 {dimension_numbers = #tpu.dot_dimension_numbers<[1], [1], [0], [0], [0, 0, 1, 0], [], []>} : vector<9x5xf32>, vector<256x5xf32>, vector<9x256xf32> -> vector<9x256xf32>
    %281 = arith.addf %249, %280 : vector<9x256xf32>
    %282 = vector.extract_strided_slice %270 {offsets = [0, 0, 4], sizes = [16, 16, 1], strides = [1, 1, 1]} : vector<16x16x5xf32> to vector<16x16x1xf32>
    %c2_i32_102 = arith.constant 2 : i32
    %283 = vector.broadcast %c2_i32_102 : i32 to vector<16x16x1xi32>
    %284 = arith.addi %9, %283 : vector<16x16x1xi32>
    %c2_i32_103 = arith.constant 2 : i32
    %285 = vector.broadcast %c2_i32_103 : i32 to vector<16x16x1xi32>
    %286 = arith.addi %12, %285 : vector<16x16x1xi32>
    %c1_i32_104 = arith.constant 1 : i32
    %287 = vector.broadcast %c1_i32_104 : i32 to vector<16x16x1xi32>
    %288 = arith.cmpi sge, %284, %287 : vector<16x16x1xi32>
    %c17_i32_105 = arith.constant 17 : i32
    %289 = vector.broadcast %c17_i32_105 : i32 to vector<16x16x1xi32>
    %290 = arith.cmpi slt, %284, %289 : vector<16x16x1xi32>
    %291 = arith.andi %288, %290 : vector<16x16x1xi1>
    %c1_i32_106 = arith.constant 1 : i32
    %292 = vector.broadcast %c1_i32_106 : i32 to vector<16x16x1xi32>
    %293 = arith.cmpi sge, %286, %292 : vector<16x16x1xi32>
    %294 = arith.andi %291, %293 : vector<16x16x1xi1>
    %c17_i32_107 = arith.constant 17 : i32
    %295 = vector.broadcast %c17_i32_107 : i32 to vector<16x16x1xi32>
    %296 = arith.cmpi slt, %286, %295 : vector<16x16x1xi32>
    %297 = arith.andi %294, %296 : vector<16x16x1xi1>
    %cst_108 = arith.constant 0xFF800000 : f32
    %298 = vector.broadcast %cst_108 : f32 to vector<16x16x1xf32>
    %299 = arith.select %297, %282, %298 : vector<16x16x1xi1>, vector<16x16x1xf32>
    %300 = arith.maximumf %268, %299 : vector<16x16x1xf32>
    %301 = vector.extract_strided_slice %281 {offsets = [8, 0], sizes = [1, 256], strides = [1, 1]} : vector<9x256xf32> to vector<1x256xf32>
    %cst_109 = arith.constant 4.000000e+00 : f32
    %302 = vector.broadcast %cst_109 : f32 to vector<1x256xf32>
    %303 = arith.mulf %301, %302 : vector<1x256xf32>
    %cst_110 = arith.constant 9.99999974E-6 : f32
    %304 = vector.broadcast %cst_110 : f32 to vector<1x256xf32>
    %305 = arith.maximumf %303, %304 : vector<1x256xf32>
    %cst_111 = arith.constant 1.000000e+00 : f32
    %306 = vector.broadcast %cst_111 : f32 to vector<1x256xf32>
    %307 = arith.divf %306, %305 : vector<1x256xf32>
    %308 = vector.extract_strided_slice %281 {offsets = [0, 0], sizes = [8, 256], strides = [1, 1]} : vector<9x256xf32> to vector<8x256xf32>
    %309 = vector.broadcast %307 : vector<1x256xf32> to vector<8x256xf32>
    %310 = arith.mulf %308, %309 : vector<8x256xf32>
    %311 = vector.broadcast %1 : vector<8x1xf32> to vector<8x256xf32>
    %312 = arith.addf %310, %311 : vector<8x256xf32>
    %c0_112 = arith.constant 0 : index
    %c0_113 = arith.constant 0 : index
    %c0_114 = arith.constant 0 : index
    %313 = vector.load %arg4[%c0_112, %c0_113, %c0_114] : memref<1x8x256xf32, #tpu.memory_space<vmem>>, vector<1x8x256xf32>
    %314 = vector.shape_cast %313 : vector<1x8x256xf32> to vector<8x256xf32>
    %315 = vector.shape_cast %312 : vector<8x256xf32> to vector<1x8x256xf32>
    tpu.vector_store %arg4[%c0_112, %c0_113, %c0_114], %315 {strides = array<i32>} : memref<1x8x256xf32, #tpu.memory_space<vmem>>, vector<1x8x256xf32>,
    %c0_115 = arith.constant 0 : index
    %c0_116 = arith.constant 0 : index
    %c0_117 = arith.constant 0 : index
    %c0_118 = arith.constant 0 : index
    %316 = vector.load %arg5[%c0_115, %c0_116, %c0_117, %c0_118] : memref<1x16x16x1xf32, #tpu.memory_space<vmem>>, vector<1x16x16x1xf32>
    %317 = vector.shape_cast %316 : vector<1x16x16x1xf32> to vector<16x16x1xf32>
    %318 = vector.shape_cast %300 : vector<16x16x1xf32> to vector<1x16x16x1xf32>
    tpu.vector_store %arg5[%c0_115, %c0_116, %c0_117, %c0_118], %318 {strides = array<i32>} : memref<1x16x16x1xf32, #tpu.memory_space<vmem>>, vector<1x16x16x1xf32>,
    return
  }
  func.func @transform_0(%arg0: i32) -> (i32, i32, i32, i32) {
    %c0_i32 = arith.constant 0 : i32
    %c0_i32_0 = arith.constant 0 : i32
    %c0_i32_1 = arith.constant 0 : i32
    %c0_i32_2 = arith.constant 0 : i32
    return %arg0, %c0_i32, %c0_i32_0, %c0_i32_1 : i32, i32, i32, i32
  }
  func.func @transform_1(%arg0: i32) -> (i32, i32, i32) {
    %c0_i32 = arith.constant 0 : i32
    %c0_i32_0 = arith.constant 0 : i32
    %c0_i32_1 = arith.constant 0 : i32
    %c0_i32_2 = arith.constant 0 : i32
    return %c0_i32, %c0_i32_0, %c0_i32_1 : i32, i32, i32
  }
  func.func @transform_2(%arg0: i32) -> (i32, i32) {
    %c0_i32 = arith.constant 0 : i32
    %c0_i32_0 = arith.constant 0 : i32
    %c0_i32_1 = arith.constant 0 : i32
    return %c0_i32, %c0_i32_0 : i32, i32
  }
  func.func @transform_3(%arg0: i32) -> (i32, i32, i32) {
    %c0_i32 = arith.constant 0 : i32
    %c0_i32_0 = arith.constant 0 : i32
    %c0_i32_1 = arith.constant 0 : i32
    return %arg0, %c0_i32, %c0_i32_0 : i32, i32, i32
  }
  func.func @transform_4(%arg0: i32) -> (i32, i32, i32, i32) {
    %c0_i32 = arith.constant 0 : i32
    %c0_i32_0 = arith.constant 0 : i32
    %c0_i32_1 = arith.constant 0 : i32
    %c0_i32_2 = arith.constant 0 : i32
    return %arg0, %c0_i32, %c0_i32_0, %c0_i32_1 : i32, i32, i32, i32
  }
}

</mosaic_0001>

<llo_original>
// kernel: sparse_conv_pallas.1
$region0: #{sparse_conv_pallas.1}
  #allocation0 [shape = 'u32[]', space=smem, size = 0x4, offset = 0x4, fixed_abs, tag = 'smem constant byte address 0x4 - core index']
  #allocation1 [shape = 'u32[144,128]{1,0:T(1,128)}', space=vmem, size = 0x12000, scoped, tag = 'internal scratch']
  %s0 = inlined_call_operand.vmem [shape: f32[2,18,18,5], index: 0, kind: input, shape index: {}]
  %s1 = inlined_call_operand.vmem [shape: f32[9,9,5], index: 1, kind: input, shape index: {}]
  %s2 = inlined_call_operand.vmem [shape: f32[8,1], index: 2, kind: input, shape index: {}]
  %s3 = inlined_call_operand.vmem [shape: f32[2,8,256], index: 3, kind: output, shape index: {0}]
  %s4 = inlined_call_operand.vmem [shape: f32[2,16,16,1], index: 4, kind: output, shape index: {1}]
  %5 = xla_tuple %s3, %s4
  %s6 = sld [smem:[#allocation0]]
  $region53: #{sparse_conv_pallas.1} parent=0
    _
  %s8 = ssub.s32 1, %s6
  %s9 = scalar_select 0, %s8, %s6
  loop: start=0, step=1, limit=4
  $region2: #{sparse_conv_pallas.1} parent=0 // loop_pre_header
    _
  $region3: #{sparse_conv_pallas.1} parent=0 // loop_header
    %s11 = sphi 0, %s15
    %p12 = scmp.ge.s32.totalorder %s11, 4
    %s21 = sphi 0, %s23
    %s24 = sphi 0, %s21
    %s25 = sphi 0, %s24
    %s41 = sphi 0, %s25
    %s45 = sphi 0, %s45
    %s47 = sphi 0, %s45
    %s48 = sphi 0, %s47
    %s62 = sphi 0, %s48
    %s66 = sphi 0, %s66
    %s68 = sphi 0, %s66
    %s69 = sphi 0, %s68
    %s83 = sphi 0, %s69
    %s89 = sphi 0, %s91
    %s92 = sphi 0, %s89
    %s93 = sphi 0, %s92
    %s109 = sphi 0, %s93
    %s115 = sphi 0, %s117
    %s118 = sphi 0, %s115
    %s119 = sphi 0, %s118
    %s135 = sphi 0, %s119
  $region4: #{sparse_conv_pallas.1} parent=0 // loop_header_branch
    %14 = sbr.rel (%p12) target = $region8
  $region5: #{sparse_conv_pallas.1} parent=0 // loop_body
    %s16 = ssub.s32 %s11, 1
    %s17 = ssub.s32 %s11, 2
    %s18 = sadd.s32 %s11, 1
    %s19 = ssub.s32 %s11, %s18
    %p20 = scmp.eq.s32.totalorder %s19, 0
    %s22 = sadd.s32 %s21, 1
    %s23 = scalar_select %p20, %s21, %s22
    %p26 = pneg %p20
    %p27 = scmp.eq.s32.totalorder %s11, 1
    %p28 = por %p26, %p27
    %p29 = scmp.ne.s32.totalorder %s21, %s24
    %p30 = scmp.eq.s32.totalorder %s11, 0
    %p31 = por %p29, %p30
    %p32 = scmp.ne.s32.totalorder %s21, %s24
    %p33 = scmp.eq.s32.totalorder %s16, 1
    %p34 = por %p32, %p33
    %p35 = scmp.ne.s32.totalorder %s24, %s25
    %p36 = scmp.eq.s32.totalorder %s16, 0
    %p37 = por %p35, %p36
    %p38 = scmp.ne.s32.totalorder %s24, %s25
    %p39 = scmp.eq.s32.totalorder %s17, 1
    %p40 = por %p38, %p39
    %p42 = scmp.ne.s32.totalorder %s25, %s41
    %p43 = scmp.eq.s32.totalorder %s17, 0
    %p44 = por %p42, %p43
    %s46 = sadd.s32 %s45, 1
    %p49 = scmp.eq.s32.totalorder %s11, 1
    %p50 = scmp.ne.s32.totalorder %s45, %s47
    %p51 = scmp.eq.s32.totalorder %s11, 0
    %p52 = por %p50, %p51
    %p53 = scmp.ne.s32.totalorder %s45, %s47
    %p54 = scmp.eq.s32.totalorder %s16, 1
    %p55 = por %p53, %p54
    %p56 = scmp.ne.s32.totalorder %s47, %s48
    %p57 = scmp.eq.s32.totalorder %s16, 0
    %p58 = por %p56, %p57
    %p59 = scmp.ne.s32.totalorder %s47, %s48
    %p60 = scmp.eq.s32.totalorder %s17, 1
    %p61 = por %p59, %p60
    %p63 = scmp.ne.s32.totalorder %s48, %s62
    %p64 = scmp.eq.s32.totalorder %s17, 0
    %p65 = por %p63, %p64
    %s67 = sadd.s32 %s66, 1
    %p70 = scmp.eq.s32.totalorder %s11, 1
    %p71 = scmp.ne.s32.totalorder %s66, %s68
    %p72 = scmp.eq.s32.totalorder %s11, 0
    %p73 = por %p71, %p72
    %p74 = scmp.ne.s32.totalorder %s66, %s68
    %p75 = scmp.eq.s32.totalorder %s16, 1
    %p76 = por %p74, %p75
    %p77 = scmp.ne.s32.totalorder %s68, %s69
    %p78 = scmp.eq.s32.totalorder %s16, 0
    %p79 = por %p77, %p78
    %p80 = scmp.ne.s32.totalorder %s68, %s69
    %p81 = scmp.eq.s32.totalorder %s17, 1
    %p82 = por %p80, %p81
    %p84 = scmp.ne.s32.totalorder %s69, %s83
    %p85 = scmp.eq.s32.totalorder %s17, 0
    %p86 = por %p84, %p85
    %s87 = ssub.s32 %s11, %s18
    %p88 = scmp.eq.s32.totalorder %s87, 0
    %s90 = sadd.s32 %s89, 1
    %s91 = scalar_select %p88, %s89, %s90
    %p94 = pneg %p88
    %p95 = scmp.eq.s32.totalorder %s11, 1
    %p96 = por %p94, %p95
    %p97 = scmp.ne.s32.totalorder %s89, %s92
    %p98 = scmp.eq.s32.totalorder %s11, 0
    %p99 = por %p97, %p98
    %p100 = scmp.ne.s32.totalorder %s89, %s92
    %p101 = scmp.eq.s32.totalorder %s16, 1
    %p102 = por %p100, %p101
    %p103 = scmp.ne.s32.totalorder %s92, %s93
    %p104 = scmp.eq.s32.totalorder %s16, 0
    %p105 = por %p103, %p104
    %p106 = scmp.ne.s32.totalorder %s92, %s93
    %p107 = scmp.eq.s32.totalorder %s17, 1
    %p108 = por %p106, %p107
    %p110 = scmp.ne.s32.totalorder %s93, %s109
    %p111 = scmp.eq.s32.totalorder %s17, 0
    %p112 = por %p110, %p111
    %s113 = ssub.s32 %s11, %s18
    %p114 = scmp.eq.s32.totalorder %s113, 0
    %s116 = sadd.s32 %s115, 1
    %s117 = scalar_select %p114, %s115, %s116
    %p120 = pneg %p114
    %p121 = scmp.eq.s32.totalorder %s11, 1
    %p122 = por %p120, %p121
    %p123 = scmp.ne.s32.totalorder %s115, %s118
    %p124 = scmp.eq.s32.totalorder %s11, 0
    %p125 = por %p123, %p124
    %p126 = scmp.ne.s32.totalorder %s115, %s118
    %p127 = scmp.eq.s32.totalorder %s16, 1
    %p128 = por %p126, %p127
    %p129 = scmp.ne.s32.totalorder %s118, %s119
    %p130 = scmp.eq.s32.totalorder %s16, 0
    %p131 = por %p129, %p130
    %p132 = scmp.ne.s32.totalorder %s118, %s119
    %p133 = scmp.eq.s32.totalorder %s17, 1
    %p134 = por %p132, %p133
    %p136 = scmp.ne.s32.totalorder %s119, %s135
    %p137 = scmp.eq.s32.totalorder %s17, 0
    %p138 = por %p136, %p137
    %p139 = scmp.le.s32.totalorder 1, %s11
    %p140 = scmp.lt.s32.totalorder %s11, 3
    %p141 = pnand %p139, %p140
    %p142 = pneg %p141
    // Predicated region
    $region9: #{sparse_conv_pallas.1} parent=5 // pred_check
      _
    $region10: #{sparse_conv_pallas.1} parent=5 // pred_check_branch
      %144 = sbr.rel (%p141) target = $region12
    $region11: #{sparse_conv_pallas.1} parent=5 // pred_region
      %s145 = ssub.s32 %s11, 1
      // Predicated region
      $region13: #{sparse_conv_pallas.1} parent=11 // pred_check
        %p146 = pneg %p58
      $region14: #{sparse_conv_pallas.1} parent=11 // pred_check_branch
        %148 = sbr.rel (%p146) target = $region16
      $region15: #{sparse_conv_pallas.1} parent=11 // pred_region
        _
      $region16: #{sparse_conv_pallas.1} parent=11 // pred_fallthru
        _
      // Predicated region
      $region17: #{sparse_conv_pallas.1} parent=11 // pred_check
        %p149 = pneg %p79
      $region18: #{sparse_conv_pallas.1} parent=11 // pred_check_branch
        %151 = sbr.rel (%p149) target = $region20
      $region19: #{sparse_conv_pallas.1} parent=11 // pred_region
        _
      $region20: #{sparse_conv_pallas.1} parent=11 // pred_fallthru
        _
    $region12: #{sparse_conv_pallas.1} parent=5 // pred_fallthru
      _
    %p152 = scmp.lt.s32.totalorder %s11, 2
    // Predicated region
    $region21: #{sparse_conv_pallas.1} parent=5 // pred_check
      %p153 = pneg %p152
    $region22: #{sparse_conv_pallas.1} parent=5 // pred_check_branch
      %155 = sbr.rel (%p153) target = $region24
    $region23: #{sparse_conv_pallas.1} parent=5 // pred_region
      // Predicated region
      $region25: #{sparse_conv_pallas.1} parent=23 // pred_check
        %p156 = pneg %p31
      $region26: #{sparse_conv_pallas.1} parent=23 // pred_check_branch
        %158 = sbr.rel (%p156) target = $region28
      $region27: #{sparse_conv_pallas.1} parent=23 // pred_region
        %p159 = scmp.lt.s32.totalorder %s11, 1
        %s160 = scalar_select %p159, %s11, 1
        %s161 = smul.addr %s160, 54
        %s162 = smul.addr %s161, 8
        %s163 = scalar_lea.vmem %s0, %s162
      $region28: #{sparse_conv_pallas.1} parent=23 // pred_fallthru
        _
    $region24: #{sparse_conv_pallas.1} parent=5 // pred_fallthru
      _
    %p164 = scmp.le.s32.totalorder 1, %s11
    %p165 = scmp.lt.s32.totalorder %s11, 3
    %p166 = pnand %p164, %p165
    %p167 = pneg %p166
    // Predicated region
    $region29: #{sparse_conv_pallas.1} parent=5 // pred_check
      _
    $region30: #{sparse_conv_pallas.1} parent=5 // pred_check_branch
      %169 = sbr.rel (%p166) target = $region32
    $region31: #{sparse_conv_pallas.1} parent=5 // pred_region
      %s170 = ssub.s32 %s11, 1
      %p171 = scmp.lt.s32.totalorder %s16, 1
      %s172 = scalar_select %p171, %s16, 1
      %s173 = smul.addr %s172, 54
      %s174 = smul.addr %s173, 8
      %s175 = scalar_lea.vmem %s0, %s174
      %p176 = pneg %p37
      %p177 = pneg %p34
      %p178 = pneg %p58
      %p179 = pneg %p55
      %p180 = pneg %p79
      %p181 = pneg %p76
      %p182 = pneg %p105
      %p183 = pneg %p102
      %p184 = scmp.lt.s32.totalorder %s16, 1
      %s185 = scalar_select %p184, %s16, 1
      %s186 = smul.addr %s185, 2
      %s187 = smul.addr %s186, 8
      %s188 = scalar_lea.vmem %s3, %s187
      %p189 = pneg %p131
      %p190 = pneg %p128
      %p191 = scmp.lt.s32.totalorder %s16, 1
      %s192 = scalar_select %p191, %s16, 1
      %s193 = smul.addr %s192, 32
      %s194 = smul.addr %s193, 8
      %s195 = scalar_lea.vmem %s4, %s194
      %p196 = scmp.lt.s32.totalorder %s16, 1
      %s197 = scalar_select %p196, %s16, 1
      %s198 = smul.addr %s197, 54
      %s199 = smul.addr %s198, 8
      %s200 = scalar_lea.vmem %s0, %s199
      %p201 = scmp.lt.s32.totalorder %s16, 1
      %s202 = scalar_select %p201, %s16, 1
      %s203 = smul.addr %s202, 2
      %s204 = smul.addr %s203, 8
      %s205 = scalar_lea.vmem %s3, %s204
      %p206 = scmp.lt.s32.totalorder %s16, 1
      %s207 = scalar_select %p206, %s16, 1
      %s208 = smul.addr %s207, 32
      %s209 = smul.addr %s208, 8
      %s210 = scalar_lea.vmem %s4, %s209
      %v211 = vld [vmem:[%s1] sm:$0xff]
      %v212 = vld [vmem:[%s1 + $0x8] sm:$0x1]
      %v213 = vld [vmem:[%s1 + $0x10] sm:$0xff]
      %v214 = vld [vmem:[%s1 + $0x18] sm:$0x1]
      %v215 = vld [vmem:[%s1 + $0x20] sm:$0xff]
      %v216 = vld [vmem:[%s1 + $0x28] sm:$0x1]
      %v217 = vld [vmem:[%s1 + $0x30] sm:$0xff]
      %v218 = vld [vmem:[%s1 + $0x38] sm:$0x1]
      %v219 = vld [vmem:[%s1 + $0x40] sm:$0xff]
      %v220 = vld [vmem:[%s1 + $0x48] sm:$0x1]
      %v221 = vld [vmem:[%s1 + $0x50] sm:$0xff]
      %v222 = vld [vmem:[%s1 + $0x58] sm:$0x1]
      %v223 = vld [vmem:[%s1 + $0x60] sm:$0xff]
      %v224 = vld [vmem:[%s1 + $0x68] sm:$0x1]
      %v225 = vld [vmem:[%s1 + $0x70] sm:$0xff]
      %v226 = vld [vmem:[%s1 + $0x78] sm:$0x1]
      %v227 = vld [vmem:[%s1 + $0x80] sm:$0xff]
      %v228 = vld [vmem:[%s1 + $0x88] sm:$0x1]
      %v229 = vld [vmem:[%s2] sm:$0xff]
      %v230 = vlaneseq
      %v231 = vand.u32 %v230, 127
      %vm232 = vcmp.lt.s32.totalorder %v231, 4
      %v233 = vlaneseq
      %v234 = vshrl.u32 %v233, 7
      %v235 = vadd.s32 %v234, 8
      %v236 = vld [vmem:[%s200] sm:$0xff]
      %v237 = vld [vmem:[%s200 + $0x8] sm:$0xff]
      %v238 = vld [vmem:[%s200 + $0x18] sm:$0xff]
      %v239 = vld [vmem:[%s200 + $0x20] sm:$0xff]
      %v240 = vld [vmem:[%s200 + $0x30] sm:$0xff]
      %v241 = vld [vmem:[%s200 + $0x38] sm:$0xff]
      %v242 = vld [vmem:[%s200 + $0x48] sm:$0xff]
      %v243 = vld [vmem:[%s200 + $0x50] sm:$0xff]
      %v244 = vld [vmem:[%s200 + $0x60] sm:$0xff]
      %v245 = vld [vmem:[%s200 + $0x68] sm:$0xff]
      %v246 = vld [vmem:[%s200 + $0x78] sm:$0xff]
      %v247 = vld [vmem:[%s200 + $0x80] sm:$0xff]
      %v248 = vld [vmem:[%s200 + $0x90] sm:$0xff]
      %v249 = vld [vmem:[%s200 + $0x98] sm:$0xff]
      %v250 = vld [vmem:[%s200 + $0xa8] sm:$0xff]
      %v251 = vld [vmem:[%s200 + $0xb0] sm:$0xff]
      %v252 = vld [vmem:[%s200 + $0xc0] sm:$0xff]
      %v253 = vld [vmem:[%s200 + $0xc8] sm:$0xff]
      %v254 = vld [vmem:[%s200 + $0xd8] sm:$0xff]
      %v255 = vld [vmem:[%s200 + $0xe0] sm:$0xff]
      %v256 = vld [vmem:[%s200 + $0xf0] sm:$0xff]
      %v257 = vld [vmem:[%s200 + $0xf8] sm:$0xff]
      %v258 = vld [vmem:[%s200 + $0x108] sm:$0xff]
      %v259 = vld [vmem:[%s200 + $0x110] sm:$0xff]
      %v260 = vld [vmem:[%s200 + $0x120] sm:$0xff]
      %v261 = vld [vmem:[%s200 + $0x128] sm:$0xff]
      %v262 = vld [vmem:[%s200 + $0x138] sm:$0xff]
      %v263 = vld [vmem:[%s200 + $0x140] sm:$0xff]
      %v264 = vld [vmem:[%s200 + $0x150] sm:$0xff]
      %v265 = vld [vmem:[%s200 + $0x158] sm:$0xff]
      %v266 = vld [vmem:[%s200 + $0x168] sm:$0xff]
      %v267 = vld [vmem:[%s200 + $0x170] sm:$0xff]
      %269 = vset.pattern.permute.xlu0 4
      %270 = vperm.xlu0 %269, %v236
      %v271 = vpop.permute.xlu0 %270
      %274 = vset.pattern.permute.xlu0 4
      %275 = vperm.xlu0 %274, %v237
      %v276 = vpop.permute.xlu0 %275
      %279 = vset.pattern.permute.xlu0 4
      %280 = vperm.xlu0 %279, %v238
      %v281 = vpop.permute.xlu0 %280
      %284 = vset.pattern.permute.xlu0 4
      %285 = vperm.xlu0 %284, %v239
      %v286 = vpop.permute.xlu0 %285
      %289 = vset.pattern.permute.xlu0 4
      %290 = vperm.xlu0 %289, %v240
      %v291 = vpop.permute.xlu0 %290
      %294 = vset.pattern.permute.xlu0 4
      %295 = vperm.xlu0 %294, %v241
      %v296 = vpop.permute.xlu0 %295
      %299 = vset.pattern.permute.xlu0 4
      %300 = vperm.xlu0 %299, %v242
      %v301 = vpop.permute.xlu0 %300
      %304 = vset.pattern.permute.xlu0 4
      %305 = vperm.xlu0 %304, %v243
      %v306 = vpop.permute.xlu0 %305
      %309 = vset.pattern.permute.xlu0 4
      %310 = vperm.xlu0 %309, %v244
      %v311 = vpop.permute.xlu0 %310
      %314 = vset.pattern.permute.xlu0 4
      %315 = vperm.xlu0 %314, %v245
      %v316 = vpop.permute.xlu0 %315
      %319 = vset.pattern.permute.xlu0 4
      %320 = vperm.xlu0 %319, %v246
      %v321 = vpop.permute.xlu0 %320
      %324 = vset.pattern.permute.xlu0 4
      %325 = vperm.xlu0 %324, %v247
      %v326 = vpop.permute.xlu0 %325
      %329 = vset.pattern.permute.xlu0 4
      %330 = vperm.xlu0 %329, %v248
      %v331 = vpop.permute.xlu0 %330
      %334 = vset.pattern.permute.xlu0 4
      %335 = vperm.xlu0 %334, %v249
      %v336 = vpop.permute.xlu0 %335
      %339 = vset.pattern.permute.xlu0 4
      %340 = vperm.xlu0 %339, %v250
      %v341 = vpop.permute.xlu0 %340
      %344 = vset.pattern.permute.xlu0 4
      %345 = vperm.xlu0 %344, %v251
      %v346 = vpop.permute.xlu0 %345
      %349 = vset.pattern.permute.xlu0 4
      %350 = vperm.xlu0 %349, %v252
      %v351 = vpop.permute.xlu0 %350
      %354 = vset.pattern.permute.xlu0 4
      %355 = vperm.xlu0 %354, %v253
      %v356 = vpop.permute.xlu0 %355
      %359 = vset.pattern.permute.xlu0 4
      %360 = vperm.xlu0 %359, %v254
      %v361 = vpop.permute.xlu0 %360
      %364 = vset.pattern.permute.xlu0 4
      %365 = vperm.xlu0 %364, %v255
      %v366 = vpop.permute.xlu0 %365
      %369 = vset.pattern.permute.xlu0 4
      %370 = vperm.xlu0 %369, %v256
      %v371 = vpop.permute.xlu0 %370
      %374 = vset.pattern.permute.xlu0 4
      %375 = vperm.xlu0 %374, %v257
      %v376 = vpop.permute.xlu0 %375
      %379 = vset.pattern.permute.xlu0 4
      %380 = vperm.xlu0 %379, %v258
      %v381 = vpop.permute.xlu0 %380
      %384 = vset.pattern.permute.xlu0 4
      %385 = vperm.xlu0 %384, %v259
      %v386 = vpop.permute.xlu0 %385
      %389 = vset.pattern.permute.xlu0 4
      %390 = vperm.xlu0 %389, %v260
      %v391 = vpop.permute.xlu0 %390
      %394 = vset.pattern.permute.xlu0 4
      %395 = vperm.xlu0 %394, %v261
      %v396 = vpop.permute.xlu0 %395
      %399 = vset.pattern.permute.xlu0 4
      %400 = vperm.xlu0 %399, %v262
      %v401 = vpop.permute.xlu0 %400
      %404 = vset.pattern.permute.xlu0 4
      %405 = vperm.xlu0 %404, %v263
      %v406 = vpop.permute.xlu0 %405
      %409 = vset.pattern.permute.xlu0 4
      %410 = vperm.xlu0 %409, %v264
      %v411 = vpop.permute.xlu0 %410
      %414 = vset.pattern.permute.xlu0 4
      %415 = vperm.xlu0 %414, %v265
      %v416 = vpop.permute.xlu0 %415
      %419 = vset.pattern.permute.xlu0 4
      %420 = vperm.xlu0 %419, %v266
      %v421 = vpop.permute.xlu0 %420
      %424 = vset.pattern.permute.xlu0 4
      %425 = vperm.xlu0 %424, %v267
      %v426 = vpop.permute.xlu0 %425
      %v428 = vmul.f32 %v236, %v271
      %v429 = vmul.f32 %v237, %v276
      %v430 = vmul.f32 %v238, %v281
      %v431 = vmul.f32 %v239, %v286
      %v432 = vmul.f32 %v240, %v291
      %v433 = vmul.f32 %v241, %v296
      %v434 = vmul.f32 %v242, %v301
      %v435 = vmul.f32 %v243, %v306
      %v436 = vmul.f32 %v244, %v311
      %v437 = vmul.f32 %v245, %v316
      %v438 = vmul.f32 %v246, %v321
      %v439 = vmul.f32 %v247, %v326
      %v440 = vmul.f32 %v248, %v331
      %v441 = vmul.f32 %v249, %v336
      %v442 = vmul.f32 %v250, %v341
      %v443 = vmul.f32 %v251, %v346
      %v444 = vmul.f32 %v252, %v351
      %v445 = vmul.f32 %v253, %v356
      %v446 = vmul.f32 %v254, %v361
      %v447 = vmul.f32 %v255, %v366
      %v448 = vmul.f32 %v256, %v371
      %v449 = vmul.f32 %v257, %v376
      %v450 = vmul.f32 %v258, %v381
      %v451 = vmul.f32 %v259, %v386
      %v452 = vmul.f32 %v260, %v391
      %v453 = vmul.f32 %v261, %v396
      %v454 = vmul.f32 %v262, %v401
      %v455 = vmul.f32 %v263, %v406
      %v456 = vmul.f32 %v264, %v411
      %v457 = vmul.f32 %v265, %v416
      %v458 = vmul.f32 %v266, %v421
      %v459 = vmul.f32 %v267, %v426
      %v460 = vsel %vm232, 1, 0
      %vm461 = vcmp.eq.s32.totalorder %v460, 1
      %v462 = vsel %vm461, %v428, %v236
      %v463 = vsel %vm461, %v429, %v237
      %v464 = vsel %vm461, %v430, %v238
      %v465 = vsel %vm461, %v431, %v239
      %v466 = vsel %vm461, %v432, %v240
      %v467 = vsel %vm461, %v433, %v241
      %v468 = vsel %vm461, %v434, %v242
      %v469 = vsel %vm461, %v435, %v243
      %v470 = vsel %vm461, %v436, %v244
      %v471 = vsel %vm461, %v437, %v245
      %v472 = vsel %vm461, %v438, %v246
      %v473 = vsel %vm461, %v439, %v247
      %v474 = vsel %vm461, %v440, %v248
      %v475 = vsel %vm461, %v441, %v249
      %v476 = vsel %vm461, %v442, %v250
      %v477 = vsel %vm461, %v443, %v251
      %v478 = vsel %vm461, %v444, %v252
      %v479 = vsel %vm461, %v445, %v253
      %v480 = vsel %vm461, %v446, %v254
      %v481 = vsel %vm461, %v447, %v255
      %v482 = vsel %vm461, %v448, %v256
      %v483 = vsel %vm461, %v449, %v257
      %v484 = vsel %vm461, %v450, %v258
      %v485 = vsel %vm461, %v451, %v259
      %v486 = vsel %vm461, %v452, %v260
      %v487 = vsel %vm461, %v453, %v261
      %v488 = vsel %vm461, %v454, %v262
      %v489 = vsel %vm461, %v455, %v263
      %v490 = vsel %vm461, %v456, %v264
      %v491 = vsel %vm461, %v457, %v265
      %v492 = vsel %vm461, %v458, %v266
      %v493 = vsel %vm461, %v459, %v267
      %vm494 = vcmp.ge.s32.totalorder %v234, 1
      %vm495 = vcmp.ge.s32.totalorder %v235, 1
      %vm496 = vmand 0, %vm494
      %vm497 = vmand 0, %vm495
      %vm498 = vmand 1, %vm494
      %vm499 = vmand 1, %vm495
      %vm500 = vcmp.lt.s32.totalorder %v234, 17
      %vm501 = vcmp.lt.s32.totalorder %v235, 17
      %vm502 = vmand %vm496, %vm500
      %vm503 = vmand %vm497, %vm501
      %vm504 = vmand %vm498, %vm500
      %vm505 = vmand %vm499, %vm501
      %v506 = vsel %vm502, %v236, -inf
      %v507 = vsel %vm503, %v237, -inf
      %v508 = vsel %vm504, %v238, -inf
      %v509 = vsel %vm505, %v239, -inf
      %v510 = vsel %vm504, %v240, -inf
      %v511 = vsel %vm505, %v241, -inf
      %v512 = vsel %vm504, %v242, -inf
      %v513 = vsel %vm505, %v243, -inf
      %v514 = vsel %vm504, %v244, -inf
      %v515 = vsel %vm505, %v245, -inf
      %v516 = vsel %vm504, %v246, -inf
      %v517 = vsel %vm505, %v247, -inf
      %v518 = vsel %vm504, %v248, -inf
      %v519 = vsel %vm505, %v249, -inf
      %v520 = vsel %vm504, %v250, -inf
      %v521 = vsel %vm505, %v251, -inf
      %v522 = vsel %vm504, %v252, -inf
      %v523 = vsel %vm505, %v253, -inf
      %v524 = vsel %vm504, %v254, -inf
      %v525 = vsel %vm505, %v255, -inf
      %v526 = vsel %vm504, %v256, -inf
      %v527 = vsel %vm505, %v257, -inf
      %v528 = vsel %vm504, %v258, -inf
      %v529 = vsel %vm505, %v259, -inf
      %v530 = vsel %vm504, %v260, -inf
      %v531 = vsel %vm505, %v261, -inf
      %v532 = vsel %vm504, %v262, -inf
      %v533 = vsel %vm505, %v263, -inf
      %v534 = vsel %vm504, %v264, -inf
      %v535 = vsel %vm505, %v265, -inf
      %v536 = vsel %vm504, %v266, -inf
      %v537 = vsel %vm505, %v267, -inf
      %v538 = vld [vmem:[%s200 + $0x1] sm:$0xff]
      %v539 = vld [vmem:[%s200 + $0x9] sm:$0xff]
      %v540 = vld [vmem:[%s200 + $0x19] sm:$0xff]
      %v541 = vld [vmem:[%s200 + $0x21] sm:$0xff]
      %v542 = vld [vmem:[%s200 + $0x31] sm:$0xff]
      %v543 = vld [vmem:[%s200 + $0x39] sm:$0xff]
      %v544 = vld [vmem:[%s200 + $0x49] sm:$0xff]
      %v545 = vld [vmem:[%s200 + $0x51] sm:$0xff]
      %v546 = vld [vmem:[%s200 + $0x61] sm:$0xff]
      %v547 = vld [vmem:[%s200 + $0x69] sm:$0xff]
      %v548 = vld [vmem:[%s200 + $0x79] sm:$0xff]
      %v549 = vld [vmem:[%s200 + $0x81] sm:$0xff]
      %v550 = vld [vmem:[%s200 + $0x91] sm:$0xff]
      %v551 = vld [vmem:[%s200 + $0x99] sm:$0xff]
      %v552 = vld [vmem:[%s200 + $0xa9] sm:$0xff]
      %v553 = vld [vmem:[%s200 + $0xb1] sm:$0xff]
      %v554 = vld [vmem:[%s200 + $0xc1] sm:$0xff]
      %v555 = vld [vmem:[%s200 + $0xc9] sm:$0xff]
      %v556 = vld [vmem:[%s200 + $0xd9] sm:$0xff]
      %v557 = vld [vmem:[%s200 + $0xe1] sm:$0xff]
      %v558 = vld [vmem:[%s200 + $0xf1] sm:$0xff]
      %v559 = vld [vmem:[%s200 + $0xf9] sm:$0xff]
      %v560 = vld [vmem:[%s200 + $0x109] sm:$0xff]
      %v561 = vld [vmem:[%s200 + $0x111] sm:$0xff]
      %v562 = vld [vmem:[%s200 + $0x121] sm:$0xff]
      %v563 = vld [vmem:[%s200 + $0x129] sm:$0xff]
      %v564 = vld [vmem:[%s200 + $0x139] sm:$0xff]
      %v565 = vld [vmem:[%s200 + $0x141] sm:$0xff]
      %v566 = vld [vmem:[%s200 + $0x151] sm:$0xff]
      %v567 = vld [vmem:[%s200 + $0x159] sm:$0xff]
      %v568 = vld [vmem:[%s200 + $0x169] sm:$0xff]
      %v569 = vld [vmem:[%s200 + $0x171] sm:$0xff]
      %571 = vset.pattern.permute.xlu0 4
      %572 = vperm.xlu0 %571, %v538
      %v573 = vpop.permute.xlu0 %572
      %576 = vset.pattern.permute.xlu0 4
      %577 = vperm.xlu0 %576, %v539
      %v578 = vpop.permute.xlu0 %577
      %581 = vset.pattern.permute.xlu0 4
      %582 = vperm.xlu0 %581, %v540
      %v583 = vpop.permute.xlu0 %582
      %586 = vset.pattern.permute.xlu0 4
      %587 = vperm.xlu0 %586, %v541
      %v588 = vpop.permute.xlu0 %587
      %591 = vset.pattern.permute.xlu0 4
      %592 = vperm.xlu0 %591, %v542
      %v593 = vpop.permute.xlu0 %592
      %596 = vset.pattern.permute.xlu0 4
      %597 = vperm.xlu0 %596, %v543
      %v598 = vpop.permute.xlu0 %597
      %601 = vset.pattern.permute.xlu0 4
      %602 = vperm.xlu0 %601, %v544
      %v603 = vpop.permute.xlu0 %602
      %606 = vset.pattern.permute.xlu0 4
      %607 = vperm.xlu0 %606, %v545
      %v608 = vpop.permute.xlu0 %607
      %611 = vset.pattern.permute.xlu0 4
      %612 = vperm.xlu0 %611, %v546
      %v613 = vpop.permute.xlu0 %612
      %616 = vset.pattern.permute.xlu0 4
      %617 = vperm.xlu0 %616, %v547
      %v618 = vpop.permute.xlu0 %617
      %621 = vset.pattern.permute.xlu0 4
      %622 = vperm.xlu0 %621, %v548
      %v623 = vpop.permute.xlu0 %622
      %626 = vset.pattern.permute.xlu0 4
      %627 = vperm.xlu0 %626, %v549
      %v628 = vpop.permute.xlu0 %627
      %631 = vset.pattern.permute.xlu0 4
      %632 = vperm.xlu0 %631, %v550
      %v633 = vpop.permute.xlu0 %632
      %636 = vset.pattern.permute.xlu0 4
      %637 = vperm.xlu0 %636, %v551
      %v638 = vpop.permute.xlu0 %637
      %641 = vset.pattern.permute.xlu0 4
      %642 = vperm.xlu0 %641, %v552
      %v643 = vpop.permute.xlu0 %642
      %646 = vset.pattern.permute.xlu0 4
      %647 = vperm.xlu0 %646, %v553
      %v648 = vpop.permute.xlu0 %647
      %651 = vset.pattern.permute.xlu0 4
      %652 = vperm.xlu0 %651, %v554
      %v653 = vpop.permute.xlu0 %652
      %656 = vset.pattern.permute.xlu0 4
      %657 = vperm.xlu0 %656, %v555
      %v658 = vpop.permute.xlu0 %657
      %661 = vset.pattern.permute.xlu0 4
      %662 = vperm.xlu0 %661, %v556
      %v663 = vpop.permute.xlu0 %662
      %666 = vset.pattern.permute.xlu0 4
      %667 = vperm.xlu0 %666, %v557
      %v668 = vpop.permute.xlu0 %667
      %671 = vset.pattern.permute.xlu0 4
      %672 = vperm.xlu0 %671, %v558
      %v673 = vpop.permute.xlu0 %672
      %676 = vset.pattern.permute.xlu0 4
      %677 = vperm.xlu0 %676, %v559
      %v678 = vpop.permute.xlu0 %677
      %681 = vset.pattern.permute.xlu0 4
      %682 = vperm.xlu0 %681, %v560
      %v683 = vpop.permute.xlu0 %682
      %686 = vset.pattern.permute.xlu0 4
      %687 = vperm.xlu0 %686, %v561
      %v688 = vpop.permute.xlu0 %687
      %691 = vset.pattern.permute.xlu0 4
      %692 = vperm.xlu0 %691, %v562
      %v693 = vpop.permute.xlu0 %692
      %696 = vset.pattern.permute.xlu0 4
      %697 = vperm.xlu0 %696, %v563
      %v698 = vpop.permute.xlu0 %697
      %701 = vset.pattern.permute.xlu0 4
      %702 = vperm.xlu0 %701, %v564
      %v703 = vpop.permute.xlu0 %702
      %706 = vset.pattern.permute.xlu0 4
      %707 = vperm.xlu0 %706, %v565
      %v708 = vpop.permute.xlu0 %707
      %711 = vset.pattern.permute.xlu0 4
      %712 = vperm.xlu0 %711, %v566
      %v713 = vpop.permute.xlu0 %712
      %716 = vset.pattern.permute.xlu0 4
      %717 = vperm.xlu0 %716, %v567
      %v718 = vpop.permute.xlu0 %717
      %721 = vset.pattern.permute.xlu0 4
      %722 = vperm.xlu0 %721, %v568
      %v723 = vpop.permute.xlu0 %722
      %726 = vset.pattern.permute.xlu0 4
      %727 = vperm.xlu0 %726, %v569
      %v728 = vpop.permute.xlu0 %727
      %v730 = vmul.f32 %v538, %v573
      %v731 = vmul.f32 %v539, %v578
      %v732 = vmul.f32 %v540, %v583
      %v733 = vmul.f32 %v541, %v588
      %v734 = vmul.f32 %v542, %v593
      %v735 = vmul.f32 %v543, %v598
      %v736 = vmul.f32 %v544, %v603
      %v737 = vmul.f32 %v545, %v608
      %v738 = vmul.f32 %v546, %v613
      %v739 = vmul.f32 %v547, %v618
      %v740 = vmul.f32 %v548, %v623
      %v741 = vmul.f32 %v549, %v628
      %v742 = vmul.f32 %v550, %v633
      %v743 = vmul.f32 %v551, %v638
      %v744 = vmul.f32 %v552, %v643
      %v745 = vmul.f32 %v553, %v648
      %v746 = vmul.f32 %v554, %v653
      %v747 = vmul.f32 %v555, %v658
      %v748 = vmul.f32 %v556, %v663
      %v749 = vmul.f32 %v557, %v668
      %v750 = vmul.f32 %v558, %v673
      %v751 = vmul.f32 %v559, %v678
      %v752 = vmul.f32 %v560, %v683
      %v753 = vmul.f32 %v561, %v688
      %v754 = vmul.f32 %v562, %v693
      %v755 = vmul.f32 %v563, %v698
      %v756 = vmul.f32 %v564, %v703
      %v757 = vmul.f32 %v565, %v708
      %v758 = vmul.f32 %v566, %v713
      %v759 = vmul.f32 %v567, %v718
      %v760 = vmul.f32 %v568, %v723
      %v761 = vmul.f32 %v569, %v728
      %v762 = vsel %vm461, %v730, %v538
      %v763 = vsel %vm461, %v731, %v539
      %v764 = vsel %vm461, %v732, %v540
      %v765 = vsel %vm461, %v733, %v541
      %v766 = vsel %vm461, %v734, %v542
      %v767 = vsel %vm461, %v735, %v543
      %v768 = vsel %vm461, %v736, %v544
      %v769 = vsel %vm461, %v737, %v545
      %v770 = vsel %vm461, %v738, %v546
      %v771 = vsel %vm461, %v739, %v547
      %v772 = vsel %vm461, %v740, %v548
      %v773 = vsel %vm461, %v741, %v549
      %v774 = vsel %vm461, %v742, %v550
      %v775 = vsel %vm461, %v743, %v551
      %v776 = vsel %vm461, %v744, %v552
      %v777 = vsel %vm461, %v745, %v553
      %v778 = vsel %vm461, %v746, %v554
      %v779 = vsel %vm461, %v747, %v555
      %v780 = vsel %vm461, %v748, %v556
      %v781 = vsel %vm461, %v749, %v557
      %v782 = vsel %vm461, %v750, %v558
      %v783 = vsel %vm461, %v751, %v559
      %v784 = vsel %vm461, %v752, %v560
      %v785 = vsel %vm461, %v753, %v561
      %v786 = vsel %vm461, %v754, %v562
      %v787 = vsel %vm461, %v755, %v563
      %v788 = vsel %vm461, %v756, %v564
      %v789 = vsel %vm461, %v757, %v565
      %v790 = vsel %vm461, %v758, %v566
      %v791 = vsel %vm461, %v759, %v567
      %v792 = vsel %vm461, %v760, %v568
      %v793 = vsel %vm461, %v761, %v569
      %vm794 = vcmask 39936
      %v796 = vsel %vm794, %v213, 0
      %v799 = vsel %vm794, %v214, 0
      %v802 = vsel %vm794, %v762, 0
      %v805 = vsel %vm794, %v763, 0
      %v808 = vsel %vm794, %v764, 0
      %v811 = vsel %vm794, %v765, 0
      %v814 = vsel %vm794, %v766, 0
      %v817 = vsel %vm794, %v767, 0
      %v820 = vsel %vm794, %v768, 0
      %v823 = vsel %vm794, %v769, 0
      %v826 = vsel %vm794, %v770, 0
      %v829 = vsel %vm794, %v771, 0
      %v832 = vsel %vm794, %v772, 0
      %v835 = vsel %vm794, %v773, 0
      %v838 = vsel %vm794, %v774, 0
      %v841 = vsel %vm794, %v775, 0
      %v844 = vsel %vm794, %v776, 0
      %v847 = vsel %vm794, %v777, 0
      %v850 = vsel %vm794, %v778, 0
      %v853 = vsel %vm794, %v779, 0
      %v856 = vsel %vm794, %v780, 0
      %v859 = vsel %vm794, %v781, 0
      %v862 = vsel %vm794, %v782, 0
      %v865 = vsel %vm794, %v783, 0
      %v868 = vsel %vm794, %v784, 0
      %v871 = vsel %vm794, %v785, 0
      %v874 = vsel %vm794, %v786, 0
      %v877 = vsel %vm794, %v787, 0
      %v880 = vsel %vm794, %v788, 0
      %v883 = vsel %vm794, %v789, 0
      %v886 = vsel %vm794, %v790, 0
      %v889 = vsel %vm794, %v791, 0
      %v892 = vsel %vm794, %v792, 0
      %v895 = vsel %vm794, %v793, 0
      %897 = vmatprep.subr.mxu0 0.0
      %898 = vmatpush1.xpose.msra.mxu0 %v802
      %899 = vmatprep.subr.mxu0 0.0
      %900 = vmatpush1.xpose.msra.mxu0 %v805
      %901 = vmatprep.subr.mxu0 0.0
      %902 = vmatpush1.xpose.msra.mxu0 %v808
      %903 = vmatprep.subr.mxu0 0.0
      %904 = vmatpush1.xpose.msra.mxu0 %v811
      %905 = vmatprep.subr.mxu0 0.0
      %906 = vmatpush1.xpose.msra.mxu0 %v814
      %907 = vmatprep.subr.mxu0 0.0
      %908 = vmatpush1.xpose.msra.mxu0 %v817
      %909 = vmatprep.subr.mxu0 0.0
      %910 = vmatpush1.xpose.msra.mxu0 %v820
      %911 = vmatprep.subr.mxu0 0.0
      %912 = vmatpush1.xpose.msra.mxu0 %v823
      %913 = vmatprep.subr.mxu0 0.0
      %914 = vmatpush1.xpose.msra.mxu0 %v826
      %915 = vmatprep.subr.mxu0 0.0
      %916 = vmatpush1.xpose.msra.mxu0 %v829
      %917 = vmatprep.subr.mxu0 0.0
      %918 = vmatpush1.xpose.msra.mxu0 %v832
      %919 = vmatprep.subr.mxu0 0.0
      %920 = vmatpush1.xpose.msra.mxu0 %v835
      %921 = vmatprep.subr.mxu0 0.0
      %922 = vmatpush1.xpose.msra.mxu0 %v838
      %923 = vmatprep.subr.mxu0 0.0
      %924 = vmatpush1.xpose.msra.mxu0 %v841
      %925 = vmatprep.subr.mxu0 0.0
      %926 = vmatpush1.xpose.msra.mxu0 %v844
      %927 = vmatprep.subr.mxu0 0.0
      %928 = vmatpush1.xpose.msra.mxu0 %v847
      %929 = vmatprep.subr.mxu0 0.0
      %930 = vmatpush1.xpose.msra.mxu0 %v850
      %931 = vmatprep.subr.mxu0 0.0
      %932 = vmatpush1.xpose.msra.mxu0 %v853
      %933 = vmatprep.subr.mxu0 0.0
      %934 = vmatpush1.xpose.msra.mxu0 %v856
      %935 = vmatprep.subr.mxu0 0.0
      %936 = vmatpush1.xpose.msra.mxu0 %v859
      %937 = vmatprep.subr.mxu0 0.0
      %938 = vmatpush1.xpose.msra.mxu0 %v862
      %939 = vmatprep.subr.mxu0 0.0
      %940 = vmatpush1.xpose.msra.mxu0 %v865
      %941 = vmatprep.subr.mxu0 0.0
      %942 = vmatpush1.xpose.msra.mxu0 %v868
      %943 = vmatprep.subr.mxu0 0.0
      %944 = vmatpush1.xpose.msra.mxu0 %v871
      %945 = vmatprep.subr.mxu0 0.0
      %946 = vmatpush1.xpose.msra.mxu0 %v874
      %947 = vmatprep.subr.mxu0 0.0
      %948 = vmatpush1.xpose.msra.mxu0 %v877
      %949 = vmatprep.subr.mxu0 0.0
      %950 = vmatpush1.xpose.msra.mxu0 %v880
      %951 = vmatprep.subr.mxu0 0.0
      %952 = vmatpush1.xpose.msra.mxu0 %v883
      %953 = vmatprep.subr.mxu0 0.0
      %954 = vmatpush1.xpose.msra.mxu0 %v886
      %955 = vmatprep.subr.mxu0 0.0
      %956 = vmatpush1.xpose.msra.mxu0 %v889
      %957 = vmatprep.subr.mxu0 0.0
      %958 = vmatpush1.xpose.msra.mxu0 %v892
      %959 = vmatprep.subr.mxu0 0.0
      %960 = vmatpush1.xpose.msra.mxu0 %v895
      %961 = vmatprep.mubr.f32.mxu0 0.0
      %962 = vmatmul.mubr.f32.gmra.mrb[0].mxu0 %v796
      %v963 = vpop.f32.mrb[0].mxu0
      %v964 = vadd.f32 0.0, %v963
      %v965 = vpop.f32.mrb[0].mxu0
      %v966 = vadd.f32 0.0, %v965
      %967 = vmatprep.mubr.f32.mxu0 0.0
      %968 = vmatmul.mubr.f32.gmra.mrb[0].mxu0 %v799
      %v969 = vpop.f32.mrb[0].mxu0
      %v970 = vadd.f32 0.0, %v969
      %v971 = vpop.f32.mrb[0].mxu0
      %v972 = vadd.f32 0.0, %v971
      %973 = vdwg.mxu0
      %v975 = vsel %vm794, %v211, 0
      %v978 = vsel %vm794, %v212, 0
      %v981 = vsel %vm794, %v462, 0
      %v984 = vsel %vm794, %v463, 0
      %v987 = vsel %vm794, %v464, 0
      %v990 = vsel %vm794, %v465, 0
      %v993 = vsel %vm794, %v466, 0
      %v996 = vsel %vm794, %v467, 0
      %v999 = vsel %vm794, %v468, 0
      %v1002 = vsel %vm794, %v469, 0
      %v1005 = vsel %vm794, %v470, 0
      %v1008 = vsel %vm794, %v471, 0
      %v1011 = vsel %vm794, %v472, 0
      %v1014 = vsel %vm794, %v473, 0
      %v1017 = vsel %vm794, %v474, 0
      %v1020 = vsel %vm794, %v475, 0
      %v1023 = vsel %vm794, %v476, 0
      %v1026 = vsel %vm794, %v477, 0
      %v1029 = vsel %vm794, %v478, 0
      %v1032 = vsel %vm794, %v479, 0
      %v1035 = vsel %vm794, %v480, 0
      %v1038 = vsel %vm794, %v481, 0
      %v1041 = vsel %vm794, %v482, 0
      %v1044 = vsel %vm794, %v483, 0
      %v1047 = vsel %vm794, %v484, 0
      %v1050 = vsel %vm794, %v485, 0
      %v1053 = vsel %vm794, %v486, 0
      %v1056 = vsel %vm794, %v487, 0
      %v1059 = vsel %vm794, %v488, 0
      %v1062 = vsel %vm794, %v489, 0
      %v1065 = vsel %vm794, %v490, 0
      %v1068 = vsel %vm794, %v491, 0
      %v1071 = vsel %vm794, %v492, 0
      %v1074 = vsel %vm794, %v493, 0
      %1076 = vmatprep.subr.mxu0 0.0
      %1077 = vmatpush1.xpose.msra.mxu0 %v981
      %1078 = vmatprep.subr.mxu0 0.0
      %1079 = vmatpush1.xpose.msra.mxu0 %v984
      %1080 = vmatprep.subr.mxu0 0.0
      %1081 = vmatpush1.xpose.msra.mxu0 %v987
      %1082 = vmatprep.subr.mxu0 0.0
      %1083 = vmatpush1.xpose.msra.mxu0 %v990
      %1084 = vmatprep.subr.mxu0 0.0
      %1085 = vmatpush1.xpose.msra.mxu0 %v993
      %1086 = vmatprep.subr.mxu0 0.0
      %1087 = vmatpush1.xpose.msra.mxu0 %v996
      %1088 = vmatprep.subr.mxu0 0.0
      %1089 = vmatpush1.xpose.msra.mxu0 %v999
      %1090 = vmatprep.subr.mxu0 0.0
      %1091 = vmatpush1.xpose.msra.mxu0 %v1002
      %1092 = vmatprep.subr.mxu0 0.0
      %1093 = vmatpush1.xpose.msra.mxu0 %v1005
      %1094 = vmatprep.subr.mxu0 0.0
      %1095 = vmatpush1.xpose.msra.mxu0 %v1008
      %1096 = vmatprep.subr.mxu0 0.0
      %1097 = vmatpush1.xpose.msra.mxu0 %v1011
      %1098 = vmatprep.subr.mxu0 0.0
      %1099 = vmatpush1.xpose.msra.mxu0 %v1014
      %1100 = vmatprep.subr.mxu0 0.0
      %1101 = vmatpush1.xpose.msra.mxu0 %v1017
      %1102 = vmatprep.subr.mxu0 0.0
      %1103 = vmatpush1.xpose.msra.mxu0 %v1020
      %1104 = vmatprep.subr.mxu0 0.0
      %1105 = vmatpush1.xpose.msra.mxu0 %v1023
      %1106 = vmatprep.subr.mxu0 0.0
      %1107 = vmatpush1.xpose.msra.mxu0 %v1026
      %1108 = vmatprep.subr.mxu0 0.0
      %1109 = vmatpush1.xpose.msra.mxu0 %v1029
      %1110 = vmatprep.subr.mxu0 0.0
      %1111 = vmatpush1.xpose.msra.mxu0 %v1032
      %1112 = vmatprep.subr.mxu0 0.0
      %1113 = vmatpush1.xpose.msra.mxu0 %v1035
      %1114 = vmatprep.subr.mxu0 0.0
      %1115 = vmatpush1.xpose.msra.mxu0 %v1038
      %1116 = vmatprep.subr.mxu0 0.0
      %1117 = vmatpush1.xpose.msra.mxu0 %v1041
      %1118 = vmatprep.subr.mxu0 0.0
      %1119 = vmatpush1.xpose.msra.mxu0 %v1044
      %1120 = vmatprep.subr.mxu0 0.0
      %1121 = vmatpush1.xpose.msra.mxu0 %v1047
      %1122 = vmatprep.subr.mxu0 0.0
      %1123 = vmatpush1.xpose.msra.mxu0 %v1050
      %1124 = vmatprep.subr.mxu0 0.0
      %1125 = vmatpush1.xpose.msra.mxu0 %v1053
      %1126 = vmatprep.subr.mxu0 0.0
      %1127 = vmatpush1.xpose.msra.mxu0 %v1056
      %1128 = vmatprep.subr.mxu0 0.0
      %1129 = vmatpush1.xpose.msra.mxu0 %v1059
      %1130 = vmatprep.subr.mxu0 0.0
      %1131 = vmatpush1.xpose.msra.mxu0 %v1062
      %1132 = vmatprep.subr.mxu0 0.0
      %1133 = vmatpush1.xpose.msra.mxu0 %v1065
      %1134 = vmatprep.subr.mxu0 0.0
      %1135 = vmatpush1.xpose.msra.mxu0 %v1068
      %1136 = vmatprep.subr.mxu0 0.0
      %1137 = vmatpush1.xpose.msra.mxu0 %v1071
      %1138 = vmatprep.subr.mxu0 0.0
      %1139 = vmatpush1.xpose.msra.mxu0 %v1074
      %1140 = vmatprep.mubr.f32.mxu0 0.0
      %1141 = vmatmul.mubr.f32.gmra.mrb[0].mxu0 %v975
      %v1142 = vpop.f32.mrb[0].mxu0
      %v1143 = vadd.f32 %v964, %v1142
      %v1144 = vpop.f32.mrb[0].mxu0
      %v1145 = vadd.f32 %v966, %v1144
      %1146 = vmatprep.mubr.f32.mxu0 0.0
      %1147 = vmatmul.mubr.f32.gmra.mrb[0].mxu0 %v978
      %v1148 = vpop.f32.mrb[0].mxu0
      %v1149 = vadd.f32 %v970, %v1148
      %v1150 = vpop.f32.mrb[0].mxu0
      %v1151 = vadd.f32 %v972, %v1150
      %1152 = vdwg.mxu0
      %v1153 = vadd.s32 %v234, 1
      %v1154 = vadd.s32 %v235, 1
      %vm1155 = vcmp.ge.s32.totalorder %v1153, 1
      %vm1156 = vcmp.ge.s32.totalorder %v1154, 1
      %vm1157 = vmand 0, %vm1155
      %vm1158 = vmand 0, %vm1156
      %vm1159 = vmand 1, %vm1155
      %vm1160 = vmand 1, %vm1156
      %vm1161 = vcmp.lt.s32.totalorder %v1153, 17
      %vm1162 = vcmp.lt.s32.totalorder %v1154, 17
      %vm1163 = vmand %vm1157, %vm1161
      %vm1164 = vmand %vm1158, %vm1162
      %vm1165 = vmand %vm1159, %vm1161
      %vm1166 = vmand %vm1160, %vm1162
      %v1167 = vsel %vm1163, %v538, -inf
      %v1168 = vsel %vm1164, %v539, -inf
      %v1169 = vsel %vm1165, %v540, -inf
      %v1170 = vsel %vm1166, %v541, -inf
      %v1171 = vsel %vm1165, %v542, -inf
      %v1172 = vsel %vm1166, %v543, -inf
      %v1173 = vsel %vm1165, %v544, -inf
      %v1174 = vsel %vm1166, %v545, -inf
      %v1175 = vsel %vm1165, %v546, -inf
      %v1176 = vsel %vm1166, %v547, -inf
      %v1177 = vsel %vm1165, %v548, -inf
      %v1178 = vsel %vm1166, %v549, -inf
      %v1179 = vsel %vm1165, %v550, -inf
      %v1180 = vsel %vm1166, %v551, -inf
      %v1181 = vsel %vm1165, %v552, -inf
      %v1182 = vsel %vm1166, %v553, -inf
      %v1183 = vsel %vm1165, %v554, -inf
      %v1184 = vsel %vm1166, %v555, -inf
      %v1185 = vsel %vm1165, %v556, -inf
      %v1186 = vsel %vm1166, %v557, -inf
      %v1187 = vsel %vm1165, %v558, -inf
      %v1188 = vsel %vm1166, %v559, -inf
      %v1189 = vsel %vm1165, %v560, -inf
      %v1190 = vsel %vm1166, %v561, -inf
      %v1191 = vsel %vm1165, %v562, -inf
      %v1192 = vsel %vm1166, %v563, -inf
      %v1193 = vsel %vm1165, %v564, -inf
      %v1194 = vsel %vm1166, %v565, -inf
      %v1195 = vsel %vm1165, %v566, -inf
      %v1196 = vsel %vm1166, %v567, -inf
      %v1197 = vsel %vm1165, %v568, -inf
      %v1198 = vsel %vm1166, %v569, -inf
      %v1199 = vmax.f32 %v506, %v1167
      %v1200 = vmax.f32 %v507, %v1168
      %v1201 = vmax.f32 %v508, %v1169
      %v1202 = vmax.f32 %v509, %v1170
      %v1203 = vmax.f32 %v510, %v1171
      %v1204 = vmax.f32 %v511, %v1172
      %v1205 = vmax.f32 %v512, %v1173
      %v1206 = vmax.f32 %v513, %v1174
      %v1207 = vmax.f32 %v514, %v1175
      %v1208 = vmax.f32 %v515, %v1176
      %v1209 = vmax.f32 %v516, %v1177
      %v1210 = vmax.f32 %v517, %v1178
      %v1211 = vmax.f32 %v518, %v1179
      %v1212 = vmax.f32 %v519, %v1180
      %v1213 = vmax.f32 %v520, %v1181
      %v1214 = vmax.f32 %v521, %v1182
      %v1215 = vmax.f32 %v522, %v1183
      %v1216 = vmax.f32 %v523, %v1184
      %v1217 = vmax.f32 %v524, %v1185
      %v1218 = vmax.f32 %v525, %v1186
      %v1219 = vmax.f32 %v526, %v1187
      %v1220 = vmax.f32 %v527, %v1188
      %v1221 = vmax.f32 %v528, %v1189
      %v1222 = vmax.f32 %v529, %v1190
      %v1223 = vmax.f32 %v530, %v1191
      %v1224 = vmax.f32 %v531, %v1192
      %v1225 = vmax.f32 %v532, %v1193
      %v1226 = vmax.f32 %v533, %v1194
      %v1227 = vmax.f32 %v534, %v1195
      %v1228 = vmax.f32 %v535, %v1196
      %v1229 = vmax.f32 %v536, %v1197
      %v1230 = vmax.f32 %v537, %v1198
      %v1231 = vld [vmem:[%s200 + $0x2] sm:$0xff]
      %v1232 = vld [vmem:[%s200 + $0xa] sm:$0xff]
      %v1233 = vld [vmem:[%s200 + $0x1a] sm:$0xff]
      %v1234 = vld [vmem:[%s200 + $0x22] sm:$0xff]
      %v1235 = vld [vmem:[%s200 + $0x32] sm:$0xff]
      %v1236 = vld [vmem:[%s200 + $0x3a] sm:$0xff]
      %v1237 = vld [vmem:[%s200 + $0x4a] sm:$0xff]
      %v1238 = vld [vmem:[%s200 + $0x52] sm:$0xff]
      %v1239 = vld [vmem:[%s200 + $0x62] sm:$0xff]
      %v1240 = vld [vmem:[%s200 + $0x6a] sm:$0xff]
      %v1241 = vld [vmem:[%s200 + $0x7a] sm:$0xff]
      %v1242 = vld [vmem:[%s200 + $0x82] sm:$0xff]
      %v1243 = vld [vmem:[%s200 + $0x92] sm:$0xff]
      %v1244 = vld [vmem:[%s200 + $0x9a] sm:$0xff]
      %v1245 = vld [vmem:[%s200 + $0xaa] sm:$0xff]
      %v1246 = vld [vmem:[%s200 + $0xb2] sm:$0xff]
      %v1247 = vld [vmem:[%s200 + $0xc2] sm:$0xff]
      %v1248 = vld [vmem:[%s200 + $0xca] sm:$0xff]
      %v1249 = vld [vmem:[%s200 + $0xda] sm:$0xff]
      %v1250 = vld [vmem:[%s200 + $0xe2] sm:$0xff]
      %v1251 = vld [vmem:[%s200 + $0xf2] sm:$0xff]
      %v1252 = vld [vmem:[%s200 + $0xfa] sm:$0xff]
      %v1253 = vld [vmem:[%s200 + $0x10a] sm:$0xff]
      %v1254 = vld [vmem:[%s200 + $0x112] sm:$0xff]
      %v1255 = vld [vmem:[%s200 + $0x122] sm:$0xff]
      %v1256 = vld [vmem:[%s200 + $0x12a] sm:$0xff]
      %v1257 = vld [vmem:[%s200 + $0x13a] sm:$0xff]
      %v1258 = vld [vmem:[%s200 + $0x142] sm:$0xff]
      %v1259 = vld [vmem:[%s200 + $0x152] sm:$0xff]
      %v1260 = vld [vmem:[%s200 + $0x15a] sm:$0xff]
      %v1261 = vld [vmem:[%s200 + $0x16a] sm:$0xff]
      %v1262 = vld [vmem:[%s200 + $0x172] sm:$0xff]
      %1264 = vset.pattern.permute.xlu0 4
      %1265 = vperm.xlu0 %1264, %v1231
      %v1266 = vpop.permute.xlu0 %1265
      %1269 = vset.pattern.permute.xlu0 4
      %1270 = vperm.xlu0 %1269, %v1232
      %v1271 = vpop.permute.xlu0 %1270
      %1274 = vset.pattern.permute.xlu0 4
      %1275 = vperm.xlu0 %1274, %v1233
      %v1276 = vpop.permute.xlu0 %1275
      %1279 = vset.pattern.permute.xlu0 4
      %1280 = vperm.xlu0 %1279, %v1234
      %v1281 = vpop.permute.xlu0 %1280
      %1284 = vset.pattern.permute.xlu0 4
      %1285 = vperm.xlu0 %1284, %v1235
      %v1286 = vpop.permute.xlu0 %1285
      %1289 = vset.pattern.permute.xlu0 4
      %1290 = vperm.xlu0 %1289, %v1236
      %v1291 = vpop.permute.xlu0 %1290
      %1294 = vset.pattern.permute.xlu0 4
      %1295 = vperm.xlu0 %1294, %v1237
      %v1296 = vpop.permute.xlu0 %1295
      %1299 = vset.pattern.permute.xlu0 4
      %1300 = vperm.xlu0 %1299, %v1238
      %v1301 = vpop.permute.xlu0 %1300
      %1304 = vset.pattern.permute.xlu0 4
      %1305 = vperm.xlu0 %1304, %v1239
      %v1306 = vpop.permute.xlu0 %1305
      %1309 = vset.pattern.permute.xlu0 4
      %1310 = vperm.xlu0 %1309, %v1240
      %v1311 = vpop.permute.xlu0 %1310
      %1314 = vset.pattern.permute.xlu0 4
      %1315 = vperm.xlu0 %1314, %v1241
      %v1316 = vpop.permute.xlu0 %1315
      %1319 = vset.pattern.permute.xlu0 4
      %1320 = vperm.xlu0 %1319, %v1242
      %v1321 = vpop.permute.xlu0 %1320
      %1324 = vset.pattern.permute.xlu0 4
      %1325 = vperm.xlu0 %1324, %v1243
      %v1326 = vpop.permute.xlu0 %1325
      %1329 = vset.pattern.permute.xlu0 4
      %1330 = vperm.xlu0 %1329, %v1244
      %v1331 = vpop.permute.xlu0 %1330
      %1334 = vset.pattern.permute.xlu0 4
      %1335 = vperm.xlu0 %1334, %v1245
      %v1336 = vpop.permute.xlu0 %1335
      %1339 = vset.pattern.permute.xlu0 4
      %1340 = vperm.xlu0 %1339, %v1246
      %v1341 = vpop.permute.xlu0 %1340
      %1344 = vset.pattern.permute.xlu0 4
      %1345 = vperm.xlu0 %1344, %v1247
      %v1346 = vpop.permute.xlu0 %1345
      %1349 = vset.pattern.permute.xlu0 4
      %1350 = vperm.xlu0 %1349, %v1248
      %v1351 = vpop.permute.xlu0 %1350
      %1354 = vset.pattern.permute.xlu0 4
      %1355 = vperm.xlu0 %1354, %v1249
      %v1356 = vpop.permute.xlu0 %1355
      %1359 = vset.pattern.permute.xlu0 4
      %1360 = vperm.xlu0 %1359, %v1250
      %v1361 = vpop.permute.xlu0 %1360
      %1364 = vset.pattern.permute.xlu0 4
      %1365 = vperm.xlu0 %1364, %v1251
      %v1366 = vpop.permute.xlu0 %1365
      %1369 = vset.pattern.permute.xlu0 4
      %1370 = vperm.xlu0 %1369, %v1252
      %v1371 = vpop.permute.xlu0 %1370
      %1374 = vset.pattern.permute.xlu0 4
      %1375 = vperm.xlu0 %1374, %v1253
      %v1376 = vpop.permute.xlu0 %1375
      %1379 = vset.pattern.permute.xlu0 4
      %1380 = vperm.xlu0 %1379, %v1254
      %v1381 = vpop.permute.xlu0 %1380
      %1384 = vset.pattern.permute.xlu0 4
      %1385 = vperm.xlu0 %1384, %v1255
      %v1386 = vpop.permute.xlu0 %1385
      %1389 = vset.pattern.permute.xlu0 4
      %1390 = vperm.xlu0 %1389, %v1256
      %v1391 = vpop.permute.xlu0 %1390
      %1394 = vset.pattern.permute.xlu0 4
      %1395 = vperm.xlu0 %1394, %v1257
      %v1396 = vpop.permute.xlu0 %1395
      %1399 = vset.pattern.permute.xlu0 4
      %1400 = vperm.xlu0 %1399, %v1258
      %v1401 = vpop.permute.xlu0 %1400
      %1404 = vset.pattern.permute.xlu0 4
      %1405 = vperm.xlu0 %1404, %v1259
      %v1406 = vpop.permute.xlu0 %1405
      %1409 = vset.pattern.permute.xlu0 4
      %1410 = vperm.xlu0 %1409, %v1260
      %v1411 = vpop.permute.xlu0 %1410
      %1414 = vset.pattern.permute.xlu0 4
      %1415 = vperm.xlu0 %1414, %v1261
      %v1416 = vpop.permute.xlu0 %1415
      %1419 = vset.pattern.permute.xlu0 4
      %1420 = vperm.xlu0 %1419, %v1262
      %v1421 = vpop.permute.xlu0 %1420
      %v1423 = vmul.f32 %v1231, %v1266
      %v1424 = vmul.f32 %v1232, %v1271
      %v1425 = vmul.f32 %v1233, %v1276
      %v1426 = vmul.f32 %v1234, %v1281
      %v1427 = vmul.f32 %v1235, %v1286
      %v1428 = vmul.f32 %v1236, %v1291
      %v1429 = vmul.f32 %v1237, %v1296
      %v1430 = vmul.f32 %v1238, %v1301
      %v1431 = vmul.f32 %v1239, %v1306
      %v1432 = vmul.f32 %v1240, %v1311
      %v1433 = vmul.f32 %v1241, %v1316
      %v1434 = vmul.f32 %v1242, %v1321
      %v1435 = vmul.f32 %v1243, %v1326
      %v1436 = vmul.f32 %v1244, %v1331
      %v1437 = vmul.f32 %v1245, %v1336
      %v1438 = vmul.f32 %v1246, %v1341
      %v1439 = vmul.f32 %v1247, %v1346
      %v1440 = vmul.f32 %v1248, %v1351
      %v1441 = vmul.f32 %v1249, %v1356
      %v1442 = vmul.f32 %v1250, %v1361
      %v1443 = vmul.f32 %v1251, %v1366
      %v1444 = vmul.f32 %v1252, %v1371
      %v1445 = vmul.f32 %v1253, %v1376
      %v1446 = vmul.f32 %v1254, %v1381
      %v1447 = vmul.f32 %v1255, %v1386
      %v1448 = vmul.f32 %v1256, %v1391
      %v1449 = vmul.f32 %v1257, %v1396
      %v1450 = vmul.f32 %v1258, %v1401
      %v1451 = vmul.f32 %v1259, %v1406
      %v1452 = vmul.f32 %v1260, %v1411
      %v1453 = vmul.f32 %v1261, %v1416
      %v1454 = vmul.f32 %v1262, %v1421
      %v1455 = vsel %vm461, %v1423, %v1231
      %v1456 = vsel %vm461, %v1424, %v1232
      %v1457 = vsel %vm461, %v1425, %v1233
      %v1458 = vsel %vm461, %v1426, %v1234
      %v1459 = vsel %vm461, %v1427, %v1235
      %v1460 = vsel %vm461, %v1428, %v1236
      %v1461 = vsel %vm461, %v1429, %v1237
      %v1462 = vsel %vm461, %v1430, %v1238
      %v1463 = vsel %vm461, %v1431, %v1239
      %v1464 = vsel %vm461, %v1432, %v1240
      %v1465 = vsel %vm461, %v1433, %v1241
      %v1466 = vsel %vm461, %v1434, %v1242
      %v1467 = vsel %vm461, %v1435, %v1243
      %v1468 = vsel %vm461, %v1436, %v1244
      %v1469 = vsel %vm461, %v1437, %v1245
      %v1470 = vsel %vm461, %v1438, %v1246
      %v1471 = vsel %vm461, %v1439, %v1247
      %v1472 = vsel %vm461, %v1440, %v1248
      %v1473 = vsel %vm461, %v1441, %v1249
      %v1474 = vsel %vm461, %v1442, %v1250
      %v1475 = vsel %vm461, %v1443, %v1251
      %v1476 = vsel %vm461, %v1444, %v1252
      %v1477 = vsel %vm461, %v1445, %v1253
      %v1478 = vsel %vm461, %v1446, %v1254
      %v1479 = vsel %vm461, %v1447, %v1255
      %v1480 = vsel %vm461, %v1448, %v1256
      %v1481 = vsel %vm461, %v1449, %v1257
      %v1482 = vsel %vm461, %v1450, %v1258
      %v1483 = vsel %vm461, %v1451, %v1259
      %v1484 = vsel %vm461, %v1452, %v1260
      %v1485 = vsel %vm461, %v1453, %v1261
      %v1486 = vsel %vm461, %v1454, %v1262
      %v1488 = vsel %vm794, %v215, 0
      %v1491 = vsel %vm794, %v216, 0
      %v1494 = vsel %vm794, %v1455, 0
      %v1497 = vsel %vm794, %v1456, 0
      %v1500 = vsel %vm794, %v1457, 0
      %v1503 = vsel %vm794, %v1458, 0
      %v1506 = vsel %vm794, %v1459, 0
      %v1509 = vsel %vm794, %v1460, 0
      %v1512 = vsel %vm794, %v1461, 0
      %v1515 = vsel %vm794, %v1462, 0
      %v1518 = vsel %vm794, %v1463, 0
      %v1521 = vsel %vm794, %v1464, 0
      %v1524 = vsel %vm794, %v1465, 0
      %v1527 = vsel %vm794, %v1466, 0
      %v1530 = vsel %vm794, %v1467, 0
      %v1533 = vsel %vm794, %v1468, 0
      %v1536 = vsel %vm794, %v1469, 0
      %v1539 = vsel %vm794, %v1470, 0
      %v1542 = vsel %vm794, %v1471, 0
      %v1545 = vsel %vm794, %v1472, 0
      %v1548 = vsel %vm794, %v1473, 0
      %v1551 = vsel %vm794, %v1474, 0
      %v1554 = vsel %vm794, %v1475, 0
      %v1557 = vsel %vm794, %v1476, 0
      %v1560 = vsel %vm794, %v1477, 0
      %v1563 = vsel %vm794, %v1478, 0
      %v1566 = vsel %vm794, %v1479, 0
      %v1569 = vsel %vm794, %v1480, 0
      %v1572 = vsel %vm794, %v1481, 0
      %v1575 = vsel %vm794, %v1482, 0
      %v1578 = vsel %vm794, %v1483, 0
      %v1581 = vsel %vm794, %v1484, 0
      %v1584 = vsel %vm794, %v1485, 0
      %v1587 = vsel %vm794, %v1486, 0
      %1589 = vmatprep.subr.mxu0 0.0
      %1590 = vmatpush1.xpose.msra.mxu0 %v1494
      %1591 = vmatprep.subr.mxu0 0.0
      %1592 = vmatpush1.xpose.msra.mxu0 %v1497
      %1593 = vmatprep.subr.mxu0 0.0
      %1594 = vmatpush1.xpose.msra.mxu0 %v1500
      %1595 = vmatprep.subr.mxu0 0.0
      %1596 = vmatpush1.xpose.msra.mxu0 %v1503
      %1597 = vmatprep.subr.mxu0 0.0
      %1598 = vmatpush1.xpose.msra.mxu0 %v1506
      %1599 = vmatprep.subr.mxu0 0.0
      %1600 = vmatpush1.xpose.msra.mxu0 %v1509
      %1601 = vmatprep.subr.mxu0 0.0
      %1602 = vmatpush1.xpose.msra.mxu0 %v1512
      %1603 = vmatprep.subr.mxu0 0.0
      %1604 = vmatpush1.xpose.msra.mxu0 %v1515
      %1605 = vmatprep.subr.mxu0 0.0
      %1606 = vmatpush1.xpose.msra.mxu0 %v1518
      %1607 = vmatprep.subr.mxu0 0.0
      %1608 = vmatpush1.xpose.msra.mxu0 %v1521
      %1609 = vmatprep.subr.mxu0 0.0
      %1610 = vmatpush1.xpose.msra.mxu0 %v1524
      %1611 = vmatprep.subr.mxu0 0.0
      %1612 = vmatpush1.xpose.msra.mxu0 %v1527
      %1613 = vmatprep.subr.mxu0 0.0
      %1614 = vmatpush1.xpose.msra.mxu0 %v1530
      %1615 = vmatprep.subr.mxu0 0.0
      %1616 = vmatpush1.xpose.msra.mxu0 %v1533
      %1617 = vmatprep.subr.mxu0 0.0
      %1618 = vmatpush1.xpose.msra.mxu0 %v1536
      %1619 = vmatprep.subr.mxu0 0.0
      %1620 = vmatpush1.xpose.msra.mxu0 %v1539
      %1621 = vmatprep.subr.mxu0 0.0
      %1622 = vmatpush1.xpose.msra.mxu0 %v1542
      %1623 = vmatprep.subr.mxu0 0.0
      %1624 = vmatpush1.xpose.msra.mxu0 %v1545
      %1625 = vmatprep.subr.mxu0 0.0
      %1626 = vmatpush1.xpose.msra.mxu0 %v1548
      %1627 = vmatprep.subr.mxu0 0.0
      %1628 = vmatpush1.xpose.msra.mxu0 %v1551
      %1629 = vmatprep.subr.mxu0 0.0
      %1630 = vmatpush1.xpose.msra.mxu0 %v1554
      %1631 = vmatprep.subr.mxu0 0.0
      %1632 = vmatpush1.xpose.msra.mxu0 %v1557
      %1633 = vmatprep.subr.mxu0 0.0
      %1634 = vmatpush1.xpose.msra.mxu0 %v1560
      %1635 = vmatprep.subr.mxu0 0.0
      %1636 = vmatpush1.xpose.msra.mxu0 %v1563
      %1637 = vmatprep.subr.mxu0 0.0
      %1638 = vmatpush1.xpose.msra.mxu0 %v1566
      %1639 = vmatprep.subr.mxu0 0.0
      %1640 = vmatpush1.xpose.msra.mxu0 %v1569
      %1641 = vmatprep.subr.mxu0 0.0
      %1642 = vmatpush1.xpose.msra.mxu0 %v1572
      %1643 = vmatprep.subr.mxu0 0.0
      %1644 = vmatpush1.xpose.msra.mxu0 %v1575
      %1645 = vmatprep.subr.mxu0 0.0
      %1646 = vmatpush1.xpose.msra.mxu0 %v1578
      %1647 = vmatprep.subr.mxu0 0.0
      %1648 = vmatpush1.xpose.msra.mxu0 %v1581
      %1649 = vmatprep.subr.mxu0 0.0
      %1650 = vmatpush1.xpose.msra.mxu0 %v1584
      %1651 = vmatprep.subr.mxu0 0.0
      %1652 = vmatpush1.xpose.msra.mxu0 %v1587
      %1653 = vmatprep.mubr.f32.mxu0 0.0
      %1654 = vmatmul.mubr.f32.gmra.mrb[0].mxu0 %v1488
      %v1655 = vpop.f32.mrb[0].mxu0
      %v1656 = vadd.f32 0.0, %v1655
      %v1657 = vpop.f32.mrb[0].mxu0
      %v1658 = vadd.f32 0.0, %v1657
      %1659 = vmatprep.mubr.f32.mxu0 0.0
      %1660 = vmatmul.mubr.f32.gmra.mrb[0].mxu0 %v1491
      %v1661 = vpop.f32.mrb[0].mxu0
      %v1662 = vadd.f32 0.0, %v1661
      %v1663 = vpop.f32.mrb[0].mxu0
      %v1664 = vadd.f32 0.0, %v1663
      %1665 = vdwg.mxu0
      %v1666 = vadd.f32 %v1143, %v1656
      %v1667 = vadd.f32 %v1145, %v1658
      %v1668 = vadd.f32 %v1149, %v1662
      %v1669 = vadd.f32 %v1151, %v1664
      %v1670 = vadd.s32 %v234, 2
      %v1671 = vadd.s32 %v235, 2
      %vm1672 = vcmp.ge.s32.totalorder %v1670, 1
      %vm1673 = vcmp.ge.s32.totalorder %v1671, 1
      %vm1674 = vmand 0, %vm1672
      %vm1675 = vmand 0, %vm1673
      %vm1676 = vmand 1, %vm1672
      %vm1677 = vmand 1, %vm1673
      %vm1678 = vcmp.lt.s32.totalorder %v1670, 17
      %vm1679 = vcmp.lt.s32.totalorder %v1671, 17
      %vm1680 = vmand %vm1674, %vm1678
      %vm1681 = vmand %vm1675, %vm1679
      %vm1682 = vmand %vm1676, %vm1678
      %vm1683 = vmand %vm1677, %vm1679
      %v1684 = vsel %vm1680, %v1231, -inf
      %v1685 = vsel %vm1681, %v1232, -inf
      %v1686 = vsel %vm1682, %v1233, -inf
      %v1687 = vsel %vm1683, %v1234, -inf
      %v1688 = vsel %vm1682, %v1235, -inf
      %v1689 = vsel %vm1683, %v1236, -inf
      %v1690 = vsel %vm1682, %v1237, -inf
      %v1691 = vsel %vm1683, %v1238, -inf
      %v1692 = vsel %vm1682, %v1239, -inf
      %v1693 = vsel %vm1683, %v1240, -inf
      %v1694 = vsel %vm1682, %v1241, -inf
      %v1695 = vsel %vm1683, %v1242, -inf
      %v1696 = vsel %vm1682, %v1243, -inf
      %v1697 = vsel %vm1683, %v1244, -inf
      %v1698 = vsel %vm1682, %v1245, -inf
      %v1699 = vsel %vm1683, %v1246, -inf
      %v1700 = vsel %vm1682, %v1247, -inf
      %v1701 = vsel %vm1683, %v1248, -inf
      %v1702 = vsel %vm1682, %v1249, -inf
      %v1703 = vsel %vm1683, %v1250, -inf
      %v1704 = vsel %vm1682, %v1251, -inf
      %v1705 = vsel %vm1683, %v1252, -inf
      %v1706 = vsel %vm1682, %v1253, -inf
      %v1707 = vsel %vm1683, %v1254, -inf
      %v1708 = vsel %vm1682, %v1255, -inf
      %v1709 = vsel %vm1683, %v1256, -inf
      %v1710 = vsel %vm1682, %v1257, -inf
      %v1711 = vsel %vm1683, %v1258, -inf
      %v1712 = vsel %vm1682, %v1259, -inf
      %v1713 = vsel %vm1683, %v1260, -inf
      %v1714 = vsel %vm1682, %v1261, -inf
      %v1715 = vsel %vm1683, %v1262, -inf
      %v1716 = vmax.f32 %v1199, %v1684
      %v1717 = vmax.f32 %v1200, %v1685
      %v1718 = vmax.f32 %v1201, %v1686
      %v1719 = vmax.f32 %v1202, %v1687
      %v1720 = vmax.f32 %v1203, %v1688
      %v1721 = vmax.f32 %v1204, %v1689
      %v1722 = vmax.f32 %v1205, %v1690
      %v1723 = vmax.f32 %v1206, %v1691
      %v1724 = vmax.f32 %v1207, %v1692
      %v1725 = vmax.f32 %v1208, %v1693
      %v1726 = vmax.f32 %v1209, %v1694
      %v1727 = vmax.f32 %v1210, %v1695
      %v1728 = vmax.f32 %v1211, %v1696
      %v1729 = vmax.f32 %v1212, %v1697
      %v1730 = vmax.f32 %v1213, %v1698
      %v1731 = vmax.f32 %v1214, %v1699
      %v1732 = vmax.f32 %v1215, %v1700
      %v1733 = vmax.f32 %v1216, %v1701
      %v1734 = vmax.f32 %v1217, %v1702
      %v1735 = vmax.f32 %v1218, %v1703
      %v1736 = vmax.f32 %v1219, %v1704
      %v1737 = vmax.f32 %v1220, %v1705
      %v1738 = vmax.f32 %v1221, %v1706
      %v1739 = vmax.f32 %v1222, %v1707
      %v1740 = vmax.f32 %v1223, %v1708
      %v1741 = vmax.f32 %v1224, %v1709
      %v1742 = vmax.f32 %v1225, %v1710
      %v1743 = vmax.f32 %v1226, %v1711
      %v1744 = vmax.f32 %v1227, %v1712
      %v1745 = vmax.f32 %v1228, %v1713
      %v1746 = vmax.f32 %v1229, %v1714
      %v1747 = vmax.f32 %v1230, %v1715
      %s1748 = scalar_lea.vmem %s200, 24
      %v1749 = vld [vmem:[%s1748] sm:$0xff]
      %v1750 = vld [vmem:[%s1748 + $0x8] sm:$0xff]
      %v1751 = vld [vmem:[%s1748 + $0x18] sm:$0xff]
      %v1752 = vld [vmem:[%s1748 + $0x20] sm:$0xff]
      %v1753 = vld [vmem:[%s1748 + $0x30] sm:$0xff]
      %v1754 = vld [vmem:[%s1748 + $0x38] sm:$0xff]
      %v1755 = vld [vmem:[%s1748 + $0x48] sm:$0xff]
      %v1756 = vld [vmem:[%s1748 + $0x50] sm:$0xff]
      %v1757 = vld [vmem:[%s1748 + $0x60] sm:$0xff]
      %v1758 = vld [vmem:[%s1748 + $0x68] sm:$0xff]
      %v1759 = vld [vmem:[%s1748 + $0x78] sm:$0xff]
      %v1760 = vld [vmem:[%s1748 + $0x80] sm:$0xff]
      %v1761 = vld [vmem:[%s1748 + $0x90] sm:$0xff]
      %v1762 = vld [vmem:[%s1748 + $0x98] sm:$0xff]
      %v1763 = vld [vmem:[%s1748 + $0xa8] sm:$0xff]
      %v1764 = vld [vmem:[%s1748 + $0xb0] sm:$0xff]
      %v1765 = vld [vmem:[%s1748 + $0xc0] sm:$0xff]
      %v1766 = vld [vmem:[%s1748 + $0xc8] sm:$0xff]
      %v1767 = vld [vmem:[%s1748 + $0xd8] sm:$0xff]
      %v1768 = vld [vmem:[%s1748 + $0xe0] sm:$0xff]
      %v1769 = vld [vmem:[%s1748 + $0xf0] sm:$0xff]
      %v1770 = vld [vmem:[%s1748 + $0xf8] sm:$0xff]
      %v1771 = vld [vmem:[%s1748 + $0x108] sm:$0xff]
      %v1772 = vld [vmem:[%s1748 + $0x110] sm:$0xff]
      %v1773 = vld [vmem:[%s1748 + $0x120] sm:$0xff]
      %v1774 = vld [vmem:[%s1748 + $0x128] sm:$0xff]
      %v1775 = vld [vmem:[%s1748 + $0x138] sm:$0xff]
      %v1776 = vld [vmem:[%s1748 + $0x140] sm:$0xff]
      %v1777 = vld [vmem:[%s1748 + $0x150] sm:$0xff]
      %v1778 = vld [vmem:[%s1748 + $0x158] sm:$0xff]
      %v1779 = vld [vmem:[%s1748 + $0x168] sm:$0xff]
      %v1780 = vld [vmem:[%s1748 + $0x170] sm:$0xff]
      %1782 = vset.pattern.permute.xlu0 4
      %1783 = vperm.xlu0 %1782, %v1749
      %v1784 = vpop.permute.xlu0 %1783
      %1787 = vset.pattern.permute.xlu0 4
      %1788 = vperm.xlu0 %1787, %v1750
      %v1789 = vpop.permute.xlu0 %1788
      %1792 = vset.pattern.permute.xlu0 4
      %1793 = vperm.xlu0 %1792, %v1751
      %v1794 = vpop.permute.xlu0 %1793
      %1797 = vset.pattern.permute.xlu0 4
      %1798 = vperm.xlu0 %1797, %v1752
      %v1799 = vpop.permute.xlu0 %1798
      %1802 = vset.pattern.permute.xlu0 4
      %1803 = vperm.xlu0 %1802, %v1753
      %v1804 = vpop.permute.xlu0 %1803
      %1807 = vset.pattern.permute.xlu0 4
      %1808 = vperm.xlu0 %1807, %v1754
      %v1809 = vpop.permute.xlu0 %1808
      %1812 = vset.pattern.permute.xlu0 4
      %1813 = vperm.xlu0 %1812, %v1755
      %v1814 = vpop.permute.xlu0 %1813
      %1817 = vset.pattern.permute.xlu0 4
      %1818 = vperm.xlu0 %1817, %v1756
      %v1819 = vpop.permute.xlu0 %1818
      %1822 = vset.pattern.permute.xlu0 4
      %1823 = vperm.xlu0 %1822, %v1757
      %v1824 = vpop.permute.xlu0 %1823
      %1827 = vset.pattern.permute.xlu0 4
      %1828 = vperm.xlu0 %1827, %v1758
      %v1829 = vpop.permute.xlu0 %1828
      %1832 = vset.pattern.permute.xlu0 4
      %1833 = vperm.xlu0 %1832, %v1759
      %v1834 = vpop.permute.xlu0 %1833
      %1837 = vset.pattern.permute.xlu0 4
      %1838 = vperm.xlu0 %1837, %v1760
      %v1839 = vpop.permute.xlu0 %1838
      %1842 = vset.pattern.permute.xlu0 4
      %1843 = vperm.xlu0 %1842, %v1761
      %v1844 = vpop.permute.xlu0 %1843
      %1847 = vset.pattern.permute.xlu0 4
      %1848 = vperm.xlu0 %1847, %v1762
      %v1849 = vpop.permute.xlu0 %1848
      %1852 = vset.pattern.permute.xlu0 4
      %1853 = vperm.xlu0 %1852, %v1763
      %v1854 = vpop.permute.xlu0 %1853
      %1857 = vset.pattern.permute.xlu0 4
      %1858 = vperm.xlu0 %1857, %v1764
      %v1859 = vpop.permute.xlu0 %1858
      %1862 = vset.pattern.permute.xlu0 4
      %1863 = vperm.xlu0 %1862, %v1765
      %v1864 = vpop.permute.xlu0 %1863
      %1867 = vset.pattern.permute.xlu0 4
      %1868 = vperm.xlu0 %1867, %v1766
      %v1869 = vpop.permute.xlu0 %1868
      %1872 = vset.pattern.permute.xlu0 4
      %1873 = vperm.xlu0 %1872, %v1767
      %v1874 = vpop.permute.xlu0 %1873
      %1877 = vset.pattern.permute.xlu0 4
      %1878 = vperm.xlu0 %1877, %v1768
      %v1879 = vpop.permute.xlu0 %1878
      %1882 = vset.pattern.permute.xlu0 4
      %1883 = vperm.xlu0 %1882, %v1769
      %v1884 = vpop.permute.xlu0 %1883
      %1887 = vset.pattern.permute.xlu0 4
      %1888 = vperm.xlu0 %1887, %v1770
      %v1889 = vpop.permute.xlu0 %1888
      %1892 = vset.pattern.permute.xlu0 4
      %1893 = vperm.xlu0 %1892, %v1771
      %v1894 = vpop.permute.xlu0 %1893
      %1897 = vset.pattern.permute.xlu0 4
      %1898 = vperm.xlu0 %1897, %v1772
      %v1899 = vpop.permute.xlu0 %1898
      %1902 = vset.pattern.permute.xlu0 4
      %1903 = vperm.xlu0 %1902, %v1773
      %v1904 = vpop.permute.xlu0 %1903
      %1907 = vset.pattern.permute.xlu0 4
      %1908 = vperm.xlu0 %1907, %v1774
      %v1909 = vpop.permute.xlu0 %1908
      %1912 = vset.pattern.permute.xlu0 4
      %1913 = vperm.xlu0 %1912, %v1775
      %v1914 = vpop.permute.xlu0 %1913
      %1917 = vset.pattern.permute.xlu0 4
      %1918 = vperm.xlu0 %1917, %v1776
      %v1919 = vpop.permute.xlu0 %1918
      %1922 = vset.pattern.permute.xlu0 4
      %1923 = vperm.xlu0 %1922, %v1777
      %v1924 = vpop.permute.xlu0 %1923
      %1927 = vset.pattern.permute.xlu0 4
      %1928 = vperm.xlu0 %1927, %v1778
      %v1929 = vpop.permute.xlu0 %1928
      %1932 = vset.pattern.permute.xlu0 4
      %1933 = vperm.xlu0 %1932, %v1779
      %v1934 = vpop.permute.xlu0 %1933
      %1937 = vset.pattern.permute.xlu0 4
      %1938 = vperm.xlu0 %1937, %v1780
      %v1939 = vpop.permute.xlu0 %1938
      %v1941 = vmul.f32 %v1749, %v1784
      %v1942 = vmul.f32 %v1750, %v1789
      %v1943 = vmul.f32 %v1751, %v1794
      %v1944 = vmul.f32 %v1752, %v1799
      %v1945 = vmul.f32 %v1753, %v1804
      %v1946 = vmul.f32 %v1754, %v1809
      %v1947 = vmul.f32 %v1755, %v1814
      %v1948 = vmul.f32 %v1756, %v1819
      %v1949 = vmul.f32 %v1757, %v1824
      %v1950 = vmul.f32 %v1758, %v1829
      %v1951 = vmul.f32 %v1759, %v1834
      %v1952 = vmul.f32 %v1760, %v1839
      %v1953 = vmul.f32 %v1761, %v1844
      %v1954 = vmul.f32 %v1762, %v1849
      %v1955 = vmul.f32 %v1763, %v1854
      %v1956 = vmul.f32 %v1764, %v1859
      %v1957 = vmul.f32 %v1765, %v1864
      %v1958 = vmul.f32 %v1766, %v1869
      %v1959 = vmul.f32 %v1767, %v1874
      %v1960 = vmul.f32 %v1768, %v1879
      %v1961 = vmul.f32 %v1769, %v1884
      %v1962 = vmul.f32 %v1770, %v1889
      %v1963 = vmul.f32 %v1771, %v1894
      %v1964 = vmul.f32 %v1772, %v1899
      %v1965 = vmul.f32 %v1773, %v1904
      %v1966 = vmul.f32 %v1774, %v1909
      %v1967 = vmul.f32 %v1775, %v1914
      %v1968 = vmul.f32 %v1776, %v1919
      %v1969 = vmul.f32 %v1777, %v1924
      %v1970 = vmul.f32 %v1778, %v1929
      %v1971 = vmul.f32 %v1779, %v1934
      %v1972 = vmul.f32 %v1780, %v1939
      %v1973 = vsel %vm461, %v1941, %v1749
      %v1974 = vsel %vm461, %v1942, %v1750
      %v1975 = vsel %vm461, %v1943, %v1751
      %v1976 = vsel %vm461, %v1944, %v1752
      %v1977 = vsel %vm461, %v1945, %v1753
      %v1978 = vsel %vm461, %v1946, %v1754
      %v1979 = vsel %vm461, %v1947, %v1755
      %v1980 = vsel %vm461, %v1948, %v1756
      %v1981 = vsel %vm461, %v1949, %v1757
      %v1982 = vsel %vm461, %v1950, %v1758
      %v1983 = vsel %vm461, %v1951, %v1759
      %v1984 = vsel %vm461, %v1952, %v1760
      %v1985 = vsel %vm461, %v1953, %v1761
      %v1986 = vsel %vm461, %v1954, %v1762
      %v1987 = vsel %vm461, %v1955, %v1763
      %v1988 = vsel %vm461, %v1956, %v1764
      %v1989 = vsel %vm461, %v1957, %v1765
      %v1990 = vsel %vm461, %v1958, %v1766
      %v1991 = vsel %vm461, %v1959, %v1767
      %v1992 = vsel %vm461, %v1960, %v1768
      %v1993 = vsel %vm461, %v1961, %v1769
      %v1994 = vsel %vm461, %v1962, %v1770
      %v1995 = vsel %vm461, %v1963, %v1771
      %v1996 = vsel %vm461, %v1964, %v1772
      %v1997 = vsel %vm461, %v1965, %v1773
      %v1998 = vsel %vm461, %v1966, %v1774
      %v1999 = vsel %vm461, %v1967, %v1775
      %v2000 = vsel %vm461, %v1968, %v1776
      %v2001 = vsel %vm461, %v1969, %v1777
      %v2002 = vsel %vm461, %v1970, %v1778
      %v2003 = vsel %vm461, %v1971, %v1779
      %v2004 = vsel %vm461, %v1972, %v1780
      %v2006 = vsel %vm794, %v217, 0
      %v2009 = vsel %vm794, %v218, 0
      %v2012 = vsel %vm794, %v1973, 0
      %v2015 = vsel %vm794, %v1974, 0
      %v2018 = vsel %vm794, %v1975, 0
      %v2021 = vsel %vm794, %v1976, 0
      %v2024 = vsel %vm794, %v1977, 0
      %v2027 = vsel %vm794, %v1978, 0
      %v2030 = vsel %vm794, %v1979, 0
      %v2033 = vsel %vm794, %v1980, 0
      %v2036 = vsel %vm794, %v1981, 0
      %v2039 = vsel %vm794, %v1982, 0
      %v2042 = vsel %vm794, %v1983, 0
      %v2045 = vsel %vm794, %v1984, 0
      %v2048 = vsel %vm794, %v1985, 0
      %v2051 = vsel %vm794, %v1986, 0
      %v2054 = vsel %vm794, %v1987, 0
      %v2057 = vsel %vm794, %v1988, 0
      %v2060 = vsel %vm794, %v1989, 0
      %v2063 = vsel %vm794, %v1990, 0
      %v2066 = vsel %vm794, %v1991, 0
      %v2069 = vsel %vm794, %v1992, 0
      %v2072 = vsel %vm794, %v1993, 0
      %v2075 = vsel %vm794, %v1994, 0
      %v2078 = vsel %vm794, %v1995, 0
      %v2081 = vsel %vm794, %v1996, 0
      %v2084 = vsel %vm794, %v1997, 0
      %v2087 = vsel %vm794, %v1998, 0
      %v2090 = vsel %vm794, %v1999, 0
      %v2093 = vsel %vm794, %v2000, 0
      %v2096 = vsel %vm794, %v2001, 0
      %v2099 = vsel %vm794, %v2002, 0
      %v2102 = vsel %vm794, %v2003, 0
      %v2105 = vsel %vm794, %v2004, 0
      %2107 = vmatprep.subr.mxu0 0.0
      %2108 = vmatpush1.xpose.msra.mxu0 %v2012
      %2109 = vmatprep.subr.mxu0 0.0
      %2110 = vmatpush1.xpose.msra.mxu0 %v2015
      %2111 = vmatprep.subr.mxu0 0.0
      %2112 = vmatpush1.xpose.msra.mxu0 %v2018
      %2113 = vmatprep.subr.mxu0 0.0
      %2114 = vmatpush1.xpose.msra.mxu0 %v2021
      %2115 = vmatprep.subr.mxu0 0.0
      %2116 = vmatpush1.xpose.msra.mxu0 %v2024
      %2117 = vmatprep.subr.mxu0 0.0
      %2118 = vmatpush1.xpose.msra.mxu0 %v2027
      %2119 = vmatprep.subr.mxu0 0.0
      %2120 = vmatpush1.xpose.msra.mxu0 %v2030
      %2121 = vmatprep.subr.mxu0 0.0
      %2122 = vmatpush1.xpose.msra.mxu0 %v2033
      %2123 = vmatprep.subr.mxu0 0.0
      %2124 = vmatpush1.xpose.msra.mxu0 %v2036
      %2125 = vmatprep.subr.mxu0 0.0
      %2126 = vmatpush1.xpose.msra.mxu0 %v2039
      %2127 = vmatprep.subr.mxu0 0.0
      %2128 = vmatpush1.xpose.msra.mxu0 %v2042
      %2129 = vmatprep.subr.mxu0 0.0
      %2130 = vmatpush1.xpose.msra.mxu0 %v2045
      %2131 = vmatprep.subr.mxu0 0.0
      %2132 = vmatpush1.xpose.msra.mxu0 %v2048
      %2133 = vmatprep.subr.mxu0 0.0
      %2134 = vmatpush1.xpose.msra.mxu0 %v2051
      %2135 = vmatprep.subr.mxu0 0.0
      %2136 = vmatpush1.xpose.msra.mxu0 %v2054
      %2137 = vmatprep.subr.mxu0 0.0
      %2138 = vmatpush1.xpose.msra.mxu0 %v2057
      %2139 = vmatprep.subr.mxu0 0.0
      %2140 = vmatpush1.xpose.msra.mxu0 %v2060
      %2141 = vmatprep.subr.mxu0 0.0
      %2142 = vmatpush1.xpose.msra.mxu0 %v2063
      %2143 = vmatprep.subr.mxu0 0.0
      %2144 = vmatpush1.xpose.msra.mxu0 %v2066
      %2145 = vmatprep.subr.mxu0 0.0
      %2146 = vmatpush1.xpose.msra.mxu0 %v2069
      %2147 = vmatprep.subr.mxu0 0.0
      %2148 = vmatpush1.xpose.msra.mxu0 %v2072
      %2149 = vmatprep.subr.mxu0 0.0
      %2150 = vmatpush1.xpose.msra.mxu0 %v2075
      %2151 = vmatprep.subr.mxu0 0.0
      %2152 = vmatpush1.xpose.msra.mxu0 %v2078
      %2153 = vmatprep.subr.mxu0 0.0
      %2154 = vmatpush1.xpose.msra.mxu0 %v2081
      %2155 = vmatprep.subr.mxu0 0.0
      %2156 = vmatpush1.xpose.msra.mxu0 %v2084
      %2157 = vmatprep.subr.mxu0 0.0
      %2158 = vmatpush1.xpose.msra.mxu0 %v2087
      %2159 = vmatprep.subr.mxu0 0.0
      %2160 = vmatpush1.xpose.msra.mxu0 %v2090
      %2161 = vmatprep.subr.mxu0 0.0
      %2162 = vmatpush1.xpose.msra.mxu0 %v2093
      %2163 = vmatprep.subr.mxu0 0.0
      %2164 = vmatpush1.xpose.msra.mxu0 %v2096
      %2165 = vmatprep.subr.mxu0 0.0
      %2166 = vmatpush1.xpose.msra.mxu0 %v2099
      %2167 = vmatprep.subr.mxu0 0.0
      %2168 = vmatpush1.xpose.msra.mxu0 %v2102
      %2169 = vmatprep.subr.mxu0 0.0
      %2170 = vmatpush1.xpose.msra.mxu0 %v2105
      %2171 = vmatprep.mubr.f32.mxu0 0.0
      %2172 = vmatmul.mubr.f32.gmra.mrb[0].mxu0 %v2006
      %v2173 = vpop.f32.mrb[0].mxu0
      %v2174 = vadd.f32 0.0, %v2173
      %v2175 = vpop.f32.mrb[0].mxu0
      %v2176 = vadd.f32 0.0, %v2175
      %2177 = vmatprep.mubr.f32.mxu0 0.0
      %2178 = vmatmul.mubr.f32.gmra.mrb[0].mxu0 %v2009
      %v2179 = vpop.f32.mrb[0].mxu0
      %v2180 = vadd.f32 0.0, %v2179
      %v2181 = vpop.f32.mrb[0].mxu0
      %v2182 = vadd.f32 0.0, %v2181
      %2183 = vdwg.mxu0
      %v2184 = vadd.f32 %v1666, %v2174
      %v2185 = vadd.f32 %v1667, %v2176
      %v2186 = vadd.f32 %v1668, %v2180
      %v2187 = vadd.f32 %v1669, %v2182
      %v2188 = vsel %vm504, %v1749, -inf
      %v2189 = vsel %vm505, %v1750, -inf
      %v2190 = vsel %vm504, %v1751, -inf
      %v2191 = vsel %vm505, %v1752, -inf
      %v2192 = vsel %vm504, %v1753, -inf
      %v2193 = vsel %vm505, %v1754, -inf
      %v2194 = vsel %vm504, %v1755, -inf
      %v2195 = vsel %vm505, %v1756, -inf
      %v2196 = vsel %vm504, %v1757, -inf
      %v2197 = vsel %vm505, %v1758, -inf
      %v2198 = vsel %vm504, %v1759, -inf
      %v2199 = vsel %vm505, %v1760, -inf
      %v2200 = vsel %vm504, %v1761, -inf
      %v2201 = vsel %vm505, %v1762, -inf
      %v2202 = vsel %vm504, %v1763, -inf
      %v2203 = vsel %vm505, %v1764, -inf
      %v2204 = vsel %vm504, %v1765, -inf
      %v2205 = vsel %vm505, %v1766, -inf
      %v2206 = vsel %vm504, %v1767, -inf
      %v2207 = vsel %vm505, %v1768, -inf
      %v2208 = vsel %vm504, %v1769, -inf
      %v2209 = vsel %vm505, %v1770, -inf
      %v2210 = vsel %vm504, %v1771, -inf
      %v2211 = vsel %vm505, %v1772, -inf
      %v2212 = vsel %vm504, %v1773, -inf
      %v2213 = vsel %vm505, %v1774, -inf
      %v2214 = vsel %vm504, %v1775, -inf
      %v2215 = vsel %vm505, %v1776, -inf
      %v2216 = vsel %vm504, %v1777, -inf
      %v2217 = vsel %vm505, %v1778, -inf
      %v2218 = vsel %vm504, %v1779, -inf
      %v2219 = vsel %vm505, %v1780, -inf
      %v2220 = vmax.f32 %v1716, %v2188
      %v2221 = vmax.f32 %v1717, %v2189
      %v2222 = vmax.f32 %v1718, %v2190
      %v2223 = vmax.f32 %v1719, %v2191
      %v2224 = vmax.f32 %v1720, %v2192
      %v2225 = vmax.f32 %v1721, %v2193
      %v2226 = vmax.f32 %v1722, %v2194
      %v2227 = vmax.f32 %v1723, %v2195
      %v2228 = vmax.f32 %v1724, %v2196
      %v2229 = vmax.f32 %v1725, %v2197
      %v2230 = vmax.f32 %v1726, %v2198
      %v2231 = vmax.f32 %v1727, %v2199
      %v2232 = vmax.f32 %v1728, %v2200
      %v2233 = vmax.f32 %v1729, %v2201
      %v2234 = vmax.f32 %v1730, %v2202
      %v2235 = vmax.f32 %v1731, %v2203
      %v2236 = vmax.f32 %v1732, %v2204
      %v2237 = vmax.f32 %v1733, %v2205
      %v2238 = vmax.f32 %v1734, %v2206
      %v2239 = vmax.f32 %v1735, %v2207
      %v2240 = vmax.f32 %v1736, %v2208
      %v2241 = vmax.f32 %v1737, %v2209
      %v2242 = vmax.f32 %v1738, %v2210
      %v2243 = vmax.f32 %v1739, %v2211
      %v2244 = vmax.f32 %v1740, %v2212
      %v2245 = vmax.f32 %v1741, %v2213
      %v2246 = vmax.f32 %v1742, %v2214
      %v2247 = vmax.f32 %v1743, %v2215
      %v2248 = vmax.f32 %v1744, %v2216
      %v2249 = vmax.f32 %v1745, %v2217
      %v2250 = vmax.f32 %v1746, %v2218
      %v2251 = vmax.f32 %v1747, %v2219
      %v2252 = vld [vmem:[%s1748 + $0x1] sm:$0xff]
      %v2253 = vld [vmem:[%s1748 + $0x9] sm:$0xff]
      %v2254 = vld [vmem:[%s1748 + $0x19] sm:$0xff]
      %v2255 = vld [vmem:[%s1748 + $0x21] sm:$0xff]
      %v2256 = vld [vmem:[%s1748 + $0x31] sm:$0xff]
      %v2257 = vld [vmem:[%s1748 + $0x39] sm:$0xff]
      %v2258 = vld [vmem:[%s1748 + $0x49] sm:$0xff]
      %v2259 = vld [vmem:[%s1748 + $0x51] sm:$0xff]
      %v2260 = vld [vmem:[%s1748 + $0x61] sm:$0xff]
      %v2261 = vld [vmem:[%s1748 + $0x69] sm:$0xff]
      %v2262 = vld [vmem:[%s1748 + $0x79] sm:$0xff]
      %v2263 = vld [vmem:[%s1748 + $0x81] sm:$0xff]
      %v2264 = vld [vmem:[%s1748 + $0x91] sm:$0xff]
      %v2265 = vld [vmem:[%s1748 + $0x99] sm:$0xff]
      %v2266 = vld [vmem:[%s1748 + $0xa9] sm:$0xff]
      %v2267 = vld [vmem:[%s1748 + $0xb1] sm:$0xff]
      %v2268 = vld [vmem:[%s1748 + $0xc1] sm:$0xff]
      %v2269 = vld [vmem:[%s1748 + $0xc9] sm:$0xff]
      %v2270 = vld [vmem:[%s1748 + $0xd9] sm:$0xff]
      %v2271 = vld [vmem:[%s1748 + $0xe1] sm:$0xff]
      %v2272 = vld [vmem:[%s1748 + $0xf1] sm:$0xff]
      %v2273 = vld [vmem:[%s1748 + $0xf9] sm:$0xff]
      %v2274 = vld [vmem:[%s1748 + $0x109] sm:$0xff]
      %v2275 = vld [vmem:[%s1748 + $0x111] sm:$0xff]
      %v2276 = vld [vmem:[%s1748 + $0x121] sm:$0xff]
      %v2277 = vld [vmem:[%s1748 + $0x129] sm:$0xff]
      %v2278 = vld [vmem:[%s1748 + $0x139] sm:$0xff]
      %v2279 = vld [vmem:[%s1748 + $0x141] sm:$0xff]
      %v2280 = vld [vmem:[%s1748 + $0x151] sm:$0xff]
      %v2281 = vld [vmem:[%s1748 + $0x159] sm:$0xff]
      %v2282 = vld [vmem:[%s1748 + $0x169] sm:$0xff]
      %v2283 = vld [vmem:[%s1748 + $0x171] sm:$0xff]
      %2285 = vset.pattern.permute.xlu0 4
      %2286 = vperm.xlu0 %2285, %v2252
      %v2287 = vpop.permute.xlu0 %2286
      %2290 = vset.pattern.permute.xlu0 4
      %2291 = vperm.xlu0 %2290, %v2253
      %v2292 = vpop.permute.xlu0 %2291
      %2295 = vset.pattern.permute.xlu0 4
      %2296 = vperm.xlu0 %2295, %v2254
      %v2297 = vpop.permute.xlu0 %2296
      %2300 = vset.pattern.permute.xlu0 4
      %2301 = vperm.xlu0 %2300, %v2255
      %v2302 = vpop.permute.xlu0 %2301
      %2305 = vset.pattern.permute.xlu0 4
      %2306 = vperm.xlu0 %2305, %v2256
      %v2307 = vpop.permute.xlu0 %2306
      %2310 = vset.pattern.permute.xlu0 4
      %2311 = vperm.xlu0 %2310, %v2257
      %v2312 = vpop.permute.xlu0 %2311
      %2315 = vset.pattern.permute.xlu0 4
      %2316 = vperm.xlu0 %2315, %v2258
      %v2317 = vpop.permute.xlu0 %2316
      %2320 = vset.pattern.permute.xlu0 4
      %2321 = vperm.xlu0 %2320, %v2259
      %v2322 = vpop.permute.xlu0 %2321
      %2325 = vset.pattern.permute.xlu0 4
      %2326 = vperm.xlu0 %2325, %v2260
      %v2327 = vpop.permute.xlu0 %2326
      %2330 = vset.pattern.permute.xlu0 4
      %2331 = vperm.xlu0 %2330, %v2261
      %v2332 = vpop.permute.xlu0 %2331
      %2335 = vset.pattern.permute.xlu0 4
      %2336 = vperm.xlu0 %2335, %v2262
      %v2337 = vpop.permute.xlu0 %2336
      %2340 = vset.pattern.permute.xlu0 4
      %2341 = vperm.xlu0 %2340, %v2263
      %v2342 = vpop.permute.xlu0 %2341
      %2345 = vset.pattern.permute.xlu0 4
      %2346 = vperm.xlu0 %2345, %v2264
      %v2347 = vpop.permute.xlu0 %2346
      %2350 = vset.pattern.permute.xlu0 4
      %2351 = vperm.xlu0 %2350, %v2265
      %v2352 = vpop.permute.xlu0 %2351
      %2355 = vset.pattern.permute.xlu0 4
      %2356 = vperm.xlu0 %2355, %v2266
      %v2357 = vpop.permute.xlu0 %2356
      %2360 = vset.pattern.permute.xlu0 4
      %2361 = vperm.xlu0 %2360, %v2267
      %v2362 = vpop.permute.xlu0 %2361
      %2365 = vset.pattern.permute.xlu0 4
      %2366 = vperm.xlu0 %2365, %v2268
      %v2367 = vpop.permute.xlu0 %2366
      %2370 = vset.pattern.permute.xlu0 4
      %2371 = vperm.xlu0 %2370, %v2269
      %v2372 = vpop.permute.xlu0 %2371
      %2375 = vset.pattern.permute.xlu0 4
      %2376 = vperm.xlu0 %2375, %v2270
      %v2377 = vpop.permute.xlu0 %2376
      %2380 = vset.pattern.permute.xlu0 4
      %2381 = vperm.xlu0 %2380, %v2271
      %v2382 = vpop.permute.xlu0 %2381
      %2385 = vset.pattern.permute.xlu0 4
      %2386 = vperm.xlu0 %2385, %v2272
      %v2387 = vpop.permute.xlu0 %2386
      %2390 = vset.pattern.permute.xlu0 4
      %2391 = vperm.xlu0 %2390, %v2273
      %v2392 = vpop.permute.xlu0 %2391
      %2395 = vset.pattern.permute.xlu0 4
      %2396 = vperm.xlu0 %2395, %v2274
      %v2397 = vpop.permute.xlu0 %2396
      %2400 = vset.pattern.permute.xlu0 4
      %2401 = vperm.xlu0 %2400, %v2275
      %v2402 = vpop.permute.xlu0 %2401
      %2405 = vset.pattern.permute.xlu0 4
      %2406 = vperm.xlu0 %2405, %v2276
      %v2407 = vpop.permute.xlu0 %2406
      %2410 = vset.pattern.permute.xlu0 4
      %2411 = vperm.xlu0 %2410, %v2277
      %v2412 = vpop.permute.xlu0 %2411
      %2415 = vset.pattern.permute.xlu0 4
      %2416 = vperm.xlu0 %2415, %v2278
      %v2417 = vpop.permute.xlu0 %2416
      %2420 = vset.pattern.permute.xlu0 4
      %2421 = vperm.xlu0 %2420, %v2279
      %v2422 = vpop.permute.xlu0 %2421
      %2425 = vset.pattern.permute.xlu0 4
      %2426 = vperm.xlu0 %2425, %v2280
      %v2427 = vpop.permute.xlu0 %2426
      %2430 = vset.pattern.permute.xlu0 4
      %2431 = vperm.xlu0 %2430, %v2281
      %v2432 = vpop.permute.xlu0 %2431
      %2435 = vset.pattern.permute.xlu0 4
      %2436 = vperm.xlu0 %2435, %v2282
      %v2437 = vpop.permute.xlu0 %2436
      %2440 = vset.pattern.permute.xlu0 4
      %2441 = vperm.xlu0 %2440, %v2283
      %v2442 = vpop.permute.xlu0 %2441
      %v2444 = vmul.f32 %v2252, %v2287
      %v2445 = vmul.f32 %v2253, %v2292
      %v2446 = vmul.f32 %v2254, %v2297
      %v2447 = vmul.f32 %v2255, %v2302
      %v2448 = vmul.f32 %v2256, %v2307
      %v2449 = vmul.f32 %v2257, %v2312
      %v2450 = vmul.f32 %v2258, %v2317
      %v2451 = vmul.f32 %v2259, %v2322
      %v2452 = vmul.f32 %v2260, %v2327
      %v2453 = vmul.f32 %v2261, %v2332
      %v2454 = vmul.f32 %v2262, %v2337
      %v2455 = vmul.f32 %v2263, %v2342
      %v2456 = vmul.f32 %v2264, %v2347
      %v2457 = vmul.f32 %v2265, %v2352
      %v2458 = vmul.f32 %v2266, %v2357
      %v2459 = vmul.f32 %v2267, %v2362
      %v2460 = vmul.f32 %v2268, %v2367
      %v2461 = vmul.f32 %v2269, %v2372
      %v2462 = vmul.f32 %v2270, %v2377
      %v2463 = vmul.f32 %v2271, %v2382
      %v2464 = vmul.f32 %v2272, %v2387
      %v2465 = vmul.f32 %v2273, %v2392
      %v2466 = vmul.f32 %v2274, %v2397
      %v2467 = vmul.f32 %v2275, %v2402
      %v2468 = vmul.f32 %v2276, %v2407
      %v2469 = vmul.f32 %v2277, %v2412
      %v2470 = vmul.f32 %v2278, %v2417
      %v2471 = vmul.f32 %v2279, %v2422
      %v2472 = vmul.f32 %v2280, %v2427
      %v2473 = vmul.f32 %v2281, %v2432
      %v2474 = vmul.f32 %v2282, %v2437
      %v2475 = vmul.f32 %v2283, %v2442
      %v2476 = vsel %vm461, %v2444, %v2252
      %v2477 = vsel %vm461, %v2445, %v2253
      %v2478 = vsel %vm461, %v2446, %v2254
      %v2479 = vsel %vm461, %v2447, %v2255
      %v2480 = vsel %vm461, %v2448, %v2256
      %v2481 = vsel %vm461, %v2449, %v2257
      %v2482 = vsel %vm461, %v2450, %v2258
      %v2483 = vsel %vm461, %v2451, %v2259
      %v2484 = vsel %vm461, %v2452, %v2260
      %v2485 = vsel %vm461, %v2453, %v2261
      %v2486 = vsel %vm461, %v2454, %v2262
      %v2487 = vsel %vm461, %v2455, %v2263
      %v2488 = vsel %vm461, %v2456, %v2264
      %v2489 = vsel %vm461, %v2457, %v2265
      %v2490 = vsel %vm461, %v2458, %v2266
      %v2491 = vsel %vm461, %v2459, %v2267
      %v2492 = vsel %vm461, %v2460, %v2268
      %v2493 = vsel %vm461, %v2461, %v2269
      %v2494 = vsel %vm461, %v2462, %v2270
      %v2495 = vsel %vm461, %v2463, %v2271
      %v2496 = vsel %vm461, %v2464, %v2272
      %v2497 = vsel %vm461, %v2465, %v2273
      %v2498 = vsel %vm461, %v2466, %v2274
      %v2499 = vsel %vm461, %v2467, %v2275
      %v2500 = vsel %vm461, %v2468, %v2276
      %v2501 = vsel %vm461, %v2469, %v2277
      %v2502 = vsel %vm461, %v2470, %v2278
      %v2503 = vsel %vm461, %v2471, %v2279
      %v2504 = vsel %vm461, %v2472, %v2280
      %v2505 = vsel %vm461, %v2473, %v2281
      %v2506 = vsel %vm461, %v2474, %v2282
      %v2507 = vsel %vm461, %v2475, %v2283
      %v2509 = vsel %vm794, %v219, 0
      %v2512 = vsel %vm794, %v220, 0
      %v2515 = vsel %vm794, %v2476, 0
      %v2518 = vsel %vm794, %v2477, 0
      %v2521 = vsel %vm794, %v2478, 0
      %v2524 = vsel %vm794, %v2479, 0
      %v2527 = vsel %vm794, %v2480, 0
      %v2530 = vsel %vm794, %v2481, 0
      %v2533 = vsel %vm794, %v2482, 0
      %v2536 = vsel %vm794, %v2483, 0
      %v2539 = vsel %vm794, %v2484, 0
      %v2542 = vsel %vm794, %v2485, 0
      %v2545 = vsel %vm794, %v2486, 0
      %v2548 = vsel %vm794, %v2487, 0
      %v2551 = vsel %vm794, %v2488, 0
      %v2554 = vsel %vm794, %v2489, 0
      %v2557 = vsel %vm794, %v2490, 0
      %v2560 = vsel %vm794, %v2491, 0
      %v2563 = vsel %vm794, %v2492, 0
      %v2566 = vsel %vm794, %v2493, 0
      %v2569 = vsel %vm794, %v2494, 0
      %v2572 = vsel %vm794, %v2495, 0
      %v2575 = vsel %vm794, %v2496, 0
      %v2578 = vsel %vm794, %v2497, 0
      %v2581 = vsel %vm794, %v2498, 0
      %v2584 = vsel %vm794, %v2499, 0
      %v2587 = vsel %vm794, %v2500, 0
      %v2590 = vsel %vm794, %v2501, 0
      %v2593 = vsel %vm794, %v2502, 0
      %v2596 = vsel %vm794, %v2503, 0
      %v2599 = vsel %vm794, %v2504, 0
      %v2602 = vsel %vm794, %v2505, 0
      %v2605 = vsel %vm794, %v2506, 0
      %v2608 = vsel %vm794, %v2507, 0
      %2610 = vmatprep.subr.mxu0 0.0
      %2611 = vmatpush1.xpose.msra.mxu0 %v2515
      %2612 = vmatprep.subr.mxu0 0.0
      %2613 = vmatpush1.xpose.msra.mxu0 %v2518
      %2614 = vmatprep.subr.mxu0 0.0
      %2615 = vmatpush1.xpose.msra.mxu0 %v2521
      %2616 = vmatprep.subr.mxu0 0.0
      %2617 = vmatpush1.xpose.msra.mxu0 %v2524
      %2618 = vmatprep.subr.mxu0 0.0
      %2619 = vmatpush1.xpose.msra.mxu0 %v2527
      %2620 = vmatprep.subr.mxu0 0.0
      %2621 = vmatpush1.xpose.msra.mxu0 %v2530
      %2622 = vmatprep.subr.mxu0 0.0
      %2623 = vmatpush1.xpose.msra.mxu0 %v2533
      %2624 = vmatprep.subr.mxu0 0.0
      %2625 = vmatpush1.xpose.msra.mxu0 %v2536
      %2626 = vmatprep.subr.mxu0 0.0
      %2627 = vmatpush1.xpose.msra.mxu0 %v2539
      %2628 = vmatprep.subr.mxu0 0.0
      %2629 = vmatpush1.xpose.msra.mxu0 %v2542
      %2630 = vmatprep.subr.mxu0 0.0
      %2631 = vmatpush1.xpose.msra.mxu0 %v2545
      %2632 = vmatprep.subr.mxu0 0.0
      %2633 = vmatpush1.xpose.msra.mxu0 %v2548
      %2634 = vmatprep.subr.mxu0 0.0
      %2635 = vmatpush1.xpose.msra.mxu0 %v2551
      %2636 = vmatprep.subr.mxu0 0.0
      %2637 = vmatpush1.xpose.msra.mxu0 %v2554
      %2638 = vmatprep.subr.mxu0 0.0
      %2639 = vmatpush1.xpose.msra.mxu0 %v2557
      %2640 = vmatprep.subr.mxu0 0.0
      %2641 = vmatpush1.xpose.msra.mxu0 %v2560
      %2642 = vmatprep.subr.mxu0 0.0
      %2643 = vmatpush1.xpose.msra.mxu0 %v2563
      %2644 = vmatprep.subr.mxu0 0.0
      %2645 = vmatpush1.xpose.msra.mxu0 %v2566
      %2646 = vmatprep.subr.mxu0 0.0
      %2647 = vmatpush1.xpose.msra.mxu0 %v2569
      %2648 = vmatprep.subr.mxu0 0.0
      %2649 = vmatpush1.xpose.msra.mxu0 %v2572
      %2650 = vmatprep.subr.mxu0 0.0
      %2651 = vmatpush1.xpose.msra.mxu0 %v2575
      %2652 = vmatprep.subr.mxu0 0.0
      %2653 = vmatpush1.xpose.msra.mxu0 %v2578
      %2654 = vmatprep.subr.mxu0 0.0
      %2655 = vmatpush1.xpose.msra.mxu0 %v2581
      %2656 = vmatprep.subr.mxu0 0.0
      %2657 = vmatpush1.xpose.msra.mxu0 %v2584
      %2658 = vmatprep.subr.mxu0 0.0
      %2659 = vmatpush1.xpose.msra.mxu0 %v2587
      %2660 = vmatprep.subr.mxu0 0.0
      %2661 = vmatpush1.xpose.msra.mxu0 %v2590
      %2662 = vmatprep.subr.mxu0 0.0
      %2663 = vmatpush1.xpose.msra.mxu0 %v2593
      %2664 = vmatprep.subr.mxu0 0.0
      %2665 = vmatpush1.xpose.msra.mxu0 %v2596
      %2666 = vmatprep.subr.mxu0 0.0
      %2667 = vmatpush1.xpose.msra.mxu0 %v2599
      %2668 = vmatprep.subr.mxu0 0.0
      %2669 = vmatpush1.xpose.msra.mxu0 %v2602
      %2670 = vmatprep.subr.mxu0 0.0
      %2671 = vmatpush1.xpose.msra.mxu0 %v2605
      %2672 = vmatprep.subr.mxu0 0.0
      %2673 = vmatpush1.xpose.msra.mxu0 %v2608
      %2674 = vmatprep.mubr.f32.mxu0 0.0
      %2675 = vmatmul.mubr.f32.gmra.mrb[0].mxu0 %v2509
      %v2676 = vpop.f32.mrb[0].mxu0
      %v2677 = vadd.f32 0.0, %v2676
      %v2678 = vpop.f32.mrb[0].mxu0
      %v2679 = vadd.f32 0.0, %v2678
      %2680 = vmatprep.mubr.f32.mxu0 0.0
      %2681 = vmatmul.mubr.f32.gmra.mrb[0].mxu0 %v2512
      %v2682 = vpop.f32.mrb[0].mxu0
      %v2683 = vadd.f32 0.0, %v2682
      %v2684 = vpop.f32.mrb[0].mxu0
      %v2685 = vadd.f32 0.0, %v2684
      %2686 = vdwg.mxu0
      %v2687 = vadd.f32 %v2184, %v2677
      %v2688 = vadd.f32 %v2185, %v2679
      %v2689 = vadd.f32 %v2186, %v2683
      %v2690 = vadd.f32 %v2187, %v2685
      %v2691 = vsel %vm1165, %v2252, -inf
      %v2692 = vsel %vm1166, %v2253, -inf
      %v2693 = vsel %vm1165, %v2254, -inf
      %v2694 = vsel %vm1166, %v2255, -inf
      %v2695 = vsel %vm1165, %v2256, -inf
      %v2696 = vsel %vm1166, %v2257, -inf
      %v2697 = vsel %vm1165, %v2258, -inf
      %v2698 = vsel %vm1166, %v2259, -inf
      %v2699 = vsel %vm1165, %v2260, -inf
      %v2700 = vsel %vm1166, %v2261, -inf
      %v2701 = vsel %vm1165, %v2262, -inf
      %v2702 = vsel %vm1166, %v2263, -inf
      %v2703 = vsel %vm1165, %v2264, -inf
      %v2704 = vsel %vm1166, %v2265, -inf
      %v2705 = vsel %vm1165, %v2266, -inf
      %v2706 = vsel %vm1166, %v2267, -inf
      %v2707 = vsel %vm1165, %v2268, -inf
      %v2708 = vsel %vm1166, %v2269, -inf
      %v2709 = vsel %vm1165, %v2270, -inf
      %v2710 = vsel %vm1166, %v2271, -inf
      %v2711 = vsel %vm1165, %v2272, -inf
      %v2712 = vsel %vm1166, %v2273, -inf
      %v2713 = vsel %vm1165, %v2274, -inf
      %v2714 = vsel %vm1166, %v2275, -inf
      %v2715 = vsel %vm1165, %v2276, -inf
      %v2716 = vsel %vm1166, %v2277, -inf
      %v2717 = vsel %vm1165, %v2278, -inf
      %v2718 = vsel %vm1166, %v2279, -inf
      %v2719 = vsel %vm1165, %v2280, -inf
      %v2720 = vsel %vm1166, %v2281, -inf
      %v2721 = vsel %vm1165, %v2282, -inf
      %v2722 = vsel %vm1166, %v2283, -inf
      %v2723 = vmax.f32 %v2220, %v2691
      %v2724 = vmax.f32 %v2221, %v2692
      %v2725 = vmax.f32 %v2222, %v2693
      %v2726 = vmax.f32 %v2223, %v2694
      %v2727 = vmax.f32 %v2224, %v2695
      %v2728 = vmax.f32 %v2225, %v2696
      %v2729 = vmax.f32 %v2226, %v2697
      %v2730 = vmax.f32 %v2227, %v2698
      %v2731 = vmax.f32 %v2228, %v2699
      %v2732 = vmax.f32 %v2229, %v2700
      %v2733 = vmax.f32 %v2230, %v2701
      %v2734 = vmax.f32 %v2231, %v2702
      %v2735 = vmax.f32 %v2232, %v2703
      %v2736 = vmax.f32 %v2233, %v2704
      %v2737 = vmax.f32 %v2234, %v2705
      %v2738 = vmax.f32 %v2235, %v2706
      %v2739 = vmax.f32 %v2236, %v2707
      %v2740 = vmax.f32 %v2237, %v2708
      %v2741 = vmax.f32 %v2238, %v2709
      %v2742 = vmax.f32 %v2239, %v2710
      %v2743 = vmax.f32 %v2240, %v2711
      %v2744 = vmax.f32 %v2241, %v2712
      %v2745 = vmax.f32 %v2242, %v2713
      %v2746 = vmax.f32 %v2243, %v2714
      %v2747 = vmax.f32 %v2244, %v2715
      %v2748 = vmax.f32 %v2245, %v2716
      %v2749 = vmax.f32 %v2246, %v2717
      %v2750 = vmax.f32 %v2247, %v2718
      %v2751 = vmax.f32 %v2248, %v2719
      %v2752 = vmax.f32 %v2249, %v2720
      %v2753 = vmax.f32 %v2250, %v2721
      %v2754 = vmax.f32 %v2251, %v2722
      %v2755 = vld [vmem:[%s1748 + $0x2] sm:$0xff]
      %v2756 = vld [vmem:[%s1748 + $0xa] sm:$0xff]
      %v2757 = vld [vmem:[%s1748 + $0x1a] sm:$0xff]
      %v2758 = vld [vmem:[%s1748 + $0x22] sm:$0xff]
      %v2759 = vld [vmem:[%s1748 + $0x32] sm:$0xff]
      %v2760 = vld [vmem:[%s1748 + $0x3a] sm:$0xff]
      %v2761 = vld [vmem:[%s1748 + $0x4a] sm:$0xff]
      %v2762 = vld [vmem:[%s1748 + $0x52] sm:$0xff]
      %v2763 = vld [vmem:[%s1748 + $0x62] sm:$0xff]
      %v2764 = vld [vmem:[%s1748 + $0x6a] sm:$0xff]
      %v2765 = vld [vmem:[%s1748 + $0x7a] sm:$0xff]
      %v2766 = vld [vmem:[%s1748 + $0x82] sm:$0xff]
      %v2767 = vld [vmem:[%s1748 + $0x92] sm:$0xff]
      %v2768 = vld [vmem:[%s1748 + $0x9a] sm:$0xff]
      %v2769 = vld [vmem:[%s1748 + $0xaa] sm:$0xff]
      %v2770 = vld [vmem:[%s1748 + $0xb2] sm:$0xff]
      %v2771 = vld [vmem:[%s1748 + $0xc2] sm:$0xff]
      %v2772 = vld [vmem:[%s1748 + $0xca] sm:$0xff]
      %v2773 = vld [vmem:[%s1748 + $0xda] sm:$0xff]
      %v2774 = vld [vmem:[%s1748 + $0xe2] sm:$0xff]
      %v2775 = vld [vmem:[%s1748 + $0xf2] sm:$0xff]
      %v2776 = vld [vmem:[%s1748 + $0xfa] sm:$0xff]
      %v2777 = vld [vmem:[%s1748 + $0x10a] sm:$0xff]
      %v2778 = vld [vmem:[%s1748 + $0x112] sm:$0xff]
      %v2779 = vld [vmem:[%s1748 + $0x122] sm:$0xff]
      %v2780 = vld [vmem:[%s1748 + $0x12a] sm:$0xff]
      %v2781 = vld [vmem:[%s1748 + $0x13a] sm:$0xff]
      %v2782 = vld [vmem:[%s1748 + $0x142] sm:$0xff]
      %v2783 = vld [vmem:[%s1748 + $0x152] sm:$0xff]
      %v2784 = vld [vmem:[%s1748 + $0x15a] sm:$0xff]
      %v2785 = vld [vmem:[%s1748 + $0x16a] sm:$0xff]
      %v2786 = vld [vmem:[%s1748 + $0x172] sm:$0xff]
      %2788 = vset.pattern.permute.xlu0 4
      %2789 = vperm.xlu0 %2788, %v2755
      %v2790 = vpop.permute.xlu0 %2789
      %2793 = vset.pattern.permute.xlu0 4
      %2794 = vperm.xlu0 %2793, %v2756
      %v2795 = vpop.permute.xlu0 %2794
      %2798 = vset.pattern.permute.xlu0 4
      %2799 = vperm.xlu0 %2798, %v2757
      %v2800 = vpop.permute.xlu0 %2799
      %2803 = vset.pattern.permute.xlu0 4
      %2804 = vperm.xlu0 %2803, %v2758
      %v2805 = vpop.permute.xlu0 %2804
      %2808 = vset.pattern.permute.xlu0 4
      %2809 = vperm.xlu0 %2808, %v2759
      %v2810 = vpop.permute.xlu0 %2809
      %2813 = vset.pattern.permute.xlu0 4
      %2814 = vperm.xlu0 %2813, %v2760
      %v2815 = vpop.permute.xlu0 %2814
      %2818 = vset.pattern.permute.xlu0 4
      %2819 = vperm.xlu0 %2818, %v2761
      %v2820 = vpop.permute.xlu0 %2819
      %2823 = vset.pattern.permute.xlu0 4
      %2824 = vperm.xlu0 %2823, %v2762
      %v2825 = vpop.permute.xlu0 %2824
      %2828 = vset.pattern.permute.xlu0 4
      %2829 = vperm.xlu0 %2828, %v2763
      %v2830 = vpop.permute.xlu0 %2829
      %2833 = vset.pattern.permute.xlu0 4
      %2834 = vperm.xlu0 %2833, %v2764
      %v2835 = vpop.permute.xlu0 %2834
      %2838 = vset.pattern.permute.xlu0 4
      %2839 = vperm.xlu0 %2838, %v2765
      %v2840 = vpop.permute.xlu0 %2839
      %2843 = vset.pattern.permute.xlu0 4
      %2844 = vperm.xlu0 %2843, %v2766
      %v2845 = vpop.permute.xlu0 %2844
      %2848 = vset.pattern.permute.xlu0 4
      %2849 = vperm.xlu0 %2848, %v2767
      %v2850 = vpop.permute.xlu0 %2849
      %2853 = vset.pattern.permute.xlu0 4
      %2854 = vperm.xlu0 %2853, %v2768
      %v2855 = vpop.permute.xlu0 %2854
      %2858 = vset.pattern.permute.xlu0 4
      %2859 = vperm.xlu0 %2858, %v2769
      %v2860 = vpop.permute.xlu0 %2859
      %2863 = vset.pattern.permute.xlu0 4
      %2864 = vperm.xlu0 %2863, %v2770
      %v2865 = vpop.permute.xlu0 %2864
      %2868 = vset.pattern.permute.xlu0 4
      %2869 = vperm.xlu0 %2868, %v2771
      %v2870 = vpop.permute.xlu0 %2869
      %2873 = vset.pattern.permute.xlu0 4
      %2874 = vperm.xlu0 %2873, %v2772
      %v2875 = vpop.permute.xlu0 %2874
      %2878 = vset.pattern.permute.xlu0 4
      %2879 = vperm.xlu0 %2878, %v2773
      %v2880 = vpop.permute.xlu0 %2879
      %2883 = vset.pattern.permute.xlu0 4
      %2884 = vperm.xlu0 %2883, %v2774
      %v2885 = vpop.permute.xlu0 %2884
      %2888 = vset.pattern.permute.xlu0 4
      %2889 = vperm.xlu0 %2888, %v2775
      %v2890 = vpop.permute.xlu0 %2889
      %2893 = vset.pattern.permute.xlu0 4
      %2894 = vperm.xlu0 %2893, %v2776
      %v2895 = vpop.permute.xlu0 %2894
      %2898 = vset.pattern.permute.xlu0 4
      %2899 = vperm.xlu0 %2898, %v2777
      %v2900 = vpop.permute.xlu0 %2899
      %2903 = vset.pattern.permute.xlu0 4
      %2904 = vperm.xlu0 %2903, %v2778
      %v2905 = vpop.permute.xlu0 %2904
      %2908 = vset.pattern.permute.xlu0 4
      %2909 = vperm.xlu0 %2908, %v2779
      %v2910 = vpop.permute.xlu0 %2909
      %2913 = vset.pattern.permute.xlu0 4
      %2914 = vperm.xlu0 %2913, %v2780
      %v2915 = vpop.permute.xlu0 %2914
      %2918 = vset.pattern.permute.xlu0 4
      %2919 = vperm.xlu0 %2918, %v2781
      %v2920 = vpop.permute.xlu0 %2919
      %2923 = vset.pattern.permute.xlu0 4
      %2924 = vperm.xlu0 %2923, %v2782
      %v2925 = vpop.permute.xlu0 %2924
      %2928 = vset.pattern.permute.xlu0 4
      %2929 = vperm.xlu0 %2928, %v2783
      %v2930 = vpop.permute.xlu0 %2929
      %2933 = vset.pattern.permute.xlu0 4
      %2934 = vperm.xlu0 %2933, %v2784
      %v2935 = vpop.permute.xlu0 %2934
      %2938 = vset.pattern.permute.xlu0 4
      %2939 = vperm.xlu0 %2938, %v2785
      %v2940 = vpop.permute.xlu0 %2939
      %2943 = vset.pattern.permute.xlu0 4
      %2944 = vperm.xlu0 %2943, %v2786
      %v2945 = vpop.permute.xlu0 %2944
      %v2947 = vmul.f32 %v2755, %v2790
      %v2948 = vmul.f32 %v2756, %v2795
      %v2949 = vmul.f32 %v2757, %v2800
      %v2950 = vmul.f32 %v2758, %v2805
      %v2951 = vmul.f32 %v2759, %v2810
      %v2952 = vmul.f32 %v2760, %v2815
      %v2953 = vmul.f32 %v2761, %v2820
      %v2954 = vmul.f32 %v2762, %v2825
      %v2955 = vmul.f32 %v2763, %v2830
      %v2956 = vmul.f32 %v2764, %v2835
      %v2957 = vmul.f32 %v2765, %v2840
      %v2958 = vmul.f32 %v2766, %v2845
      %v2959 = vmul.f32 %v2767, %v2850
      %v2960 = vmul.f32 %v2768, %v2855
      %v2961 = vmul.f32 %v2769, %v2860
      %v2962 = vmul.f32 %v2770, %v2865
      %v2963 = vmul.f32 %v2771, %v2870
      %v2964 = vmul.f32 %v2772, %v2875
      %v2965 = vmul.f32 %v2773, %v2880
      %v2966 = vmul.f32 %v2774, %v2885
      %v2967 = vmul.f32 %v2775, %v2890
      %v2968 = vmul.f32 %v2776, %v2895
      %v2969 = vmul.f32 %v2777, %v2900
      %v2970 = vmul.f32 %v2778, %v2905
      %v2971 = vmul.f32 %v2779, %v2910
      %v2972 = vmul.f32 %v2780, %v2915
      %v2973 = vmul.f32 %v2781, %v2920
      %v2974 = vmul.f32 %v2782, %v2925
      %v2975 = vmul.f32 %v2783, %v2930
      %v2976 = vmul.f32 %v2784, %v2935
      %v2977 = vmul.f32 %v2785, %v2940
      %v2978 = vmul.f32 %v2786, %v2945
      %v2979 = vsel %vm461, %v2947, %v2755
      %v2980 = vsel %vm461, %v2948, %v2756
      %v2981 = vsel %vm461, %v2949, %v2757
      %v2982 = vsel %vm461, %v2950, %v2758
      %v2983 = vsel %vm461, %v2951, %v2759
      %v2984 = vsel %vm461, %v2952, %v2760
      %v2985 = vsel %vm461, %v2953, %v2761
      %v2986 = vsel %vm461, %v2954, %v2762
      %v2987 = vsel %vm461, %v2955, %v2763
      %v2988 = vsel %vm461, %v2956, %v2764
      %v2989 = vsel %vm461, %v2957, %v2765
      %v2990 = vsel %vm461, %v2958, %v2766
      %v2991 = vsel %vm461, %v2959, %v2767
      %v2992 = vsel %vm461, %v2960, %v2768
      %v2993 = vsel %vm461, %v2961, %v2769
      %v2994 = vsel %vm461, %v2962, %v2770
      %v2995 = vsel %vm461, %v2963, %v2771
      %v2996 = vsel %vm461, %v2964, %v2772
      %v2997 = vsel %vm461, %v2965, %v2773
      %v2998 = vsel %vm461, %v2966, %v2774
      %v2999 = vsel %vm461, %v2967, %v2775
      %v3000 = vsel %vm461, %v2968, %v2776
      %v3001 = vsel %vm461, %v2969, %v2777
      %v3002 = vsel %vm461, %v2970, %v2778
      %v3003 = vsel %vm461, %v2971, %v2779
      %v3004 = vsel %vm461, %v2972, %v2780
      %v3005 = vsel %vm461, %v2973, %v2781
      %v3006 = vsel %vm461, %v2974, %v2782
      %v3007 = vsel %vm461, %v2975, %v2783
      %v3008 = vsel %vm461, %v2976, %v2784
      %v3009 = vsel %vm461, %v2977, %v2785
      %v3010 = vsel %vm461, %v2978, %v2786
      %v3012 = vsel %vm794, %v221, 0
      %v3015 = vsel %vm794, %v222, 0
      %v3018 = vsel %vm794, %v2979, 0
      %v3021 = vsel %vm794, %v2980, 0
      %v3024 = vsel %vm794, %v2981, 0
      %v3027 = vsel %vm794, %v2982, 0
      %v3030 = vsel %vm794, %v2983, 0
      %v3033 = vsel %vm794, %v2984, 0
      %v3036 = vsel %vm794, %v2985, 0
      %v3039 = vsel %vm794, %v2986, 0
      %v3042 = vsel %vm794, %v2987, 0
      %v3045 = vsel %vm794, %v2988, 0
      %v3048 = vsel %vm794, %v2989, 0
      %v3051 = vsel %vm794, %v2990, 0
      %v3054 = vsel %vm794, %v2991, 0
      %v3057 = vsel %vm794, %v2992, 0
      %v3060 = vsel %vm794, %v2993, 0
      %v3063 = vsel %vm794, %v2994, 0
      %v3066 = vsel %vm794, %v2995, 0
      %v3069 = vsel %vm794, %v2996, 0
      %v3072 = vsel %vm794, %v2997, 0
      %v3075 = vsel %vm794, %v2998, 0
      %v3078 = vsel %vm794, %v2999, 0
      %v3081 = vsel %vm794, %v3000, 0
      %v3084 = vsel %vm794, %v3001, 0
      %v3087 = vsel %vm794, %v3002, 0
      %v3090 = vsel %vm794, %v3003, 0
      %v3093 = vsel %vm794, %v3004, 0
      %v3096 = vsel %vm794, %v3005, 0
      %v3099 = vsel %vm794, %v3006, 0
      %v3102 = vsel %vm794, %v3007, 0
      %v3105 = vsel %vm794, %v3008, 0
      %v3108 = vsel %vm794, %v3009, 0
      %v3111 = vsel %vm794, %v3010, 0
      %3113 = vmatprep.subr.mxu0 0.0
      %3114 = vmatpush1.xpose.msra.mxu0 %v3018
      %3115 = vmatprep.subr.mxu0 0.0
      %3116 = vmatpush1.xpose.msra.mxu0 %v3021
      %3117 = vmatprep.subr.mxu0 0.0
      %3118 = vmatpush1.xpose.msra.mxu0 %v3024
      %3119 = vmatprep.subr.mxu0 0.0
      %3120 = vmatpush1.xpose.msra.mxu0 %v3027
      %3121 = vmatprep.subr.mxu0 0.0
      %3122 = vmatpush1.xpose.msra.mxu0 %v3030
      %3123 = vmatprep.subr.mxu0 0.0
      %3124 = vmatpush1.xpose.msra.mxu0 %v3033
      %3125 = vmatprep.subr.mxu0 0.0
      %3126 = vmatpush1.xpose.msra.mxu0 %v3036
      %3127 = vmatprep.subr.mxu0 0.0
      %3128 = vmatpush1.xpose.msra.mxu0 %v3039
      %3129 = vmatprep.subr.mxu0 0.0
      %3130 = vmatpush1.xpose.msra.mxu0 %v3042
      %3131 = vmatprep.subr.mxu0 0.0
      %3132 = vmatpush1.xpose.msra.mxu0 %v3045
      %3133 = vmatprep.subr.mxu0 0.0
      %3134 = vmatpush1.xpose.msra.mxu0 %v3048
      %3135 = vmatprep.subr.mxu0 0.0
      %3136 = vmatpush1.xpose.msra.mxu0 %v3051
      %3137 = vmatprep.subr.mxu0 0.0
      %3138 = vmatpush1.xpose.msra.mxu0 %v3054
      %3139 = vmatprep.subr.mxu0 0.0
      %3140 = vmatpush1.xpose.msra.mxu0 %v3057
      %3141 = vmatprep.subr.mxu0 0.0
      %3142 = vmatpush1.xpose.msra.mxu0 %v3060
      %3143 = vmatprep.subr.mxu0 0.0
      %3144 = vmatpush1.xpose.msra.mxu0 %v3063
      %3145 = vmatprep.subr.mxu0 0.0
      %3146 = vmatpush1.xpose.msra.mxu0 %v3066
      %3147 = vmatprep.subr.mxu0 0.0
      %3148 = vmatpush1.xpose.msra.mxu0 %v3069
      %3149 = vmatprep.subr.mxu0 0.0
      %3150 = vmatpush1.xpose.msra.mxu0 %v3072
      %3151 = vmatprep.subr.mxu0 0.0
      %3152 = vmatpush1.xpose.msra.mxu0 %v3075
      %3153 = vmatprep.subr.mxu0 0.0
      %3154 = vmatpush1.xpose.msra.mxu0 %v3078
      %3155 = vmatprep.subr.mxu0 0.0
      %3156 = vmatpush1.xpose.msra.mxu0 %v3081
      %3157 = vmatprep.subr.mxu0 0.0
      %3158 = vmatpush1.xpose.msra.mxu0 %v3084
      %3159 = vmatprep.subr.mxu0 0.0
      %3160 = vmatpush1.xpose.msra.mxu0 %v3087
      %3161 = vmatprep.subr.mxu0 0.0
      %3162 = vmatpush1.xpose.msra.mxu0 %v3090
      %3163 = vmatprep.subr.mxu0 0.0
      %3164 = vmatpush1.xpose.msra.mxu0 %v3093
      %3165 = vmatprep.subr.mxu0 0.0
      %3166 = vmatpush1.xpose.msra.mxu0 %v3096
      %3167 = vmatprep.subr.mxu0 0.0
      %3168 = vmatpush1.xpose.msra.mxu0 %v3099
      %3169 = vmatprep.subr.mxu0 0.0
      %3170 = vmatpush1.xpose.msra.mxu0 %v3102
      %3171 = vmatprep.subr.mxu0 0.0
      %3172 = vmatpush1.xpose.msra.mxu0 %v3105
      %3173 = vmatprep.subr.mxu0 0.0
      %3174 = vmatpush1.xpose.msra.mxu0 %v3108
      %3175 = vmatprep.subr.mxu0 0.0
      %3176 = vmatpush1.xpose.msra.mxu0 %v3111
      %3177 = vmatprep.mubr.f32.mxu0 0.0
      %3178 = vmatmul.mubr.f32.gmra.mrb[0].mxu0 %v3012
      %v3179 = vpop.f32.mrb[0].mxu0
      %v3180 = vadd.f32 0.0, %v3179
      %v3181 = vpop.f32.mrb[0].mxu0
      %v3182 = vadd.f32 0.0, %v3181
      %3183 = vmatprep.mubr.f32.mxu0 0.0
      %3184 = vmatmul.mubr.f32.gmra.mrb[0].mxu0 %v3015
      %v3185 = vpop.f32.mrb[0].mxu0
      %v3186 = vadd.f32 0.0, %v3185
      %v3187 = vpop.f32.mrb[0].mxu0
      %v3188 = vadd.f32 0.0, %v3187
      %3189 = vdwg.mxu0
      %v3190 = vadd.f32 %v2687, %v3180
      %v3191 = vadd.f32 %v2688, %v3182
      %v3192 = vadd.f32 %v2689, %v3186
      %v3193 = vadd.f32 %v2690, %v3188
      %v3194 = vsel %vm1682, %v2755, -inf
      %v3195 = vsel %vm1683, %v2756, -inf
      %v3196 = vsel %vm1682, %v2757, -inf
      %v3197 = vsel %vm1683, %v2758, -inf
      %v3198 = vsel %vm1682, %v2759, -inf
      %v3199 = vsel %vm1683, %v2760, -inf
      %v3200 = vsel %vm1682, %v2761, -inf
      %v3201 = vsel %vm1683, %v2762, -inf
      %v3202 = vsel %vm1682, %v2763, -inf
      %v3203 = vsel %vm1683, %v2764, -inf
      %v3204 = vsel %vm1682, %v2765, -inf
      %v3205 = vsel %vm1683, %v2766, -inf
      %v3206 = vsel %vm1682, %v2767, -inf
      %v3207 = vsel %vm1683, %v2768, -inf
      %v3208 = vsel %vm1682, %v2769, -inf
      %v3209 = vsel %vm1683, %v2770, -inf
      %v3210 = vsel %vm1682, %v2771, -inf
      %v3211 = vsel %vm1683, %v2772, -inf
      %v3212 = vsel %vm1682, %v2773, -inf
      %v3213 = vsel %vm1683, %v2774, -inf
      %v3214 = vsel %vm1682, %v2775, -inf
      %v3215 = vsel %vm1683, %v2776, -inf
      %v3216 = vsel %vm1682, %v2777, -inf
      %v3217 = vsel %vm1683, %v2778, -inf
      %v3218 = vsel %vm1682, %v2779, -inf
      %v3219 = vsel %vm1683, %v2780, -inf
      %v3220 = vsel %vm1682, %v2781, -inf
      %v3221 = vsel %vm1683, %v2782, -inf
      %v3222 = vsel %vm1682, %v2783, -inf
      %v3223 = vsel %vm1683, %v2784, -inf
      %v3224 = vsel %vm1682, %v2785, -inf
      %v3225 = vsel %vm1683, %v2786, -inf
      %v3226 = vmax.f32 %v2723, %v3194
      %v3227 = vmax.f32 %v2724, %v3195
      %v3228 = vmax.f32 %v2725, %v3196
      %v3229 = vmax.f32 %v2726, %v3197
      %v3230 = vmax.f32 %v2727, %v3198
      %v3231 = vmax.f32 %v2728, %v3199
      %v3232 = vmax.f32 %v2729, %v3200
      %v3233 = vmax.f32 %v2730, %v3201
      %v3234 = vmax.f32 %v2731, %v3202
      %v3235 = vmax.f32 %v2732, %v3203
      %v3236 = vmax.f32 %v2733, %v3204
      %v3237 = vmax.f32 %v2734, %v3205
      %v3238 = vmax.f32 %v2735, %v3206
      %v3239 = vmax.f32 %v2736, %v3207
      %v3240 = vmax.f32 %v2737, %v3208
      %v3241 = vmax.f32 %v2738, %v3209
      %v3242 = vmax.f32 %v2739, %v3210
      %v3243 = vmax.f32 %v2740, %v3211
      %v3244 = vmax.f32 %v2741, %v3212
      %v3245 = vmax.f32 %v2742, %v3213
      %v3246 = vmax.f32 %v2743, %v3214
      %v3247 = vmax.f32 %v2744, %v3215
      %v3248 = vmax.f32 %v2745, %v3216
      %v3249 = vmax.f32 %v2746, %v3217
      %v3250 = vmax.f32 %v2747, %v3218
      %v3251 = vmax.f32 %v2748, %v3219
      %v3252 = vmax.f32 %v2749, %v3220
      %v3253 = vmax.f32 %v2750, %v3221
      %v3254 = vmax.f32 %v2751, %v3222
      %v3255 = vmax.f32 %v2752, %v3223
      %v3256 = vmax.f32 %v2753, %v3224
      %v3257 = vmax.f32 %v2754, %v3225
      %s3258 = scalar_lea.vmem %s200, 48
      %v3259 = vld [vmem:[%s3258] sm:$0xff]
      %v3260 = vld [vmem:[%s3258 + $0x8] sm:$0xff]
      %v3261 = vld [vmem:[%s3258 + $0x18] sm:$0xff]
      %v3262 = vld [vmem:[%s3258 + $0x20] sm:$0xff]
      %v3263 = vld [vmem:[%s3258 + $0x30] sm:$0xff]
      %v3264 = vld [vmem:[%s3258 + $0x38] sm:$0xff]
      %v3265 = vld [vmem:[%s3258 + $0x48] sm:$0xff]
      %v3266 = vld [vmem:[%s3258 + $0x50] sm:$0xff]
      %v3267 = vld [vmem:[%s3258 + $0x60] sm:$0xff]
      %v3268 = vld [vmem:[%s3258 + $0x68] sm:$0xff]
      %v3269 = vld [vmem:[%s3258 + $0x78] sm:$0xff]
      %v3270 = vld [vmem:[%s3258 + $0x80] sm:$0xff]
      %v3271 = vld [vmem:[%s3258 + $0x90] sm:$0xff]
      %v3272 = vld [vmem:[%s3258 + $0x98] sm:$0xff]
      %v3273 = vld [vmem:[%s3258 + $0xa8] sm:$0xff]
      %v3274 = vld [vmem:[%s3258 + $0xb0] sm:$0xff]
      %v3275 = vld [vmem:[%s3258 + $0xc0] sm:$0xff]
      %v3276 = vld [vmem:[%s3258 + $0xc8] sm:$0xff]
      %v3277 = vld [vmem:[%s3258 + $0xd8] sm:$0xff]
      %v3278 = vld [vmem:[%s3258 + $0xe0] sm:$0xff]
      %v3279 = vld [vmem:[%s3258 + $0xf0] sm:$0xff]
      %v3280 = vld [vmem:[%s3258 + $0xf8] sm:$0xff]
      %v3281 = vld [vmem:[%s3258 + $0x108] sm:$0xff]
      %v3282 = vld [vmem:[%s3258 + $0x110] sm:$0xff]
      %v3283 = vld [vmem:[%s3258 + $0x120] sm:$0xff]
      %v3284 = vld [vmem:[%s3258 + $0x128] sm:$0xff]
      %v3285 = vld [vmem:[%s3258 + $0x138] sm:$0xff]
      %v3286 = vld [vmem:[%s3258 + $0x140] sm:$0xff]
      %v3287 = vld [vmem:[%s3258 + $0x150] sm:$0xff]
      %v3288 = vld [vmem:[%s3258 + $0x158] sm:$0xff]
      %v3289 = vld [vmem:[%s3258 + $0x168] sm:$0xff]
      %v3290 = vld [vmem:[%s3258 + $0x170] sm:$0xff]
      %3292 = vset.pattern.permute.xlu0 4
      %3293 = vperm.xlu0 %3292, %v3259
      %v3294 = vpop.permute.xlu0 %3293
      %3297 = vset.pattern.permute.xlu0 4
      %3298 = vperm.xlu0 %3297, %v3260
      %v3299 = vpop.permute.xlu0 %3298
      %3302 = vset.pattern.permute.xlu0 4
      %3303 = vperm.xlu0 %3302, %v3261
      %v3304 = vpop.permute.xlu0 %3303
      %3307 = vset.pattern.permute.xlu0 4
      %3308 = vperm.xlu0 %3307, %v3262
      %v3309 = vpop.permute.xlu0 %3308
      %3312 = vset.pattern.permute.xlu0 4
      %3313 = vperm.xlu0 %3312, %v3263
      %v3314 = vpop.permute.xlu0 %3313
      %3317 = vset.pattern.permute.xlu0 4
      %3318 = vperm.xlu0 %3317, %v3264
      %v3319 = vpop.permute.xlu0 %3318
      %3322 = vset.pattern.permute.xlu0 4
      %3323 = vperm.xlu0 %3322, %v3265
      %v3324 = vpop.permute.xlu0 %3323
      %3327 = vset.pattern.permute.xlu0 4
      %3328 = vperm.xlu0 %3327, %v3266
      %v3329 = vpop.permute.xlu0 %3328
      %3332 = vset.pattern.permute.xlu0 4
      %3333 = vperm.xlu0 %3332, %v3267
      %v3334 = vpop.permute.xlu0 %3333
      %3337 = vset.pattern.permute.xlu0 4
      %3338 = vperm.xlu0 %3337, %v3268
      %v3339 = vpop.permute.xlu0 %3338
      %3342 = vset.pattern.permute.xlu0 4
      %3343 = vperm.xlu0 %3342, %v3269
      %v3344 = vpop.permute.xlu0 %3343
      %3347 = vset.pattern.permute.xlu0 4
      %3348 = vperm.xlu0 %3347, %v3270
      %v3349 = vpop.permute.xlu0 %3348
      %3352 = vset.pattern.permute.xlu0 4
      %3353 = vperm.xlu0 %3352, %v3271
      %v3354 = vpop.permute.xlu0 %3353
      %3357 = vset.pattern.permute.xlu0 4
      %3358 = vperm.xlu0 %3357, %v3272
      %v3359 = vpop.permute.xlu0 %3358
      %3362 = vset.pattern.permute.xlu0 4
      %3363 = vperm.xlu0 %3362, %v3273
      %v3364 = vpop.permute.xlu0 %3363
      %3367 = vset.pattern.permute.xlu0 4
      %3368 = vperm.xlu0 %3367, %v3274
      %v3369 = vpop.permute.xlu0 %3368
      %3372 = vset.pattern.permute.xlu0 4
      %3373 = vperm.xlu0 %3372, %v3275
      %v3374 = vpop.permute.xlu0 %3373
      %3377 = vset.pattern.permute.xlu0 4
      %3378 = vperm.xlu0 %3377, %v3276
      %v3379 = vpop.permute.xlu0 %3378
      %3382 = vset.pattern.permute.xlu0 4
      %3383 = vperm.xlu0 %3382, %v3277
      %v3384 = vpop.permute.xlu0 %3383
      %3387 = vset.pattern.permute.xlu0 4
      %3388 = vperm.xlu0 %3387, %v3278
      %v3389 = vpop.permute.xlu0 %3388
      %3392 = vset.pattern.permute.xlu0 4
      %3393 = vperm.xlu0 %3392, %v3279
      %v3394 = vpop.permute.xlu0 %3393
      %3397 = vset.pattern.permute.xlu0 4
      %3398 = vperm.xlu0 %3397, %v3280
      %v3399 = vpop.permute.xlu0 %3398
      %3402 = vset.pattern.permute.xlu0 4
      %3403 = vperm.xlu0 %3402, %v3281
      %v3404 = vpop.permute.xlu0 %3403
      %3407 = vset.pattern.permute.xlu0 4
      %3408 = vperm.xlu0 %3407, %v3282
      %v3409 = vpop.permute.xlu0 %3408
      %3412 = vset.pattern.permute.xlu0 4
      %3413 = vperm.xlu0 %3412, %v3283
      %v3414 = vpop.permute.xlu0 %3413
      %3417 = vset.pattern.permute.xlu0 4
      %3418 = vperm.xlu0 %3417, %v3284
      %v3419 = vpop.permute.xlu0 %3418
      %3422 = vset.pattern.permute.xlu0 4
      %3423 = vperm.xlu0 %3422, %v3285
      %v3424 = vpop.permute.xlu0 %3423
      %3427 = vset.pattern.permute.xlu0 4
      %3428 = vperm.xlu0 %3427, %v3286
      %v3429 = vpop.permute.xlu0 %3428
      %3432 = vset.pattern.permute.xlu0 4
      %3433 = vperm.xlu0 %3432, %v3287
      %v3434 = vpop.permute.xlu0 %3433
      %3437 = vset.pattern.permute.xlu0 4
      %3438 = vperm.xlu0 %3437, %v3288
      %v3439 = vpop.permute.xlu0 %3438
      %3442 = vset.pattern.permute.xlu0 4
      %3443 = vperm.xlu0 %3442, %v3289
      %v3444 = vpop.permute.xlu0 %3443
      %3447 = vset.pattern.permute.xlu0 4
      %3448 = vperm.xlu0 %3447, %v3290
      %v3449 = vpop.permute.xlu0 %3448
      %v3451 = vmul.f32 %v3259, %v3294
      %v3452 = vmul.f32 %v3260, %v3299
      %v3453 = vmul.f32 %v3261, %v3304
      %v3454 = vmul.f32 %v3262, %v3309
      %v3455 = vmul.f32 %v3263, %v3314
      %v3456 = vmul.f32 %v3264, %v3319
      %v3457 = vmul.f32 %v3265, %v3324
      %v3458 = vmul.f32 %v3266, %v3329
      %v3459 = vmul.f32 %v3267, %v3334
      %v3460 = vmul.f32 %v3268, %v3339
      %v3461 = vmul.f32 %v3269, %v3344
      %v3462 = vmul.f32 %v3270, %v3349
      %v3463 = vmul.f32 %v3271, %v3354
      %v3464 = vmul.f32 %v3272, %v3359
      %v3465 = vmul.f32 %v3273, %v3364
      %v3466 = vmul.f32 %v3274, %v3369
      %v3467 = vmul.f32 %v3275, %v3374
      %v3468 = vmul.f32 %v3276, %v3379
      %v3469 = vmul.f32 %v3277, %v3384
      %v3470 = vmul.f32 %v3278, %v3389
      %v3471 = vmul.f32 %v3279, %v3394
      %v3472 = vmul.f32 %v3280, %v3399
      %v3473 = vmul.f32 %v3281, %v3404
      %v3474 = vmul.f32 %v3282, %v3409
      %v3475 = vmul.f32 %v3283, %v3414
      %v3476 = vmul.f32 %v3284, %v3419
      %v3477 = vmul.f32 %v3285, %v3424
      %v3478 = vmul.f32 %v3286, %v3429
      %v3479 = vmul.f32 %v3287, %v3434
      %v3480 = vmul.f32 %v3288, %v3439
      %v3481 = vmul.f32 %v3289, %v3444
      %v3482 = vmul.f32 %v3290, %v3449
      %v3483 = vsel %vm461, %v3451, %v3259
      %v3484 = vsel %vm461, %v3452, %v3260
      %v3485 = vsel %vm461, %v3453, %v3261
      %v3486 = vsel %vm461, %v3454, %v3262
      %v3487 = vsel %vm461, %v3455, %v3263
      %v3488 = vsel %vm461, %v3456, %v3264
      %v3489 = vsel %vm461, %v3457, %v3265
      %v3490 = vsel %vm461, %v3458, %v3266
      %v3491 = vsel %vm461, %v3459, %v3267
      %v3492 = vsel %vm461, %v3460, %v3268
      %v3493 = vsel %vm461, %v3461, %v3269
      %v3494 = vsel %vm461, %v3462, %v3270
      %v3495 = vsel %vm461, %v3463, %v3271
      %v3496 = vsel %vm461, %v3464, %v3272
      %v3497 = vsel %vm461, %v3465, %v3273
      %v3498 = vsel %vm461, %v3466, %v3274
      %v3499 = vsel %vm461, %v3467, %v3275
      %v3500 = vsel %vm461, %v3468, %v3276
      %v3501 = vsel %vm461, %v3469, %v3277
      %v3502 = vsel %vm461, %v3470, %v3278
      %v3503 = vsel %vm461, %v3471, %v3279
      %v3504 = vsel %vm461, %v3472, %v3280
      %v3505 = vsel %vm461, %v3473, %v3281
      %v3506 = vsel %vm461, %v3474, %v3282
      %v3507 = vsel %vm461, %v3475, %v3283
      %v3508 = vsel %vm461, %v3476, %v3284
      %v3509 = vsel %vm461, %v3477, %v3285
      %v3510 = vsel %vm461, %v3478, %v3286
      %v3511 = vsel %vm461, %v3479, %v3287
      %v3512 = vsel %vm461, %v3480, %v3288
      %v3513 = vsel %vm461, %v3481, %v3289
      %v3514 = vsel %vm461, %v3482, %v3290
      %v3516 = vsel %vm794, %v223, 0
      %v3519 = vsel %vm794, %v224, 0
      %v3522 = vsel %vm794, %v3483, 0
      %v3525 = vsel %vm794, %v3484, 0
      %v3528 = vsel %vm794, %v3485, 0
      %v3531 = vsel %vm794, %v3486, 0
      %v3534 = vsel %vm794, %v3487, 0
      %v3537 = vsel %vm794, %v3488, 0
      %v3540 = vsel %vm794, %v3489, 0
      %v3543 = vsel %vm794, %v3490, 0
      %v3546 = vsel %vm794, %v3491, 0
      %v3549 = vsel %vm794, %v3492, 0
      %v3552 = vsel %vm794, %v3493, 0
      %v3555 = vsel %vm794, %v3494, 0
      %v3558 = vsel %vm794, %v3495, 0
      %v3561 = vsel %vm794, %v3496, 0
      %v3564 = vsel %vm794, %v3497, 0
      %v3567 = vsel %vm794, %v3498, 0
      %v3570 = vsel %vm794, %v3499, 0
      %v3573 = vsel %vm794, %v3500, 0
      %v3576 = vsel %vm794, %v3501, 0
      %v3579 = vsel %vm794, %v3502, 0
      %v3582 = vsel %vm794, %v3503, 0
      %v3585 = vsel %vm794, %v3504, 0
      %v3588 = vsel %vm794, %v3505, 0
      %v3591 = vsel %vm794, %v3506, 0
      %v3594 = vsel %vm794, %v3507, 0
      %v3597 = vsel %vm794, %v3508, 0
      %v3600 = vsel %vm794, %v3509, 0
      %v3603 = vsel %vm794, %v3510, 0
      %v3606 = vsel %vm794, %v3511, 0
      %v3609 = vsel %vm794, %v3512, 0
      %v3612 = vsel %vm794, %v3513, 0
      %v3615 = vsel %vm794, %v3514, 0
      %3617 = vmatprep.subr.mxu0 0.0
      %3618 = vmatpush1.xpose.msra.mxu0 %v3522
      %3619 = vmatprep.subr.mxu0 0.0
      %3620 = vmatpush1.xpose.msra.mxu0 %v3525
      %3621 = vmatprep.subr.mxu0 0.0
      %3622 = vmatpush1.xpose.msra.mxu0 %v3528
      %3623 = vmatprep.subr.mxu0 0.0
      %3624 = vmatpush1.xpose.msra.mxu0 %v3531
      %3625 = vmatprep.subr.mxu0 0.0
      %3626 = vmatpush1.xpose.msra.mxu0 %v3534
      %3627 = vmatprep.subr.mxu0 0.0
      %3628 = vmatpush1.xpose.msra.mxu0 %v3537
      %3629 = vmatprep.subr.mxu0 0.0
      %3630 = vmatpush1.xpose.msra.mxu0 %v3540
      %3631 = vmatprep.subr.mxu0 0.0
      %3632 = vmatpush1.xpose.msra.mxu0 %v3543
      %3633 = vmatprep.subr.mxu0 0.0
      %3634 = vmatpush1.xpose.msra.mxu0 %v3546
      %3635 = vmatprep.subr.mxu0 0.0
      %3636 = vmatpush1.xpose.msra.mxu0 %v3549
      %3637 = vmatprep.subr.mxu0 0.0
      %3638 = vmatpush1.xpose.msra.mxu0 %v3552
      %3639 = vmatprep.subr.mxu0 0.0
      %3640 = vmatpush1.xpose.msra.mxu0 %v3555
      %3641 = vmatprep.subr.mxu0 0.0
      %3642 = vmatpush1.xpose.msra.mxu0 %v3558
      %3643 = vmatprep.subr.mxu0 0.0
      %3644 = vmatpush1.xpose.msra.mxu0 %v3561
      %3645 = vmatprep.subr.mxu0 0.0
      %3646 = vmatpush1.xpose.msra.mxu0 %v3564
      %3647 = vmatprep.subr.mxu0 0.0
      %3648 = vmatpush1.xpose.msra.mxu0 %v3567
      %3649 = vmatprep.subr.mxu0 0.0
      %3650 = vmatpush1.xpose.msra.mxu0 %v3570
      %3651 = vmatprep.subr.mxu0 0.0
      %3652 = vmatpush1.xpose.msra.mxu0 %v3573
      %3653 = vmatprep.subr.mxu0 0.0
      %3654 = vmatpush1.xpose.msra.mxu0 %v3576
      %3655 = vmatprep.subr.mxu0 0.0
      %3656 = vmatpush1.xpose.msra.mxu0 %v3579
      %3657 = vmatprep.subr.mxu0 0.0
      %3658 = vmatpush1.xpose.msra.mxu0 %v3582
      %3659 = vmatprep.subr.mxu0 0.0
      %3660 = vmatpush1.xpose.msra.mxu0 %v3585
      %3661 = vmatprep.subr.mxu0 0.0
      %3662 = vmatpush1.xpose.msra.mxu0 %v3588
      %3663 = vmatprep.subr.mxu0 0.0
      %3664 = vmatpush1.xpose.msra.mxu0 %v3591
      %3665 = vmatprep.subr.mxu0 0.0
      %3666 = vmatpush1.xpose.msra.mxu0 %v3594
      %3667 = vmatprep.subr.mxu0 0.0
      %3668 = vmatpush1.xpose.msra.mxu0 %v3597
      %3669 = vmatprep.subr.mxu0 0.0
      %3670 = vmatpush1.xpose.msra.mxu0 %v3600
      %3671 = vmatprep.subr.mxu0 0.0
      %3672 = vmatpush1.xpose.msra.mxu0 %v3603
      %3673 = vmatprep.subr.mxu0 0.0
      %3674 = vmatpush1.xpose.msra.mxu0 %v3606
      %3675 = vmatprep.subr.mxu0 0.0
      %3676 = vmatpush1.xpose.msra.mxu0 %v3609
      %3677 = vmatprep.subr.mxu0 0.0
      %3678 = vmatpush1.xpose.msra.mxu0 %v3612
      %3679 = vmatprep.subr.mxu0 0.0
      %3680 = vmatpush1.xpose.msra.mxu0 %v3615
      %3681 = vmatprep.mubr.f32.mxu0 0.0
      %3682 = vmatmul.mubr.f32.gmra.mrb[0].mxu0 %v3516
      %v3683 = vpop.f32.mrb[0].mxu0
      %v3684 = vadd.f32 0.0, %v3683
      %v3685 = vpop.f32.mrb[0].mxu0
      %v3686 = vadd.f32 0.0, %v3685
      %3687 = vmatprep.mubr.f32.mxu0 0.0
      %3688 = vmatmul.mubr.f32.gmra.mrb[0].mxu0 %v3519
      %v3689 = vpop.f32.mrb[0].mxu0
      %v3690 = vadd.f32 0.0, %v3689
      %v3691 = vpop.f32.mrb[0].mxu0
      %v3692 = vadd.f32 0.0, %v3691
      %3693 = vdwg.mxu0
      %v3694 = vadd.f32 %v3190, %v3684
      %v3695 = vadd.f32 %v3191, %v3686
      %v3696 = vadd.f32 %v3192, %v3690
      %v3697 = vadd.f32 %v3193, %v3692
      %v3698 = vsel %vm504, %v3259, -inf
      %v3699 = vsel %vm505, %v3260, -inf
      %v3700 = vsel %vm504, %v3261, -inf
      %v3701 = vsel %vm505, %v3262, -inf
      %v3702 = vsel %vm504, %v3263, -inf
      %v3703 = vsel %vm505, %v3264, -inf
      %v3704 = vsel %vm504, %v3265, -inf
      %v3705 = vsel %vm505, %v3266, -inf
      %v3706 = vsel %vm504, %v3267, -inf
      %v3707 = vsel %vm505, %v3268, -inf
      %v3708 = vsel %vm504, %v3269, -inf
      %v3709 = vsel %vm505, %v3270, -inf
      %v3710 = vsel %vm504, %v3271, -inf
      %v3711 = vsel %vm505, %v3272, -inf
      %v3712 = vsel %vm504, %v3273, -inf
      %v3713 = vsel %vm505, %v3274, -inf
      %v3714 = vsel %vm504, %v3275, -inf
      %v3715 = vsel %vm505, %v3276, -inf
      %v3716 = vsel %vm504, %v3277, -inf
      %v3717 = vsel %vm505, %v3278, -inf
      %v3718 = vsel %vm504, %v3279, -inf
      %v3719 = vsel %vm505, %v3280, -inf
      %v3720 = vsel %vm504, %v3281, -inf
      %v3721 = vsel %vm505, %v3282, -inf
      %v3722 = vsel %vm504, %v3283, -inf
      %v3723 = vsel %vm505, %v3284, -inf
      %v3724 = vsel %vm504, %v3285, -inf
      %v3725 = vsel %vm505, %v3286, -inf
      %v3726 = vsel %vm504, %v3287, -inf
      %v3727 = vsel %vm505, %v3288, -inf
      %v3728 = vsel %vm502, %v3289, -inf
      %v3729 = vsel %vm503, %v3290, -inf
      %v3730 = vmax.f32 %v3226, %v3698
      %v3731 = vmax.f32 %v3227, %v3699
      %v3732 = vmax.f32 %v3228, %v3700
      %v3733 = vmax.f32 %v3229, %v3701
      %v3734 = vmax.f32 %v3230, %v3702
      %v3735 = vmax.f32 %v3231, %v3703
      %v3736 = vmax.f32 %v3232, %v3704
      %v3737 = vmax.f32 %v3233, %v3705
      %v3738 = vmax.f32 %v3234, %v3706
      %v3739 = vmax.f32 %v3235, %v3707
      %v3740 = vmax.f32 %v3236, %v3708
      %v3741 = vmax.f32 %v3237, %v3709
      %v3742 = vmax.f32 %v3238, %v3710
      %v3743 = vmax.f32 %v3239, %v3711
      %v3744 = vmax.f32 %v3240, %v3712
      %v3745 = vmax.f32 %v3241, %v3713
      %v3746 = vmax.f32 %v3242, %v3714
      %v3747 = vmax.f32 %v3243, %v3715
      %v3748 = vmax.f32 %v3244, %v3716
      %v3749 = vmax.f32 %v3245, %v3717
      %v3750 = vmax.f32 %v3246, %v3718
      %v3751 = vmax.f32 %v3247, %v3719
      %v3752 = vmax.f32 %v3248, %v3720
      %v3753 = vmax.f32 %v3249, %v3721
      %v3754 = vmax.f32 %v3250, %v3722
      %v3755 = vmax.f32 %v3251, %v3723
      %v3756 = vmax.f32 %v3252, %v3724
      %v3757 = vmax.f32 %v3253, %v3725
      %v3758 = vmax.f32 %v3254, %v3726
      %v3759 = vmax.f32 %v3255, %v3727
      %v3760 = vmax.f32 %v3256, %v3728
      %v3761 = vmax.f32 %v3257, %v3729
      %v3762 = vld [vmem:[%s3258 + $0x1] sm:$0xff]
      %v3763 = vld [vmem:[%s3258 + $0x9] sm:$0xff]
      %v3764 = vld [vmem:[%s3258 + $0x19] sm:$0xff]
      %v3765 = vld [vmem:[%s3258 + $0x21] sm:$0xff]
      %v3766 = vld [vmem:[%s3258 + $0x31] sm:$0xff]
      %v3767 = vld [vmem:[%s3258 + $0x39] sm:$0xff]
      %v3768 = vld [vmem:[%s3258 + $0x49] sm:$0xff]
      %v3769 = vld [vmem:[%s3258 + $0x51] sm:$0xff]
      %v3770 = vld [vmem:[%s3258 + $0x61] sm:$0xff]
      %v3771 = vld [vmem:[%s3258 + $0x69] sm:$0xff]
      %v3772 = vld [vmem:[%s3258 + $0x79] sm:$0xff]
      %v3773 = vld [vmem:[%s3258 + $0x81] sm:$0xff]
      %v3774 = vld [vmem:[%s3258 + $0x91] sm:$0xff]
      %v3775 = vld [vmem:[%s3258 + $0x99] sm:$0xff]
      %v3776 = vld [vmem:[%s3258 + $0xa9] sm:$0xff]
      %v3777 = vld [vmem:[%s3258 + $0xb1] sm:$0xff]
      %v3778 = vld [vmem:[%s3258 + $0xc1] sm:$0xff]
      %v3779 = vld [vmem:[%s3258 + $0xc9] sm:$0xff]
      %v3780 = vld [vmem:[%s3258 + $0xd9] sm:$0xff]
      %v3781 = vld [vmem:[%s3258 + $0xe1] sm:$0xff]
      %v3782 = vld [vmem:[%s3258 + $0xf1] sm:$0xff]
      %v3783 = vld [vmem:[%s3258 + $0xf9] sm:$0xff]
      %v3784 = vld [vmem:[%s3258 + $0x109] sm:$0xff]
      %v3785 = vld [vmem:[%s3258 + $0x111] sm:$0xff]
      %v3786 = vld [vmem:[%s3258 + $0x121] sm:$0xff]
      %v3787 = vld [vmem:[%s3258 + $0x129] sm:$0xff]
      %v3788 = vld [vmem:[%s3258 + $0x139] sm:$0xff]
      %v3789 = vld [vmem:[%s3258 + $0x141] sm:$0xff]
      %v3790 = vld [vmem:[%s3258 + $0x151] sm:$0xff]
      %v3791 = vld [vmem:[%s3258 + $0x159] sm:$0xff]
      %v3792 = vld [vmem:[%s3258 + $0x169] sm:$0xff]
      %v3793 = vld [vmem:[%s3258 + $0x171] sm:$0xff]
      %3795 = vset.pattern.permute.xlu0 4
      %3796 = vperm.xlu0 %3795, %v3762
      %v3797 = vpop.permute.xlu0 %3796
      %3800 = vset.pattern.permute.xlu0 4
      %3801 = vperm.xlu0 %3800, %v3763
      %v3802 = vpop.permute.xlu0 %3801
      %3805 = vset.pattern.permute.xlu0 4
      %3806 = vperm.xlu0 %3805, %v3764
      %v3807 = vpop.permute.xlu0 %3806
      %3810 = vset.pattern.permute.xlu0 4
      %3811 = vperm.xlu0 %3810, %v3765
      %v3812 = vpop.permute.xlu0 %3811
      %3815 = vset.pattern.permute.xlu0 4
      %3816 = vperm.xlu0 %3815, %v3766
      %v3817 = vpop.permute.xlu0 %3816
      %3820 = vset.pattern.permute.xlu0 4
      %3821 = vperm.xlu0 %3820, %v3767
      %v3822 = vpop.permute.xlu0 %3821
      %3825 = vset.pattern.permute.xlu0 4
      %3826 = vperm.xlu0 %3825, %v3768
      %v3827 = vpop.permute.xlu0 %3826
      %3830 = vset.pattern.permute.xlu0 4
      %3831 = vperm.xlu0 %3830, %v3769
      %v3832 = vpop.permute.xlu0 %3831
      %3835 = vset.pattern.permute.xlu0 4
      %3836 = vperm.xlu0 %3835, %v3770
      %v3837 = vpop.permute.xlu0 %3836
      %3840 = vset.pattern.permute.xlu0 4
      %3841 = vperm.xlu0 %3840, %v3771
      %v3842 = vpop.permute.xlu0 %3841
      %3845 = vset.pattern.permute.xlu0 4
      %3846 = vperm.xlu0 %3845, %v3772
      %v3847 = vpop.permute.xlu0 %3846
      %3850 = vset.pattern.permute.xlu0 4
      %3851 = vperm.xlu0 %3850, %v3773
      %v3852 = vpop.permute.xlu0 %3851
      %3855 = vset.pattern.permute.xlu0 4
      %3856 = vperm.xlu0 %3855, %v3774
      %v3857 = vpop.permute.xlu0 %3856
      %3860 = vset.pattern.permute.xlu0 4
      %3861 = vperm.xlu0 %3860, %v3775
      %v3862 = vpop.permute.xlu0 %3861
      %3865 = vset.pattern.permute.xlu0 4
      %3866 = vperm.xlu0 %3865, %v3776
      %v3867 = vpop.permute.xlu0 %3866
      %3870 = vset.pattern.permute.xlu0 4
      %3871 = vperm.xlu0 %3870, %v3777
      %v3872 = vpop.permute.xlu0 %3871
      %3875 = vset.pattern.permute.xlu0 4
      %3876 = vperm.xlu0 %3875, %v3778
      %v3877 = vpop.permute.xlu0 %3876
      %3880 = vset.pattern.permute.xlu0 4
      %3881 = vperm.xlu0 %3880, %v3779
      %v3882 = vpop.permute.xlu0 %3881
      %3885 = vset.pattern.permute.xlu0 4
      %3886 = vperm.xlu0 %3885, %v3780
      %v3887 = vpop.permute.xlu0 %3886
      %3890 = vset.pattern.permute.xlu0 4
      %3891 = vperm.xlu0 %3890, %v3781
      %v3892 = vpop.permute.xlu0 %3891
      %3895 = vset.pattern.permute.xlu0 4
      %3896 = vperm.xlu0 %3895, %v3782
      %v3897 = vpop.permute.xlu0 %3896
      %3900 = vset.pattern.permute.xlu0 4
      %3901 = vperm.xlu0 %3900, %v3783
      %v3902 = vpop.permute.xlu0 %3901
      %3905 = vset.pattern.permute.xlu0 4
      %3906 = vperm.xlu0 %3905, %v3784
      %v3907 = vpop.permute.xlu0 %3906
      %3910 = vset.pattern.permute.xlu0 4
      %3911 = vperm.xlu0 %3910, %v3785
      %v3912 = vpop.permute.xlu0 %3911
      %3915 = vset.pattern.permute.xlu0 4
      %3916 = vperm.xlu0 %3915, %v3786
      %v3917 = vpop.permute.xlu0 %3916
      %3920 = vset.pattern.permute.xlu0 4
      %3921 = vperm.xlu0 %3920, %v3787
      %v3922 = vpop.permute.xlu0 %3921
      %3925 = vset.pattern.permute.xlu0 4
      %3926 = vperm.xlu0 %3925, %v3788
      %v3927 = vpop.permute.xlu0 %3926
      %3930 = vset.pattern.permute.xlu0 4
      %3931 = vperm.xlu0 %3930, %v3789
      %v3932 = vpop.permute.xlu0 %3931
      %3935 = vset.pattern.permute.xlu0 4
      %3936 = vperm.xlu0 %3935, %v3790
      %v3937 = vpop.permute.xlu0 %3936
      %3940 = vset.pattern.permute.xlu0 4
      %3941 = vperm.xlu0 %3940, %v3791
      %v3942 = vpop.permute.xlu0 %3941
      %3945 = vset.pattern.permute.xlu0 4
      %3946 = vperm.xlu0 %3945, %v3792
      %v3947 = vpop.permute.xlu0 %3946
      %3950 = vset.pattern.permute.xlu0 4
      %3951 = vperm.xlu0 %3950, %v3793
      %v3952 = vpop.permute.xlu0 %3951
      %v3954 = vmul.f32 %v3762, %v3797
      %v3955 = vmul.f32 %v3763, %v3802
      %v3956 = vmul.f32 %v3764, %v3807
      %v3957 = vmul.f32 %v3765, %v3812
      %v3958 = vmul.f32 %v3766, %v3817
      %v3959 = vmul.f32 %v3767, %v3822
      %v3960 = vmul.f32 %v3768, %v3827
      %v3961 = vmul.f32 %v3769, %v3832
      %v3962 = vmul.f32 %v3770, %v3837
      %v3963 = vmul.f32 %v3771, %v3842
      %v3964 = vmul.f32 %v3772, %v3847
      %v3965 = vmul.f32 %v3773, %v3852
      %v3966 = vmul.f32 %v3774, %v3857
      %v3967 = vmul.f32 %v3775, %v3862
      %v3968 = vmul.f32 %v3776, %v3867
      %v3969 = vmul.f32 %v3777, %v3872
      %v3970 = vmul.f32 %v3778, %v3877
      %v3971 = vmul.f32 %v3779, %v3882
      %v3972 = vmul.f32 %v3780, %v3887
      %v3973 = vmul.f32 %v3781, %v3892
      %v3974 = vmul.f32 %v3782, %v3897
      %v3975 = vmul.f32 %v3783, %v3902
      %v3976 = vmul.f32 %v3784, %v3907
      %v3977 = vmul.f32 %v3785, %v3912
      %v3978 = vmul.f32 %v3786, %v3917
      %v3979 = vmul.f32 %v3787, %v3922
      %v3980 = vmul.f32 %v3788, %v3927
      %v3981 = vmul.f32 %v3789, %v3932
      %v3982 = vmul.f32 %v3790, %v3937
      %v3983 = vmul.f32 %v3791, %v3942
      %v3984 = vmul.f32 %v3792, %v3947
      %v3985 = vmul.f32 %v3793, %v3952
      %v3986 = vsel %vm461, %v3954, %v3762
      %v3987 = vsel %vm461, %v3955, %v3763
      %v3988 = vsel %vm461, %v3956, %v3764
      %v3989 = vsel %vm461, %v3957, %v3765
      %v3990 = vsel %vm461, %v3958, %v3766
      %v3991 = vsel %vm461, %v3959, %v3767
      %v3992 = vsel %vm461, %v3960, %v3768
      %v3993 = vsel %vm461, %v3961, %v3769
      %v3994 = vsel %vm461, %v3962, %v3770
      %v3995 = vsel %vm461, %v3963, %v3771
      %v3996 = vsel %vm461, %v3964, %v3772
      %v3997 = vsel %vm461, %v3965, %v3773
      %v3998 = vsel %vm461, %v3966, %v3774
      %v3999 = vsel %vm461, %v3967, %v3775
      %v4000 = vsel %vm461, %v3968, %v3776
      %v4001 = vsel %vm461, %v3969, %v3777
      %v4002 = vsel %vm461, %v3970, %v3778
      %v4003 = vsel %vm461, %v3971, %v3779
      %v4004 = vsel %vm461, %v3972, %v3780
      %v4005 = vsel %vm461, %v3973, %v3781
      %v4006 = vsel %vm461, %v3974, %v3782
      %v4007 = vsel %vm461, %v3975, %v3783
      %v4008 = vsel %vm461, %v3976, %v3784
      %v4009 = vsel %vm461, %v3977, %v3785
      %v4010 = vsel %vm461, %v3978, %v3786
      %v4011 = vsel %vm461, %v3979, %v3787
      %v4012 = vsel %vm461, %v3980, %v3788
      %v4013 = vsel %vm461, %v3981, %v3789
      %v4014 = vsel %vm461, %v3982, %v3790
      %v4015 = vsel %vm461, %v3983, %v3791
      %v4016 = vsel %vm461, %v3984, %v3792
      %v4017 = vsel %vm461, %v3985, %v3793
      %v4019 = vsel %vm794, %v225, 0
      %v4022 = vsel %vm794, %v226, 0
      %v4025 = vsel %vm794, %v3986, 0
      %v4028 = vsel %vm794, %v3987, 0
      %v4031 = vsel %vm794, %v3988, 0
      %v4034 = vsel %vm794, %v3989, 0
      %v4037 = vsel %vm794, %v3990, 0
      %v4040 = vsel %vm794, %v3991, 0
      %v4043 = vsel %vm794, %v3992, 0
      %v4046 = vsel %vm794, %v3993, 0
      %v4049 = vsel %vm794, %v3994, 0
      %v4052 = vsel %vm794, %v3995, 0
      %v4055 = vsel %vm794, %v3996, 0
      %v4058 = vsel %vm794, %v3997, 0
      %v4061 = vsel %vm794, %v3998, 0
      %v4064 = vsel %vm794, %v3999, 0
      %v4067 = vsel %vm794, %v4000, 0
      %v4070 = vsel %vm794, %v4001, 0
      %v4073 = vsel %vm794, %v4002, 0
      %v4076 = vsel %vm794, %v4003, 0
      %v4079 = vsel %vm794, %v4004, 0
      %v4082 = vsel %vm794, %v4005, 0
      %v4085 = vsel %vm794, %v4006, 0
      %v4088 = vsel %vm794, %v4007, 0
      %v4091 = vsel %vm794, %v4008, 0
      %v4094 = vsel %vm794, %v4009, 0
      %v4097 = vsel %vm794, %v4010, 0
      %v4100 = vsel %vm794, %v4011, 0
      %v4103 = vsel %vm794, %v4012, 0
      %v4106 = vsel %vm794, %v4013, 0
      %v4109 = vsel %vm794, %v4014, 0
      %v4112 = vsel %vm794, %v4015, 0
      %v4115 = vsel %vm794, %v4016, 0
      %v4118 = vsel %vm794, %v4017, 0
      %4120 = vmatprep.subr.mxu0 0.0
      %4121 = vmatpush1.xpose.msra.mxu0 %v4025
      %4122 = vmatprep.subr.mxu0 0.0
      %4123 = vmatpush1.xpose.msra.mxu0 %v4028
      %4124 = vmatprep.subr.mxu0 0.0
      %4125 = vmatpush1.xpose.msra.mxu0 %v4031
      %4126 = vmatprep.subr.mxu0 0.0
      %4127 = vmatpush1.xpose.msra.mxu0 %v4034
      %4128 = vmatprep.subr.mxu0 0.0
      %4129 = vmatpush1.xpose.msra.mxu0 %v4037
      %4130 = vmatprep.subr.mxu0 0.0
      %4131 = vmatpush1.xpose.msra.mxu0 %v4040
      %4132 = vmatprep.subr.mxu0 0.0
      %4133 = vmatpush1.xpose.msra.mxu0 %v4043
      %4134 = vmatprep.subr.mxu0 0.0
      %4135 = vmatpush1.xpose.msra.mxu0 %v4046
      %4136 = vmatprep.subr.mxu0 0.0
      %4137 = vmatpush1.xpose.msra.mxu0 %v4049
      %4138 = vmatprep.subr.mxu0 0.0
      %4139 = vmatpush1.xpose.msra.mxu0 %v4052
      %4140 = vmatprep.subr.mxu0 0.0
      %4141 = vmatpush1.xpose.msra.mxu0 %v4055
      %4142 = vmatprep.subr.mxu0 0.0
      %4143 = vmatpush1.xpose.msra.mxu0 %v4058
      %4144 = vmatprep.subr.mxu0 0.0
      %4145 = vmatpush1.xpose.msra.mxu0 %v4061
      %4146 = vmatprep.subr.mxu0 0.0
      %4147 = vmatpush1.xpose.msra.mxu0 %v4064
      %4148 = vmatprep.subr.mxu0 0.0
      %4149 = vmatpush1.xpose.msra.mxu0 %v4067
      %4150 = vmatprep.subr.mxu0 0.0
      %4151 = vmatpush1.xpose.msra.mxu0 %v4070
      %4152 = vmatprep.subr.mxu0 0.0
      %4153 = vmatpush1.xpose.msra.mxu0 %v4073
      %4154 = vmatprep.subr.mxu0 0.0
      %4155 = vmatpush1.xpose.msra.mxu0 %v4076
      %4156 = vmatprep.subr.mxu0 0.0
      %4157 = vmatpush1.xpose.msra.mxu0 %v4079
      %4158 = vmatprep.subr.mxu0 0.0
      %4159 = vmatpush1.xpose.msra.mxu0 %v4082
      %4160 = vmatprep.subr.mxu0 0.0
      %4161 = vmatpush1.xpose.msra.mxu0 %v4085
      %4162 = vmatprep.subr.mxu0 0.0
      %4163 = vmatpush1.xpose.msra.mxu0 %v4088
      %4164 = vmatprep.subr.mxu0 0.0
      %4165 = vmatpush1.xpose.msra.mxu0 %v4091
      %4166 = vmatprep.subr.mxu0 0.0
      %4167 = vmatpush1.xpose.msra.mxu0 %v4094
      %4168 = vmatprep.subr.mxu0 0.0
      %4169 = vmatpush1.xpose.msra.mxu0 %v4097
      %4170 = vmatprep.subr.mxu0 0.0
      %4171 = vmatpush1.xpose.msra.mxu0 %v4100
      %4172 = vmatprep.subr.mxu0 0.0
      %4173 = vmatpush1.xpose.msra.mxu0 %v4103
      %4174 = vmatprep.subr.mxu0 0.0
      %4175 = vmatpush1.xpose.msra.mxu0 %v4106
      %4176 = vmatprep.subr.mxu0 0.0
      %4177 = vmatpush1.xpose.msra.mxu0 %v4109
      %4178 = vmatprep.subr.mxu0 0.0
      %4179 = vmatpush1.xpose.msra.mxu0 %v4112
      %4180 = vmatprep.subr.mxu0 0.0
      %4181 = vmatpush1.xpose.msra.mxu0 %v4115
      %4182 = vmatprep.subr.mxu0 0.0
      %4183 = vmatpush1.xpose.msra.mxu0 %v4118
      %4184 = vmatprep.mubr.f32.mxu0 0.0
      %4185 = vmatmul.mubr.f32.gmra.mrb[0].mxu0 %v4019
      %v4186 = vpop.f32.mrb[0].mxu0
      %v4187 = vadd.f32 0.0, %v4186
      %v4188 = vpop.f32.mrb[0].mxu0
      %v4189 = vadd.f32 0.0, %v4188
      %4190 = vmatprep.mubr.f32.mxu0 0.0
      %4191 = vmatmul.mubr.f32.gmra.mrb[0].mxu0 %v4022
      %v4192 = vpop.f32.mrb[0].mxu0
      %v4193 = vadd.f32 0.0, %v4192
      %v4194 = vpop.f32.mrb[0].mxu0
      %v4195 = vadd.f32 0.0, %v4194
      %4196 = vdwg.mxu0
      %v4197 = vadd.f32 %v3694, %v4187
      %v4198 = vadd.f32 %v3695, %v4189
      %v4199 = vadd.f32 %v3696, %v4193
      %v4200 = vadd.f32 %v3697, %v4195
      %v4201 = vsel %vm1165, %v3762, -inf
      %v4202 = vsel %vm1166, %v3763, -inf
      %v4203 = vsel %vm1165, %v3764, -inf
      %v4204 = vsel %vm1166, %v3765, -inf
      %v4205 = vsel %vm1165, %v3766, -inf
      %v4206 = vsel %vm1166, %v3767, -inf
      %v4207 = vsel %vm1165, %v3768, -inf
      %v4208 = vsel %vm1166, %v3769, -inf
      %v4209 = vsel %vm1165, %v3770, -inf
      %v4210 = vsel %vm1166, %v3771, -inf
      %v4211 = vsel %vm1165, %v3772, -inf
      %v4212 = vsel %vm1166, %v3773, -inf
      %v4213 = vsel %vm1165, %v3774, -inf
      %v4214 = vsel %vm1166, %v3775, -inf
      %v4215 = vsel %vm1165, %v3776, -inf
      %v4216 = vsel %vm1166, %v3777, -inf
      %v4217 = vsel %vm1165, %v3778, -inf
      %v4218 = vsel %vm1166, %v3779, -inf
      %v4219 = vsel %vm1165, %v3780, -inf
      %v4220 = vsel %vm1166, %v3781, -inf
      %v4221 = vsel %vm1165, %v3782, -inf
      %v4222 = vsel %vm1166, %v3783, -inf
      %v4223 = vsel %vm1165, %v3784, -inf
      %v4224 = vsel %vm1166, %v3785, -inf
      %v4225 = vsel %vm1165, %v3786, -inf
      %v4226 = vsel %vm1166, %v3787, -inf
      %v4227 = vsel %vm1165, %v3788, -inf
      %v4228 = vsel %vm1166, %v3789, -inf
      %v4229 = vsel %vm1165, %v3790, -inf
      %v4230 = vsel %vm1166, %v3791, -inf
      %v4231 = vsel %vm1163, %v3792, -inf
      %v4232 = vsel %vm1164, %v3793, -inf
      %v4233 = vmax.f32 %v3730, %v4201
      %v4234 = vmax.f32 %v3731, %v4202
      %v4235 = vmax.f32 %v3732, %v4203
      %v4236 = vmax.f32 %v3733, %v4204
      %v4237 = vmax.f32 %v3734, %v4205
      %v4238 = vmax.f32 %v3735, %v4206
      %v4239 = vmax.f32 %v3736, %v4207
      %v4240 = vmax.f32 %v3737, %v4208
      %v4241 = vmax.f32 %v3738, %v4209
      %v4242 = vmax.f32 %v3739, %v4210
      %v4243 = vmax.f32 %v3740, %v4211
      %v4244 = vmax.f32 %v3741, %v4212
      %v4245 = vmax.f32 %v3742, %v4213
      %v4246 = vmax.f32 %v3743, %v4214
      %v4247 = vmax.f32 %v3744, %v4215
      %v4248 = vmax.f32 %v3745, %v4216
      %v4249 = vmax.f32 %v3746, %v4217
      %v4250 = vmax.f32 %v3747, %v4218
      %v4251 = vmax.f32 %v3748, %v4219
      %v4252 = vmax.f32 %v3749, %v4220
      %v4253 = vmax.f32 %v3750, %v4221
      %v4254 = vmax.f32 %v3751, %v4222
      %v4255 = vmax.f32 %v3752, %v4223
      %v4256 = vmax.f32 %v3753, %v4224
      %v4257 = vmax.f32 %v3754, %v4225
      %v4258 = vmax.f32 %v3755, %v4226
      %v4259 = vmax.f32 %v3756, %v4227
      %v4260 = vmax.f32 %v3757, %v4228
      %v4261 = vmax.f32 %v3758, %v4229
      %v4262 = vmax.f32 %v3759, %v4230
      %v4263 = vmax.f32 %v3760, %v4231
      %v4264 = vmax.f32 %v3761, %v4232
      %v4265 = vld [vmem:[%s3258 + $0x2] sm:$0xff]
      %v4266 = vld [vmem:[%s3258 + $0xa] sm:$0xff]
      %v4267 = vld [vmem:[%s3258 + $0x1a] sm:$0xff]
      %v4268 = vld [vmem:[%s3258 + $0x22] sm:$0xff]
      %v4269 = vld [vmem:[%s3258 + $0x32] sm:$0xff]
      %v4270 = vld [vmem:[%s3258 + $0x3a] sm:$0xff]
      %v4271 = vld [vmem:[%s3258 + $0x4a] sm:$0xff]
      %v4272 = vld [vmem:[%s3258 + $0x52] sm:$0xff]
      %v4273 = vld [vmem:[%s3258 + $0x62] sm:$0xff]
      %v4274 = vld [vmem:[%s3258 + $0x6a] sm:$0xff]
      %v4275 = vld [vmem:[%s3258 + $0x7a] sm:$0xff]
      %v4276 = vld [vmem:[%s3258 + $0x82] sm:$0xff]
      %v4277 = vld [vmem:[%s3258 + $0x92] sm:$0xff]
      %v4278 = vld [vmem:[%s3258 + $0x9a] sm:$0xff]
      %v4279 = vld [vmem:[%s3258 + $0xaa] sm:$0xff]
      %v4280 = vld [vmem:[%s3258 + $0xb2] sm:$0xff]
      %v4281 = vld [vmem:[%s3258 + $0xc2] sm:$0xff]
      %v4282 = vld [vmem:[%s3258 + $0xca] sm:$0xff]
      %v4283 = vld [vmem:[%s3258 + $0xda] sm:$0xff]
      %v4284 = vld [vmem:[%s3258 + $0xe2] sm:$0xff]
      %v4285 = vld [vmem:[%s3258 + $0xf2] sm:$0xff]
      %v4286 = vld [vmem:[%s3258 + $0xfa] sm:$0xff]
      %v4287 = vld [vmem:[%s3258 + $0x10a] sm:$0xff]
      %v4288 = vld [vmem:[%s3258 + $0x112] sm:$0xff]
      %v4289 = vld [vmem:[%s3258 + $0x122] sm:$0xff]
      %v4290 = vld [vmem:[%s3258 + $0x12a] sm:$0xff]
      %v4291 = vld [vmem:[%s3258 + $0x13a] sm:$0xff]
      %v4292 = vld [vmem:[%s3258 + $0x142] sm:$0xff]
      %v4293 = vld [vmem:[%s3258 + $0x152] sm:$0xff]
      %v4294 = vld [vmem:[%s3258 + $0x15a] sm:$0xff]
      %v4295 = vld [vmem:[%s3258 + $0x16a] sm:$0xff]
      %v4296 = vld [vmem:[%s3258 + $0x172] sm:$0xff]
      %4298 = vset.pattern.permute.xlu0 4
      %4299 = vperm.xlu0 %4298, %v4265
      %v4300 = vpop.permute.xlu0 %4299
      %4303 = vset.pattern.permute.xlu0 4
      %4304 = vperm.xlu0 %4303, %v4266
      %v4305 = vpop.permute.xlu0 %4304
      %4308 = vset.pattern.permute.xlu0 4
      %4309 = vperm.xlu0 %4308, %v4267
      %v4310 = vpop.permute.xlu0 %4309
      %4313 = vset.pattern.permute.xlu0 4
      %4314 = vperm.xlu0 %4313, %v4268
      %v4315 = vpop.permute.xlu0 %4314
      %4318 = vset.pattern.permute.xlu0 4
      %4319 = vperm.xlu0 %4318, %v4269
      %v4320 = vpop.permute.xlu0 %4319
      %4323 = vset.pattern.permute.xlu0 4
      %4324 = vperm.xlu0 %4323, %v4270
      %v4325 = vpop.permute.xlu0 %4324
      %4328 = vset.pattern.permute.xlu0 4
      %4329 = vperm.xlu0 %4328, %v4271
      %v4330 = vpop.permute.xlu0 %4329
      %4333 = vset.pattern.permute.xlu0 4
      %4334 = vperm.xlu0 %4333, %v4272
      %v4335 = vpop.permute.xlu0 %4334
      %4338 = vset.pattern.permute.xlu0 4
      %4339 = vperm.xlu0 %4338, %v4273
      %v4340 = vpop.permute.xlu0 %4339
      %4343 = vset.pattern.permute.xlu0 4
      %4344 = vperm.xlu0 %4343, %v4274
      %v4345 = vpop.permute.xlu0 %4344
      %4348 = vset.pattern.permute.xlu0 4
      %4349 = vperm.xlu0 %4348, %v4275
      %v4350 = vpop.permute.xlu0 %4349
      %4353 = vset.pattern.permute.xlu0 4
      %4354 = vperm.xlu0 %4353, %v4276
      %v4355 = vpop.permute.xlu0 %4354
      %4358 = vset.pattern.permute.xlu0 4
      %4359 = vperm.xlu0 %4358, %v4277
      %v4360 = vpop.permute.xlu0 %4359
      %4363 = vset.pattern.permute.xlu0 4
      %4364 = vperm.xlu0 %4363, %v4278
      %v4365 = vpop.permute.xlu0 %4364
      %4368 = vset.pattern.permute.xlu0 4
      %4369 = vperm.xlu0 %4368, %v4279
      %v4370 = vpop.permute.xlu0 %4369
      %4373 = vset.pattern.permute.xlu0 4
      %4374 = vperm.xlu0 %4373, %v4280
      %v4375 = vpop.permute.xlu0 %4374
      %4378 = vset.pattern.permute.xlu0 4
      %4379 = vperm.xlu0 %4378, %v4281
      %v4380 = vpop.permute.xlu0 %4379
      %4383 = vset.pattern.permute.xlu0 4
      %4384 = vperm.xlu0 %4383, %v4282
      %v4385 = vpop.permute.xlu0 %4384
      %4388 = vset.pattern.permute.xlu0 4
      %4389 = vperm.xlu0 %4388, %v4283
      %v4390 = vpop.permute.xlu0 %4389
      %4393 = vset.pattern.permute.xlu0 4
      %4394 = vperm.xlu0 %4393, %v4284
      %v4395 = vpop.permute.xlu0 %4394
      %4398 = vset.pattern.permute.xlu0 4
      %4399 = vperm.xlu0 %4398, %v4285
      %v4400 = vpop.permute.xlu0 %4399
      %4403 = vset.pattern.permute.xlu0 4
      %4404 = vperm.xlu0 %4403, %v4286
      %v4405 = vpop.permute.xlu0 %4404
      %4408 = vset.pattern.permute.xlu0 4
      %4409 = vperm.xlu0 %4408, %v4287
      %v4410 = vpop.permute.xlu0 %4409
      %4413 = vset.pattern.permute.xlu0 4
      %4414 = vperm.xlu0 %4413, %v4288
      %v4415 = vpop.permute.xlu0 %4414
      %4418 = vset.pattern.permute.xlu0 4
      %4419 = vperm.xlu0 %4418, %v4289
      %v4420 = vpop.permute.xlu0 %4419
      %4423 = vset.pattern.permute.xlu0 4
      %4424 = vperm.xlu0 %4423, %v4290
      %v4425 = vpop.permute.xlu0 %4424
      %4428 = vset.pattern.permute.xlu0 4
      %4429 = vperm.xlu0 %4428, %v4291
      %v4430 = vpop.permute.xlu0 %4429
      %4433 = vset.pattern.permute.xlu0 4
      %4434 = vperm.xlu0 %4433, %v4292
      %v4435 = vpop.permute.xlu0 %4434
      %4438 = vset.pattern.permute.xlu0 4
      %4439 = vperm.xlu0 %4438, %v4293
      %v4440 = vpop.permute.xlu0 %4439
      %4443 = vset.pattern.permute.xlu0 4
      %4444 = vperm.xlu0 %4443, %v4294
      %v4445 = vpop.permute.xlu0 %4444
      %4448 = vset.pattern.permute.xlu0 4
      %4449 = vperm.xlu0 %4448, %v4295
      %v4450 = vpop.permute.xlu0 %4449
      %4453 = vset.pattern.permute.xlu0 4
      %4454 = vperm.xlu0 %4453, %v4296
      %v4455 = vpop.permute.xlu0 %4454
      %v4457 = vmul.f32 %v4265, %v4300
      %v4458 = vmul.f32 %v4266, %v4305
      %v4459 = vmul.f32 %v4267, %v4310
      %v4460 = vmul.f32 %v4268, %v4315
      %v4461 = vmul.f32 %v4269, %v4320
      %v4462 = vmul.f32 %v4270, %v4325
      %v4463 = vmul.f32 %v4271, %v4330
      %v4464 = vmul.f32 %v4272, %v4335
      %v4465 = vmul.f32 %v4273, %v4340
      %v4466 = vmul.f32 %v4274, %v4345
      %v4467 = vmul.f32 %v4275, %v4350
      %v4468 = vmul.f32 %v4276, %v4355
      %v4469 = vmul.f32 %v4277, %v4360
      %v4470 = vmul.f32 %v4278, %v4365
      %v4471 = vmul.f32 %v4279, %v4370
      %v4472 = vmul.f32 %v4280, %v4375
      %v4473 = vmul.f32 %v4281, %v4380
      %v4474 = vmul.f32 %v4282, %v4385
      %v4475 = vmul.f32 %v4283, %v4390
      %v4476 = vmul.f32 %v4284, %v4395
      %v4477 = vmul.f32 %v4285, %v4400
      %v4478 = vmul.f32 %v4286, %v4405
      %v4479 = vmul.f32 %v4287, %v4410
      %v4480 = vmul.f32 %v4288, %v4415
      %v4481 = vmul.f32 %v4289, %v4420
      %v4482 = vmul.f32 %v4290, %v4425
      %v4483 = vmul.f32 %v4291, %v4430
      %v4484 = vmul.f32 %v4292, %v4435
      %v4485 = vmul.f32 %v4293, %v4440
      %v4486 = vmul.f32 %v4294, %v4445
      %v4487 = vmul.f32 %v4295, %v4450
      %v4488 = vmul.f32 %v4296, %v4455
      %v4489 = vsel %vm461, %v4457, %v4265
      %v4490 = vsel %vm461, %v4458, %v4266
      %v4491 = vsel %vm461, %v4459, %v4267
      %v4492 = vsel %vm461, %v4460, %v4268
      %v4493 = vsel %vm461, %v4461, %v4269
      %v4494 = vsel %vm461, %v4462, %v4270
      %v4495 = vsel %vm461, %v4463, %v4271
      %v4496 = vsel %vm461, %v4464, %v4272
      %v4497 = vsel %vm461, %v4465, %v4273
      %v4498 = vsel %vm461, %v4466, %v4274
      %v4499 = vsel %vm461, %v4467, %v4275
      %v4500 = vsel %vm461, %v4468, %v4276
      %v4501 = vsel %vm461, %v4469, %v4277
      %v4502 = vsel %vm461, %v4470, %v4278
      %v4503 = vsel %vm461, %v4471, %v4279
      %v4504 = vsel %vm461, %v4472, %v4280
      %v4505 = vsel %vm461, %v4473, %v4281
      %v4506 = vsel %vm461, %v4474, %v4282
      %v4507 = vsel %vm461, %v4475, %v4283
      %v4508 = vsel %vm461, %v4476, %v4284
      %v4509 = vsel %vm461, %v4477, %v4285
      %v4510 = vsel %vm461, %v4478, %v4286
      %v4511 = vsel %vm461, %v4479, %v4287
      %v4512 = vsel %vm461, %v4480, %v4288
      %v4513 = vsel %vm461, %v4481, %v4289
      %v4514 = vsel %vm461, %v4482, %v4290
      %v4515 = vsel %vm461, %v4483, %v4291
      %v4516 = vsel %vm461, %v4484, %v4292
      %v4517 = vsel %vm461, %v4485, %v4293
      %v4518 = vsel %vm461, %v4486, %v4294
      %v4519 = vsel %vm461, %v4487, %v4295
      %v4520 = vsel %vm461, %v4488, %v4296
      %v4522 = vsel %vm794, %v227, 0
      %v4525 = vsel %vm794, %v228, 0
      %v4528 = vsel %vm794, %v4489, 0
      %v4531 = vsel %vm794, %v4490, 0
      %v4534 = vsel %vm794, %v4491, 0
      %v4537 = vsel %vm794, %v4492, 0
      %v4540 = vsel %vm794, %v4493, 0
      %v4543 = vsel %vm794, %v4494, 0
      %v4546 = vsel %vm794, %v4495, 0
      %v4549 = vsel %vm794, %v4496, 0
      %v4552 = vsel %vm794, %v4497, 0
      %v4555 = vsel %vm794, %v4498, 0
      %v4558 = vsel %vm794, %v4499, 0
      %v4561 = vsel %vm794, %v4500, 0
      %v4564 = vsel %vm794, %v4501, 0
      %v4567 = vsel %vm794, %v4502, 0
      %v4570 = vsel %vm794, %v4503, 0
      %v4573 = vsel %vm794, %v4504, 0
      %v4576 = vsel %vm794, %v4505, 0
      %v4579 = vsel %vm794, %v4506, 0
      %v4582 = vsel %vm794, %v4507, 0
      %v4585 = vsel %vm794, %v4508, 0
      %v4588 = vsel %vm794, %v4509, 0
      %v4591 = vsel %vm794, %v4510, 0
      %v4594 = vsel %vm794, %v4511, 0
      %v4597 = vsel %vm794, %v4512, 0
      %v4600 = vsel %vm794, %v4513, 0
      %v4603 = vsel %vm794, %v4514, 0
      %v4606 = vsel %vm794, %v4515, 0
      %v4609 = vsel %vm794, %v4516, 0
      %v4612 = vsel %vm794, %v4517, 0
      %v4615 = vsel %vm794, %v4518, 0
      %v4618 = vsel %vm794, %v4519, 0
      %v4621 = vsel %vm794, %v4520, 0
      %4623 = vmatprep.subr.mxu0 0.0
      %4624 = vmatpush1.xpose.msra.mxu0 %v4528
      %4625 = vmatprep.subr.mxu0 0.0
      %4626 = vmatpush1.xpose.msra.mxu0 %v4531
      %4627 = vmatprep.subr.mxu0 0.0
      %4628 = vmatpush1.xpose.msra.mxu0 %v4534
      %4629 = vmatprep.subr.mxu0 0.0
      %4630 = vmatpush1.xpose.msra.mxu0 %v4537
      %4631 = vmatprep.subr.mxu0 0.0
      %4632 = vmatpush1.xpose.msra.mxu0 %v4540
      %4633 = vmatprep.subr.mxu0 0.0
      %4634 = vmatpush1.xpose.msra.mxu0 %v4543
      %4635 = vmatprep.subr.mxu0 0.0
      %4636 = vmatpush1.xpose.msra.mxu0 %v4546
      %4637 = vmatprep.subr.mxu0 0.0
      %4638 = vmatpush1.xpose.msra.mxu0 %v4549
      %4639 = vmatprep.subr.mxu0 0.0
      %4640 = vmatpush1.xpose.msra.mxu0 %v4552
      %4641 = vmatprep.subr.mxu0 0.0
      %4642 = vmatpush1.xpose.msra.mxu0 %v4555
      %4643 = vmatprep.subr.mxu0 0.0
      %4644 = vmatpush1.xpose.msra.mxu0 %v4558
      %4645 = vmatprep.subr.mxu0 0.0
      %4646 = vmatpush1.xpose.msra.mxu0 %v4561
      %4647 = vmatprep.subr.mxu0 0.0
      %4648 = vmatpush1.xpose.msra.mxu0 %v4564
      %4649 = vmatprep.subr.mxu0 0.0
      %4650 = vmatpush1.xpose.msra.mxu0 %v4567
      %4651 = vmatprep.subr.mxu0 0.0
      %4652 = vmatpush1.xpose.msra.mxu0 %v4570
      %4653 = vmatprep.subr.mxu0 0.0
      %4654 = vmatpush1.xpose.msra.mxu0 %v4573
      %4655 = vmatprep.subr.mxu0 0.0
      %4656 = vmatpush1.xpose.msra.mxu0 %v4576
      %4657 = vmatprep.subr.mxu0 0.0
      %4658 = vmatpush1.xpose.msra.mxu0 %v4579
      %4659 = vmatprep.subr.mxu0 0.0
      %4660 = vmatpush1.xpose.msra.mxu0 %v4582
      %4661 = vmatprep.subr.mxu0 0.0
      %4662 = vmatpush1.xpose.msra.mxu0 %v4585
      %4663 = vmatprep.subr.mxu0 0.0
      %4664 = vmatpush1.xpose.msra.mxu0 %v4588
      %4665 = vmatprep.subr.mxu0 0.0
      %4666 = vmatpush1.xpose.msra.mxu0 %v4591
      %4667 = vmatprep.subr.mxu0 0.0
      %4668 = vmatpush1.xpose.msra.mxu0 %v4594
      %4669 = vmatprep.subr.mxu0 0.0
      %4670 = vmatpush1.xpose.msra.mxu0 %v4597
      %4671 = vmatprep.subr.mxu0 0.0
      %4672 = vmatpush1.xpose.msra.mxu0 %v4600
      %4673 = vmatprep.subr.mxu0 0.0
      %4674 = vmatpush1.xpose.msra.mxu0 %v4603
      %4675 = vmatprep.subr.mxu0 0.0
      %4676 = vmatpush1.xpose.msra.mxu0 %v4606
      %4677 = vmatprep.subr.mxu0 0.0
      %4678 = vmatpush1.xpose.msra.mxu0 %v4609
      %4679 = vmatprep.subr.mxu0 0.0
      %4680 = vmatpush1.xpose.msra.mxu0 %v4612
      %4681 = vmatprep.subr.mxu0 0.0
      %4682 = vmatpush1.xpose.msra.mxu0 %v4615
      %4683 = vmatprep.subr.mxu0 0.0
      %4684 = vmatpush1.xpose.msra.mxu0 %v4618
      %4685 = vmatprep.subr.mxu0 0.0
      %4686 = vmatpush1.xpose.msra.mxu0 %v4621
      %4687 = vmatprep.mubr.f32.mxu0 0.0
      %4688 = vmatmul.mubr.f32.gmra.mrb[0].mxu0 %v4522
      %v4689 = vpop.f32.mrb[0].mxu0
      %v4690 = vadd.f32 0.0, %v4689
      %v4691 = vpop.f32.mrb[0].mxu0
      %v4692 = vadd.f32 0.0, %v4691
      %4693 = vmatprep.mubr.f32.mxu0 0.0
      %4694 = vmatmul.mubr.f32.gmra.mrb[0].mxu0 %v4525
      %v4695 = vpop.f32.mrb[0].mxu0
      %v4696 = vadd.f32 0.0, %v4695
      %v4697 = vpop.f32.mrb[0].mxu0
      %v4698 = vadd.f32 0.0, %v4697
      %4699 = vdwg.mxu0
      %v4700 = vadd.f32 %v4197, %v4690
      %v4701 = vadd.f32 %v4198, %v4692
      %v4702 = vadd.f32 %v4199, %v4696
      %v4703 = vadd.f32 %v4200, %v4698
      %v4704 = vsel %vm1682, %v4265, -inf
      %v4705 = vsel %vm1683, %v4266, -inf
      %v4706 = vsel %vm1682, %v4267, -inf
      %v4707 = vsel %vm1683, %v4268, -inf
      %v4708 = vsel %vm1682, %v4269, -inf
      %v4709 = vsel %vm1683, %v4270, -inf
      %v4710 = vsel %vm1682, %v4271, -inf
      %v4711 = vsel %vm1683, %v4272, -inf
      %v4712 = vsel %vm1682, %v4273, -inf
      %v4713 = vsel %vm1683, %v4274, -inf
      %v4714 = vsel %vm1682, %v4275, -inf
      %v4715 = vsel %vm1683, %v4276, -inf
      %v4716 = vsel %vm1682, %v4277, -inf
      %v4717 = vsel %vm1683, %v4278, -inf
      %v4718 = vsel %vm1682, %v4279, -inf
      %v4719 = vsel %vm1683, %v4280, -inf
      %v4720 = vsel %vm1682, %v4281, -inf
      %v4721 = vsel %vm1683, %v4282, -inf
      %v4722 = vsel %vm1682, %v4283, -inf
      %v4723 = vsel %vm1683, %v4284, -inf
      %v4724 = vsel %vm1682, %v4285, -inf
      %v4725 = vsel %vm1683, %v4286, -inf
      %v4726 = vsel %vm1682, %v4287, -inf
      %v4727 = vsel %vm1683, %v4288, -inf
      %v4728 = vsel %vm1682, %v4289, -inf
      %v4729 = vsel %vm1683, %v4290, -inf
      %v4730 = vsel %vm1682, %v4291, -inf
      %v4731 = vsel %vm1683, %v4292, -inf
      %v4732 = vsel %vm1682, %v4293, -inf
      %v4733 = vsel %vm1683, %v4294, -inf
      %v4734 = vsel %vm1680, %v4295, -inf
      %v4735 = vsel %vm1681, %v4296, -inf
      %v4736 = vmax.f32 %v4233, %v4704
      %v4737 = vmax.f32 %v4234, %v4705
      %v4738 = vmax.f32 %v4235, %v4706
      %v4739 = vmax.f32 %v4236, %v4707
      %v4740 = vmax.f32 %v4237, %v4708
      %v4741 = vmax.f32 %v4238, %v4709
      %v4742 = vmax.f32 %v4239, %v4710
      %v4743 = vmax.f32 %v4240, %v4711
      %v4744 = vmax.f32 %v4241, %v4712
      %v4745 = vmax.f32 %v4242, %v4713
      %v4746 = vmax.f32 %v4243, %v4714
      %v4747 = vmax.f32 %v4244, %v4715
      %v4748 = vmax.f32 %v4245, %v4716
      %v4749 = vmax.f32 %v4246, %v4717
      %v4750 = vmax.f32 %v4247, %v4718
      %v4751 = vmax.f32 %v4248, %v4719
      %v4752 = vmax.f32 %v4249, %v4720
      %v4753 = vmax.f32 %v4250, %v4721
      %v4754 = vmax.f32 %v4251, %v4722
      %v4755 = vmax.f32 %v4252, %v4723
      %v4756 = vmax.f32 %v4253, %v4724
      %v4757 = vmax.f32 %v4254, %v4725
      %v4758 = vmax.f32 %v4255, %v4726
      %v4759 = vmax.f32 %v4256, %v4727
      %v4760 = vmax.f32 %v4257, %v4728
      %v4761 = vmax.f32 %v4258, %v4729
      %v4762 = vmax.f32 %v4259, %v4730
      %v4763 = vmax.f32 %v4260, %v4731
      %v4764 = vmax.f32 %v4261, %v4732
      %v4765 = vmax.f32 %v4262, %v4733
      %v4766 = vmax.f32 %v4263, %v4734
      %v4767 = vmax.f32 %v4264, %v4735
      %v4768 = vmul.f32 %v4702, 4.0
      %v4769 = vmul.f32 %v4703, 4.0
      %v4770 = vmax.f32 %v4768, 1e-05
      %v4771 = vmax.f32 %v4769, 1e-05
      %v4772 = vrcp.pop %v4770
      %v4773 = vmul.f32 1.0, %v4772
      %v4774 = vrcp.pop %v4771
      %v4775 = vmul.f32 1.0, %v4774
      %v4776 = vlaneseq
      %v4777 = vshrl.u32 %v4776, 7
      %v4778 = vsub.s32 0, %v4777
      %v4779 = vrot.slane %v4773, %v4778
      %v4780 = vlaneseq
      %v4781 = vshrl.u32 %v4780, 7
      %v4782 = vsub.s32 0, %v4781
      %v4783 = vrot.slane %v4775, %v4782
      %v4784 = vmul.f32 %v4700, %v4779
      %v4785 = vmul.f32 %v4701, %v4783
      %4787 = vset.pattern.permute.xlu0 0
      %4788 = vperm.xlu0 %4787, %v229
      %v4789 = vpop.permute.xlu0 %4788
      %v4791 = vadd.f32 %v4784, %v4789
      %v4792 = vadd.f32 %v4785, %v4789
      %4793 = vst [vmem:[%s205] sm:$0xff] %v4791
      %4794 = vst [vmem:[%s205 + $0x8] sm:$0xff] %v4792
      %4827 = vrot.lane.b32.xlu0 %v4736, 124
      %v4828 = vpop.permute.xlu0 %4827
      %4829 = vrot.lane.b32.xlu0 %v4737, 124
      %v4830 = vpop.permute.xlu0 %4829
      %4831 = vrot.lane.b32.xlu0 %v4738, 124
      %v4832 = vpop.permute.xlu0 %4831
      %4833 = vrot.lane.b32.xlu0 %v4739, 124
      %v4834 = vpop.permute.xlu0 %4833
      %4835 = vrot.lane.b32.xlu0 %v4740, 124
      %v4836 = vpop.permute.xlu0 %4835
      %4837 = vrot.lane.b32.xlu0 %v4741, 124
      %v4838 = vpop.permute.xlu0 %4837
      %4839 = vrot.lane.b32.xlu0 %v4742, 124
      %v4840 = vpop.permute.xlu0 %4839
      %4841 = vrot.lane.b32.xlu0 %v4743, 124
      %v4842 = vpop.permute.xlu0 %4841
      %4843 = vrot.lane.b32.xlu0 %v4744, 124
      %v4844 = vpop.permute.xlu0 %4843
      %4845 = vrot.lane.b32.xlu0 %v4745, 124
      %v4846 = vpop.permute.xlu0 %4845
      %4847 = vrot.lane.b32.xlu0 %v4746, 124
      %v4848 = vpop.permute.xlu0 %4847
      %4849 = vrot.lane.b32.xlu0 %v4747, 124
      %v4850 = vpop.permute.xlu0 %4849
      %4851 = vrot.lane.b32.xlu0 %v4748, 124
      %v4852 = vpop.permute.xlu0 %4851
      %4853 = vrot.lane.b32.xlu0 %v4749, 124
      %v4854 = vpop.permute.xlu0 %4853
      %4855 = vrot.lane.b32.xlu0 %v4750, 124
      %v4856 = vpop.permute.xlu0 %4855
      %4857 = vrot.lane.b32.xlu0 %v4751, 124
      %v4858 = vpop.permute.xlu0 %4857
      %4859 = vrot.lane.b32.xlu0 %v4752, 124
      %v4860 = vpop.permute.xlu0 %4859
      %4861 = vrot.lane.b32.xlu0 %v4753, 124
      %v4862 = vpop.permute.xlu0 %4861
      %4863 = vrot.lane.b32.xlu0 %v4754, 124
      %v4864 = vpop.permute.xlu0 %4863
      %4865 = vrot.lane.b32.xlu0 %v4755, 124
      %v4866 = vpop.permute.xlu0 %4865
      %4867 = vrot.lane.b32.xlu0 %v4756, 124
      %v4868 = vpop.permute.xlu0 %4867
      %4869 = vrot.lane.b32.xlu0 %v4757, 124
      %v4870 = vpop.permute.xlu0 %4869
      %4871 = vrot.lane.b32.xlu0 %v4758, 124
      %v4872 = vpop.permute.xlu0 %4871
      %4873 = vrot.lane.b32.xlu0 %v4759, 124
      %v4874 = vpop.permute.xlu0 %4873
      %4875 = vrot.lane.b32.xlu0 %v4760, 124
      %v4876 = vpop.permute.xlu0 %4875
      %4877 = vrot.lane.b32.xlu0 %v4761, 124
      %v4878 = vpop.permute.xlu0 %4877
      %4879 = vrot.lane.b32.xlu0 %v4762, 124
      %v4880 = vpop.permute.xlu0 %4879
      %4881 = vrot.lane.b32.xlu0 %v4763, 124
      %v4882 = vpop.permute.xlu0 %4881
      %4883 = vrot.lane.b32.xlu0 %v4764, 124
      %v4884 = vpop.permute.xlu0 %4883
      %4885 = vrot.lane.b32.xlu0 %v4765, 124
      %v4886 = vpop.permute.xlu0 %4885
      %4887 = vrot.lane.b32.xlu0 %v4766, 124
      %v4888 = vpop.permute.xlu0 %4887
      %4889 = vrot.lane.b32.xlu0 %v4767, 124
      %v4890 = vpop.permute.xlu0 %4889
      %vm4923 = vcmask 7168
      %4924 = vst.msk [vmem:[%s210] sm:$0xff] %vm4923, %v4828
      %4925 = vst.msk [vmem:[%s210 + $0x8] sm:$0xff] %vm4923, %v4830
      %4926 = vst.msk [vmem:[%s210 + $0x10] sm:$0xff] %vm4923, %v4832
      %4927 = vst.msk [vmem:[%s210 + $0x18] sm:$0xff] %vm4923, %v4834
      %4928 = vst.msk [vmem:[%s210 + $0x20] sm:$0xff] %vm4923, %v4836
      %4929 = vst.msk [vmem:[%s210 + $0x28] sm:$0xff] %vm4923, %v4838
      %4930 = vst.msk [vmem:[%s210 + $0x30] sm:$0xff] %vm4923, %v4840
      %4931 = vst.msk [vmem:[%s210 + $0x38] sm:$0xff] %vm4923, %v4842
      %4932 = vst.msk [vmem:[%s210 + $0x40] sm:$0xff] %vm4923, %v4844
      %4933 = vst.msk [vmem:[%s210 + $0x48] sm:$0xff] %vm4923, %v4846
      %4934 = vst.msk [vmem:[%s210 + $0x50] sm:$0xff] %vm4923, %v4848
      %4935 = vst.msk [vmem:[%s210 + $0x58] sm:$0xff] %vm4923, %v4850
      %4936 = vst.msk [vmem:[%s210 + $0x60] sm:$0xff] %vm4923, %v4852
      %4937 = vst.msk [vmem:[%s210 + $0x68] sm:$0xff] %vm4923, %v4854
      %4938 = vst.msk [vmem:[%s210 + $0x70] sm:$0xff] %vm4923, %v4856
      %4939 = vst.msk [vmem:[%s210 + $0x78] sm:$0xff] %vm4923, %v4858
      %4940 = vst.msk [vmem:[%s210 + $0x80] sm:$0xff] %vm4923, %v4860
      %4941 = vst.msk [vmem:[%s210 + $0x88] sm:$0xff] %vm4923, %v4862
      %4942 = vst.msk [vmem:[%s210 + $0x90] sm:$0xff] %vm4923, %v4864
      %4943 = vst.msk [vmem:[%s210 + $0x98] sm:$0xff] %vm4923, %v4866
      %4944 = vst.msk [vmem:[%s210 + $0xa0] sm:$0xff] %vm4923, %v4868
      %4945 = vst.msk [vmem:[%s210 + $0xa8] sm:$0xff] %vm4923, %v4870
      %4946 = vst.msk [vmem:[%s210 + $0xb0] sm:$0xff] %vm4923, %v4872
      %4947 = vst.msk [vmem:[%s210 + $0xb8] sm:$0xff] %vm4923, %v4874
      %4948 = vst.msk [vmem:[%s210 + $0xc0] sm:$0xff] %vm4923, %v4876
      %4949 = vst.msk [vmem:[%s210 + $0xc8] sm:$0xff] %vm4923, %v4878
      %4950 = vst.msk [vmem:[%s210 + $0xd0] sm:$0xff] %vm4923, %v4880
      %4951 = vst.msk [vmem:[%s210 + $0xd8] sm:$0xff] %vm4923, %v4882
      %4952 = vst.msk [vmem:[%s210 + $0xe0] sm:$0xff] %vm4923, %v4884
      %4953 = vst.msk [vmem:[%s210 + $0xe8] sm:$0xff] %vm4923, %v4886
      %4954 = vst.msk [vmem:[%s210 + $0xf0] sm:$0xff] %vm4923, %v4888
      %4955 = vst.msk [vmem:[%s210 + $0xf8] sm:$0xff] %vm4923, %v4890
      %p4956 = scmp.lt.s32.totalorder %s16, 1
      %s4957 = scalar_select %p4956, %s16, 1
      %s4958 = smul.addr %s4957, 2
      %s4959 = smul.addr %s4958, 8
      %s4960 = scalar_lea.vmem %s3, %s4959
      %p4961 = scmp.lt.s32.totalorder %s16, 1
      %s4962 = scalar_select %p4961, %s16, 1
      %s4963 = smul.addr %s4962, 32
      %s4964 = smul.addr %s4963, 8
      %s4965 = scalar_lea.vmem %s4, %s4964
      // Predicated region
      $region33: #{sparse_conv_pallas.1} parent=31 // pred_check
        %p4966 = pneg %p102
      $region34: #{sparse_conv_pallas.1} parent=31 // pred_check_branch
        %4968 = sbr.rel (%p4966) target = $region36
      $region35: #{sparse_conv_pallas.1} parent=31 // pred_region
        _
      $region36: #{sparse_conv_pallas.1} parent=31 // pred_fallthru
        _
      // Predicated region
      $region37: #{sparse_conv_pallas.1} parent=31 // pred_check
        %p4969 = pneg %p128
      $region38: #{sparse_conv_pallas.1} parent=31 // pred_check_branch
        %4971 = sbr.rel (%p4969) target = $region40
      $region39: #{sparse_conv_pallas.1} parent=31 // pred_region
        _
      $region40: #{sparse_conv_pallas.1} parent=31 // pred_fallthru
        _
    $region32: #{sparse_conv_pallas.1} parent=5 // pred_fallthru
      _
    %p4972 = scmp.le.s32.totalorder 2, %s11
    // Predicated region
    $region41: #{sparse_conv_pallas.1} parent=5 // pred_check
      %p4973 = pneg %p4972
    $region42: #{sparse_conv_pallas.1} parent=5 // pred_check_branch
      %4975 = sbr.rel (%p4973) target = $region44
    $region43: #{sparse_conv_pallas.1} parent=5 // pred_region
      %s4976 = ssub.s32 %s11, 2
      // Predicated region
      $region45: #{sparse_conv_pallas.1} parent=43 // pred_check
        %p4977 = pneg %p108
      $region46: #{sparse_conv_pallas.1} parent=43 // pred_check_branch
        %4979 = sbr.rel (%p4977) target = $region48
      $region47: #{sparse_conv_pallas.1} parent=43 // pred_region
        %p4980 = scmp.lt.s32.totalorder %s17, 1
        %s4981 = scalar_select %p4980, %s17, 1
        %s4982 = smul.addr %s4981, 2
        %s4983 = smul.addr %s4982, 8
        %s4984 = scalar_lea.vmem %s3, %s4983
      $region48: #{sparse_conv_pallas.1} parent=43 // pred_fallthru
        _
      // Predicated region
      $region49: #{sparse_conv_pallas.1} parent=43 // pred_check
        %p4985 = pneg %p134
      $region50: #{sparse_conv_pallas.1} parent=43 // pred_check_branch
        %4987 = sbr.rel (%p4985) target = $region52
      $region51: #{sparse_conv_pallas.1} parent=43 // pred_region
        %p4988 = scmp.lt.s32.totalorder %s17, 1
        %s4989 = scalar_select %p4988, %s17, 1
        %s4990 = smul.addr %s4989, 32
        %s4991 = smul.addr %s4990, 8
        %s4992 = scalar_lea.vmem %s4, %s4991
      $region52: #{sparse_conv_pallas.1} parent=43 // pred_fallthru
        _
    $region44: #{sparse_conv_pallas.1} parent=5 // pred_fallthru
      _
  $region6: #{sparse_conv_pallas.1} parent=0 // loop_footer
    %s15 = sadd.s32 1, %s11
  $region7: #{sparse_conv_pallas.1} parent=0 // loop_footer_branch
    %10 = sbr.rel target = $region3
  $region8: #{sparse_conv_pallas.1} parent=0 // loop_exit
    _

</llo_original>
